<compile_context>
chip_gen: v5e
topology: v5e:2x2
jax: 0.10.0
libtpu: 0.0.40
codegen_flags: <defaults>
</compile_context>

<pallas_src>
import functools

import jax
import jax.numpy as jnp
from jax.experimental import pallas as pl
from jax.experimental.pallas import tpu as pltpu


# --------------------------------- kernel ------------------------------------

def _sigmoid(v):
    # exp -> EUP; reciprocal instead of an explicit divide (exact, approx=False).
    return pl.reciprocal(1.0 + jnp.exp(-v))


def fusion_kernel(x1_ref, x2_ref, row_ref, col_ref, s_ref, t_ref,
                  cv1w_ref, cv1b_ref, dw1w_ref, dw1b_ref, dw2w_ref, dw2b_ref,
                  caw1_ref, cab1_ref, caw2_ref, cab2_ref,
                  saw_ref, sab_ref, paw_ref, pab_ref, fcw_ref, fcb_ref,
                  out_ref, *, H, W, RPAD):
    C, HW = x1_ref.shape
    x1 = x1_ref[...]                     # (C, HW) fp32
    x2 = x2_ref[...]
    hh = row_ref[...]                    # (1, HW) int32  (pixel row index)
    ww = col_ref[...]                    # (1, HW) int32  (pixel col index)
    S = s_ref[...]                       # (HW, PPL) reflect-scatter selection
    T = t_ref[...]                       # (PPL, HW) interior-gather selection
    PPL = S.shape[1]
    Wp = W + 2 * RPAD                    # padded row stride for reflect convs

    # Separable zero-pad edge masks, memoized so each distinct row / col offset
    # is compared against the iota exactly once (explicit CSE; pure VPU).
    row_masks, col_masks = {}, {}

    def edge_mask(a, b):
        if a not in row_masks:
            row_masks[a] = (hh + a >= 0) & (hh + a < H)
        if b not in col_masks:
            col_masks[b] = (ww + b >= 0) & (ww + b < W)
        return row_masks[a] & col_masks[b]

    def zshift(v, a, b):
        # v[:, i] <- v[:, i + a*W + b], zero outside the HxW image (flat roll + mask).
        shift = (-(a * W + b)) % HW
        rolled = v if shift == 0 else pltpu.roll(v, shift, axis=1)
        return jnp.where(edge_mask(a, b), rolled, 0.0)

    # ---- cv1: 3x3 dense conv on [x1;x2] as ONE im2col MXU matmul (K = 9*2C) ----
    x12 = jnp.concatenate([x1, x2], axis=0)                       # (2C, HW)
    pats = [zshift(x12, dy - 1, dx - 1) for dy in range(3) for dx in range(3)]
    patches = jnp.concatenate(pats, axis=0)                       # (9*2C, HW)
    x = (jnp.dot(cv1w_ref[...], patches, preferred_element_type=jnp.float32)
         + cv1b_ref[...])                                         # (C, HW)

    # ---- zero-padded depthwise convs (roll + mask, lane-dense) ----
    def dw_zero(v, kt, k, pad, dil=1):
        acc = jnp.zeros_like(v)
        t = 0
        for dy in range(k):
            for dx in range(k):
                acc = acc + zshift(v, dy * dil - pad, dx * dil - pad) * kt[:, t:t + 1]
                t += 1
        return acc

    f1 = dw_zero(x, dw1w_ref[...], 5, 2) + dw1b_ref[...]          # 5x5, pad 2
    f2 = dw_zero(f1, dw2w_ref[...], 7, 9, dil=3) + dw2b_ref[...]  # 7x7, dil 3, pad 9
    initial = f1 + f2

    # ---- channel attention: GAP -> 1x1 -> ReLU -> 1x1 (MXU mat-vecs) ----
    gap = jnp.mean(initial, axis=1, keepdims=True)                # (C, 1)
    hid = jnp.maximum(
        jnp.dot(caw1_ref[...], gap, preferred_element_type=jnp.float32)
        + cab1_ref[...], 0.0)                                     # (CrP, 1)
    cattn = (jnp.dot(caw2_ref[...], hid, preferred_element_type=jnp.float32)
             + cab2_ref[...])                                     # (C, 1)

    # ---- reflect-padded 7x7 convs in padded flat coordinates ----
    def reflect_taps(v, kt):
        # v: (rows, HW); scatter to reflect-padded flat buffer, accumulate 49
        # unmasked rolls (interior never wraps), return (rows, PPL).
        P = jnp.dot(v, S, preferred_element_type=jnp.float32)     # (rows, PPL)
        acc = jnp.zeros_like(P)
        t = 0
        for dy in range(2 * RPAD + 1):
            for dx in range(2 * RPAD + 1):
                shift = (-((dy - RPAD) * Wp + (dx - RPAD))) % PPL
                rolled = P if shift == 0 else pltpu.roll(P, shift, axis=1)
                acc = acc + rolled * kt[:, t:t + 1]
                t += 1
        return acc

    # Spatial attention: [mean_c, max_c] -> 7x7 reflect conv -> (1, HW).
    # 2-row accumulator, channel-reduce once at the end.
    s2 = jnp.concatenate([jnp.mean(initial, axis=0, keepdims=True),
                          jnp.max(initial, axis=0, keepdims=True)], axis=0)
    sacc = reflect_taps(s2, saw_ref[...])                         # (2, PPL)
    sattn = (jnp.dot(jnp.sum(sacc, axis=0, keepdims=True), T,
                     preferred_element_type=jnp.float32) + sab_ref[...])  # (1, HW)

    pattn1 = sattn + cattn                                        # (C, HW)

    # Pixel attention: grouped 7x7 reflect conv over [initial ; pattn1] in one pass.
    pin = jnp.concatenate([initial, pattn1], axis=0)              # (2C, HW)
    pacc = reflect_taps(pin, paw_ref[...])                        # (2C, PPL)
    pa = (jnp.dot(pacc[:C] + pacc[C:], T, preferred_element_type=jnp.float32)
          + pab_ref[...])                                         # (C, HW)

    # Double sigmoid matches the PyTorch code (PixelAttention applies sigmoid,
    # CGAFusion applies it again).
    pattn2 = _sigmoid(_sigmoid(pa))

    res = initial + pattn2 * f1 + (1.0 - pattn2) * f2
    res = (jnp.dot(fcw_ref[...], res, preferred_element_type=jnp.float32)
           + fcb_ref[...])                                        # final 1x1 conv

    out_ref[...] = (res + x).astype(out_ref.dtype)


# --------------------------------- wrapper -----------------------------------

def _zero_idx(nd, b):
    return (0,) * nd


def _reflect_select_mats(H, W, p, lane_pad=128):
    """0/1 selection matrices: flat image -> reflect-padded flat, and back."""
    Hp, Wp = H + 2 * p, W + 2 * p
    PP = Hp * Wp
    PPL = ((PP + lane_pad - 1) // lane_pad) * lane_pad   # lane-aligned length

    j = jnp.arange(PPL)
    hp = j // Wp - p
    wp = j % Wp - p

    def refl(t, n):
        t = jnp.abs(t)
        return jnp.where(t >= n, 2 * (n - 1) - t, t)

    src = refl(hp, H) * W + refl(wp, W)                  # (PPL,)
    i = jnp.arange(H * W)
    S = ((i[:, None] == src[None, :]) & (j[None, :] < PP)).astype(jnp.float32)
    dst = (i // W + p) * Wp + (i % W + p)                # (HW,)
    T = (j[:, None] == dst[None, :]).astype(jnp.float32)
    return S, T                                          # (HW, PPL), (PPL, HW)


@jax.jit
def my_fusion_block(x1, x2, p):
    """x1, x2: (B, C, H, W) float32 (NCHW, like PyTorch). Returns (B, C, H, W)."""
    B, C, H, W = x1.shape
    HW = H * W
    assert HW % 128 == 0 and C % 8 == 0, "kernel assumes lane-dense H*W and C % 8 == 0"
    assert min(H, W) > 3, "reflect padding (3) needs H, W >= 4"
    RPAD = 3
    Cr = p['ca1_w'].shape[0]
    CrP = ((Cr + 7) // 8) * 8                            # pad CA reduction dim

    # Free row-major reshapes only -- no NCHW<->NHWC HBM transposes.
    x1f = x1.reshape(B, C, HW)
    x2f = x2.reshape(B, C, HW)

    lane = jnp.arange(HW, dtype=jnp.int32)
    row_idx = (lane // W).reshape(1, HW)
    col_idx = (lane % W).reshape(1, HW)
    S, T = _reflect_select_mats(H, W, RPAD)

    cv1w = jnp.transpose(p['cv1_w'], (0, 2, 3, 1)).reshape(C, 9 * 2 * C)
    cv1b = p['cv1_b'].reshape(C, 1)
    dw1w = p['dw1_w'][:, 0].reshape(C, 25)
    dw1b = p['dw1_b'].reshape(C, 1)
    dw2w = p['dw2_w'][:, 0].reshape(C, 49)
    dw2b = p['dw2_b'].reshape(C, 1)
    caw1 = jnp.zeros((CrP, C), jnp.float32).at[:Cr].set(p['ca1_w'][:, :, 0, 0])
    cab1 = jnp.zeros((CrP, 1), jnp.float32).at[:Cr].set(p['ca1_b'].reshape(Cr, 1))
    caw2 = jnp.zeros((C, CrP), jnp.float32).at[:, :Cr].set(p['ca2_w'][:, :, 0, 0])
    cab2 = p['ca2_b'].reshape(C, 1)
    saw = p['sa_w'][0].reshape(2, 49)
    sab = p['sa_b'].reshape(1, 1)
    paw = jnp.concatenate([p['pa_w'][:, 0].reshape(C, 49),
                           p['pa_w'][:, 1].reshape(C, 49)], axis=0)   # (2C, 49)
    pab = p['pa_b'].reshape(C, 1)
    fcw = p['fc_w'][:, :, 0, 0]                                       # (C, C)
    fcb = p['fc_b'].reshape(C, 1)

    args = [x1f, x2f, row_idx, col_idx, S, T,
            cv1w, cv1b, dw1w, dw1b, dw2w, dw2b,
            caw1, cab1, caw2, cab2, saw, sab, paw, pab, fcw, fcb]

    in_specs = [
        pl.BlockSpec((None, C, HW), lambda b: (b, 0, 0)),
        pl.BlockSpec((None, C, HW), lambda b: (b, 0, 0)),
    ]
    # Constant-index blocks: weights / selection matrices are fetched once and
    # stay resident in VMEM across the batch-parallel grid.
    for a in args[2:]:
        in_specs.append(pl.BlockSpec(a.shape, functools.partial(_zero_idx, a.ndim)))

    kern = functools.partial(fusion_kernel, H=H, W=W, RPAD=RPAD)
    out = pl.pallas_call(
        kern,
        grid=(B,),
        in_specs=in_specs,
        out_specs=pl.BlockSpec((None, C, HW), lambda b: (b, 0, 0)),
        out_shape=jax.ShapeDtypeStruct((B, C, HW), jnp.float32),
        compiler_params=pltpu.CompilerParams(
            dimension_semantics=("parallel",),
            vmem_limit_bytes=64 * 1024 * 1024),
    )(*args)
    return out.reshape(B, C, H, W)


# ---------------------- deterministic parameter init -------------------------

def init_params(key, dim, reduction=8):
    ks = jax.random.split(key, 16)

    def w(k, shape, scale=0.1):
        return (scale * jax.random.normal(k, shape)).astype(jnp.float32)

    return {
        'cv1_w': w(ks[0], (dim, 2 * dim, 3, 3)),
        'cv1_b': w(ks[1], (dim,)),
        'dw1_w': w(ks[2], (dim, 1, 5, 5)),
        'dw1_b': w(ks[3], (dim,)),
        'dw2_w': w(ks[4], (dim, 1, 7, 7)),
        'dw2_b': w(ks[5], (dim,)),
        'ca1_w': w(ks[6], (dim // reduction, dim, 1, 1)),
        'ca1_b': w(ks[7], (dim // reduction,)),
        'ca2_w': w(ks[8], (dim, dim // reduction, 1, 1)),
        'ca2_b': w(ks[9], (dim,)),
        'sa_w': w(ks[10], (1, 2, 7, 7)),
        'sa_b': w(ks[11], (1,)),
        'pa_w': w(ks[12], (dim, 2, 7, 7)),
        'pa_b': w(ks[13], (dim,)),
        'fc_w': w(ks[14], (dim, dim, 1, 1)),
        'fc_b': w(ks[15], (dim,)),
    }
    # NOTE: self.spatial_se (Conv3d) in the PyTorch module is never used in
    # forward(), so it is intentionally not instantiated here.


# ------------------------- pure-JAX reference (NCHW) -------------------------

def _conv2d_ref(x, w, b, stride=1, padding=0, groups=1, dilation=1, reflect=False):
    if reflect and padding > 0:
        x = jnp.pad(x, ((0, 0), (0, 0), (padding, padding), (padding, padding)),
                    mode='reflect')
        pad = [(0, 0), (0, 0)]
    else:
        pad = [(padding, padding), (padding, padding)]
    out = jax.lax.conv_general_dilated(
        x, w, window_strides=(stride, stride), padding=pad,
        rhs_dilation=(dilation, dilation),
        dimension_numbers=('NCHW', 'OIHW', 'NCHW'),
        feature_group_count=groups)
    return out + b.reshape(1, -1, 1, 1)


def reference_forward(x1, x2, p):
    dim = p['cv1_b'].shape[0]
    x12 = jnp.concatenate([x1, x2], axis=1)
    x = _conv2d_ref(x12, p['cv1_w'], p['cv1_b'], padding=1)
    f1 = _conv2d_ref(x, p['dw1_w'], p['dw1_b'], padding=2, groups=dim)
    f2 = _conv2d_ref(f1, p['dw2_w'], p['dw2_b'], padding=9, groups=dim, dilation=3)
    initial = f1 + f2
    gap = jnp.mean(initial, axis=(2, 3), keepdims=True)
    h = jax.nn.relu(_conv2d_ref(gap, p['ca1_w'], p['ca1_b']))
    cattn = _conv2d_ref(h, p['ca2_w'], p['ca2_b'])
    x_avg = jnp.mean(initial, axis=1, keepdims=True)
    x_max = jnp.max(initial, axis=1, keepdims=True)
    sattn = _conv2d_ref(jnp.concatenate([x_avg, x_max], axis=1),
                        p['sa_w'], p['sa_b'], padding=3, reflect=True)
    pattn1 = sattn + cattn
    B, C, H, W = initial.shape
    x2i = jnp.stack([initial, pattn1], axis=2).reshape(B, 2 * C, H, W)
    pa = _conv2d_ref(x2i, p['pa_w'], p['pa_b'], padding=3, groups=dim, reflect=True)
    pattn2 = jax.nn.sigmoid(jax.nn.sigmoid(pa))
    res = initial + pattn2 * f1 + (1.0 - pattn2) * f2
    res = _conv2d_ref(res, p['fc_w'], p['fc_b'])
    return res + x


# ----------------------------------- main ------------------------------------

if __name__ == "__main__":
    B, dim, H, W = 2, 8, 16, 16
    key = jax.random.PRNGKey(0)
    k1, k2, kp = jax.random.split(key, 3)
    x1 = jax.random.normal(k1, (B, dim, H, W), jnp.float32)
    x2 = jax.random.normal(k2, (B, dim, H, W), jnp.float32)
    params = init_params(kp, dim)

    out = jax.block_until_ready(my_fusion_block(x1, x2, params))
    ref = jax.block_until_ready(reference_forward(x1, x2, params))

    assert out.shape == (B, dim, H, W)
    max_err = float(jnp.max(jnp.abs(out - ref)))
    if not bool(jnp.allclose(out, ref, atol=2e-4, rtol=2e-4)):
        raise AssertionError(f"Pallas kernel mismatch vs reference, max_err={max_err}")
    print("KERNEL_OK")
</pallas_src>

<mosaic_0001>
module attributes {stable_mosaic.version = 11 : i64} {
  func.func @fusion_kernel(%arg0: i32, %arg1: memref<1x8x256xf32, #tpu.memory_space<vmem>>, %arg2: memref<1x8x256xf32, #tpu.memory_space<vmem>>, %arg3: memref<1x256xi32, #tpu.memory_space<vmem>>, %arg4: memref<1x256xi32, #tpu.memory_space<vmem>>, %arg5: memref<256x512xf32, #tpu.memory_space<vmem>>, %arg6: memref<512x256xf32, #tpu.memory_space<vmem>>, %arg7: memref<8x144xf32, #tpu.memory_space<vmem>>, %arg8: memref<8x1xf32, #tpu.memory_space<vmem>>, %arg9: memref<8x25xf32, #tpu.memory_space<vmem>>, %arg10: memref<8x1xf32, #tpu.memory_space<vmem>>, %arg11: memref<8x49xf32, #tpu.memory_space<vmem>>, %arg12: memref<8x1xf32, #tpu.memory_space<vmem>>, %arg13: memref<8x8xf32, #tpu.memory_space<vmem>>, %arg14: memref<8x1xf32, #tpu.memory_space<vmem>>, %arg15: memref<8x8xf32, #tpu.memory_space<vmem>>, %arg16: memref<8x1xf32, #tpu.memory_space<vmem>>, %arg17: memref<2x49xf32, #tpu.memory_space<vmem>>, %arg18: memref<1x1xf32, #tpu.memory_space<vmem>>, %arg19: memref<16x49xf32, #tpu.memory_space<vmem>>, %arg20: memref<8x1xf32, #tpu.memory_space<vmem>>, %arg21: memref<8x8xf32, #tpu.memory_space<vmem>>, %arg22: memref<8x1xf32, #tpu.memory_space<vmem>>, %arg23: memref<1x8x256xf32, #tpu.memory_space<vmem>>) attributes {dimension_semantics = [#tpu.dimension_semantics<parallel>], iteration_bounds = array<i64: 2>, scalar_prefetch = 0 : i64, scratch_operands = 0 : i64, tpu.core_type = #tpu.core_type<tc>, window_params = [{transform_indices = @transform_0, window_bounds = array<i64: 1, 8, 256>}, {transform_indices = @transform_1, window_bounds = array<i64: 1, 8, 256>}, {pipeline_mode = #tpu.pipeline_mode<synchronous>, transform_indices = @transform_2, window_bounds = array<i64: 1, 256>}, {pipeline_mode = #tpu.pipeline_mode<synchronous>, transform_indices = @transform_3, window_bounds = array<i64: 1, 256>}, {pipeline_mode = #tpu.pipeline_mode<synchronous>, transform_indices = @transform_4, window_bounds = array<i64: 256, 512>}, {pipeline_mode = #tpu.pipeline_mode<synchronous>, transform_indices = @transform_5, window_bounds = array<i64: 512, 256>}, {pipeline_mode = #tpu.pipeline_mode<synchronous>, transform_indices = @transform_6, window_bounds = array<i64: 8, 144>}, {pipeline_mode = #tpu.pipeline_mode<synchronous>, transform_indices = @transform_7, window_bounds = array<i64: 8, 1>}, {pipeline_mode = #tpu.pipeline_mode<synchronous>, transform_indices = @transform_8, window_bounds = array<i64: 8, 25>}, {pipeline_mode = #tpu.pipeline_mode<synchronous>, transform_indices = @transform_9, window_bounds = array<i64: 8, 1>}, {pipeline_mode = #tpu.pipeline_mode<synchronous>, transform_indices = @transform_10, window_bounds = array<i64: 8, 49>}, {pipeline_mode = #tpu.pipeline_mode<synchronous>, transform_indices = @transform_11, window_bounds = array<i64: 8, 1>}, {pipeline_mode = #tpu.pipeline_mode<synchronous>, transform_indices = @transform_12, window_bounds = array<i64: 8, 8>}, {pipeline_mode = #tpu.pipeline_mode<synchronous>, transform_indices = @transform_13, window_bounds = array<i64: 8, 1>}, {pipeline_mode = #tpu.pipeline_mode<synchronous>, transform_indices = @transform_14, window_bounds = array<i64: 8, 8>}, {pipeline_mode = #tpu.pipeline_mode<synchronous>, transform_indices = @transform_15, window_bounds = array<i64: 8, 1>}, {pipeline_mode = #tpu.pipeline_mode<synchronous>, transform_indices = @transform_16, window_bounds = array<i64: 2, 49>}, {pipeline_mode = #tpu.pipeline_mode<synchronous>, transform_indices = @transform_17, window_bounds = array<i64: 1, 1>}, {pipeline_mode = #tpu.pipeline_mode<synchronous>, transform_indices = @transform_18, window_bounds = array<i64: 16, 49>}, {pipeline_mode = #tpu.pipeline_mode<synchronous>, transform_indices = @transform_19, window_bounds = array<i64: 8, 1>}, {pipeline_mode = #tpu.pipeline_mode<synchronous>, transform_indices = @transform_20, window_bounds = array<i64: 8, 8>}, {pipeline_mode = #tpu.pipeline_mode<synchronous>, transform_indices = @transform_21, window_bounds = array<i64: 8, 1>}, {transform_indices = @transform_22, window_bounds = array<i64: 1, 8, 256>}]} {
    %c0 = arith.constant 0 : index
    %c0_0 = arith.constant 0 : index
    %c0_1 = arith.constant 0 : index
    %0 = vector.load %arg1[%c0, %c0_0, %c0_1] : memref<1x8x256xf32, #tpu.memory_space<vmem>>, vector<1x8x256xf32>
    %1 = vector.shape_cast %0 : vector<1x8x256xf32> to vector<8x256xf32>
    %c0_2 = arith.constant 0 : index
    %c0_3 = arith.constant 0 : index
    %c0_4 = arith.constant 0 : index
    %2 = vector.load %arg2[%c0_2, %c0_3, %c0_4] : memref<1x8x256xf32, #tpu.memory_space<vmem>>, vector<1x8x256xf32>
    %3 = vector.shape_cast %2 : vector<1x8x256xf32> to vector<8x256xf32>
    %c0_5 = arith.constant 0 : index
    %c0_6 = arith.constant 0 : index
    %4 = vector.load %arg3[%c0_5, %c0_6] : memref<1x256xi32, #tpu.memory_space<vmem>>, vector<1x256xi32>
    %c0_7 = arith.constant 0 : index
    %c0_8 = arith.constant 0 : index
    %5 = vector.load %arg4[%c0_7, %c0_8] : memref<1x256xi32, #tpu.memory_space<vmem>>, vector<1x256xi32>
    %c0_9 = arith.constant 0 : index
    %c0_10 = arith.constant 0 : index
    %6 = vector.load %arg5[%c0_9, %c0_10] : memref<256x512xf32, #tpu.memory_space<vmem>>, vector<256x512xf32>
    %c0_11 = arith.constant 0 : index
    %c0_12 = arith.constant 0 : index
    %7 = vector.load %arg6[%c0_11, %c0_12] : memref<512x256xf32, #tpu.memory_space<vmem>>, vector<512x256xf32>
    %8 = tpu.concatenate %1, %3 in 0 : vector<8x256xf32>, vector<8x256xf32> -> vector<16x256xf32>
    %c17_i32 = arith.constant 17 : i32
    %9 = tpu.dynamic_rotate %8 by %c17_i32 dim 1 : vector<16x256xf32>, i32 -> vector<16x256xf32>
    %c-1_i32 = arith.constant -1 : i32
    %10 = vector.broadcast %c-1_i32 : i32 to vector<1x256xi32>
    %11 = arith.addi %4, %10 : vector<1x256xi32>
    %c0_i32 = arith.constant 0 : i32
    %12 = vector.broadcast %c0_i32 : i32 to vector<1x256xi32>
    %13 = arith.cmpi sge, %11, %12 : vector<1x256xi32>
    %c-1_i32_13 = arith.constant -1 : i32
    %14 = vector.broadcast %c-1_i32_13 : i32 to vector<1x256xi32>
    %15 = arith.addi %4, %14 : vector<1x256xi32>
    %c16_i32 = arith.constant 16 : i32
    %16 = vector.broadcast %c16_i32 : i32 to vector<1x256xi32>
    %17 = arith.cmpi slt, %15, %16 : vector<1x256xi32>
    %18 = arith.andi %13, %17 : vector<1x256xi1>
    %c-1_i32_14 = arith.constant -1 : i32
    %19 = vector.broadcast %c-1_i32_14 : i32 to vector<1x256xi32>
    %20 = arith.addi %5, %19 : vector<1x256xi32>
    %c0_i32_15 = arith.constant 0 : i32
    %21 = vector.broadcast %c0_i32_15 : i32 to vector<1x256xi32>
    %22 = arith.cmpi sge, %20, %21 : vector<1x256xi32>
    %c-1_i32_16 = arith.constant -1 : i32
    %23 = vector.broadcast %c-1_i32_16 : i32 to vector<1x256xi32>
    %24 = arith.addi %5, %23 : vector<1x256xi32>
    %c16_i32_17 = arith.constant 16 : i32
    %25 = vector.broadcast %c16_i32_17 : i32 to vector<1x256xi32>
    %26 = arith.cmpi slt, %24, %25 : vector<1x256xi32>
    %27 = arith.andi %22, %26 : vector<1x256xi1>
    %28 = arith.andi %18, %27 : vector<1x256xi1>
    %cst = arith.constant 0.000000e+00 : f32
    %29 = vector.shape_cast %28 : vector<1x256xi1> to vector<1x256xi1>
    %30 = vector.broadcast %29 : vector<1x256xi1> to vector<16x256xi1>
    %31 = vector.broadcast %cst : f32 to vector<16x256xf32>
    %32 = arith.select %30, %9, %31 : vector<16x256xi1>, vector<16x256xf32>
    %c16_i32_18 = arith.constant 16 : i32
    %33 = tpu.dynamic_rotate %8 by %c16_i32_18 dim 1 : vector<16x256xf32>, i32 -> vector<16x256xf32>
    %c0_i32_19 = arith.constant 0 : i32
    %34 = vector.broadcast %c0_i32_19 : i32 to vector<1x256xi32>
    %35 = arith.addi %5, %34 : vector<1x256xi32>
    %c0_i32_20 = arith.constant 0 : i32
    %36 = vector.broadcast %c0_i32_20 : i32 to vector<1x256xi32>
    %37 = arith.cmpi sge, %35, %36 : vector<1x256xi32>
    %c0_i32_21 = arith.constant 0 : i32
    %38 = vector.broadcast %c0_i32_21 : i32 to vector<1x256xi32>
    %39 = arith.addi %5, %38 : vector<1x256xi32>
    %c16_i32_22 = arith.constant 16 : i32
    %40 = vector.broadcast %c16_i32_22 : i32 to vector<1x256xi32>
    %41 = arith.cmpi slt, %39, %40 : vector<1x256xi32>
    %42 = arith.andi %37, %41 : vector<1x256xi1>
    %43 = arith.andi %18, %42 : vector<1x256xi1>
    %cst_23 = arith.constant 0.000000e+00 : f32
    %44 = vector.shape_cast %43 : vector<1x256xi1> to vector<1x256xi1>
    %45 = vector.broadcast %44 : vector<1x256xi1> to vector<16x256xi1>
    %46 = vector.broadcast %cst_23 : f32 to vector<16x256xf32>
    %47 = arith.select %45, %33, %46 : vector<16x256xi1>, vector<16x256xf32>
    %c15_i32 = arith.constant 15 : i32
    %48 = tpu.dynamic_rotate %8 by %c15_i32 dim 1 : vector<16x256xf32>, i32 -> vector<16x256xf32>
    %c1_i32 = arith.constant 1 : i32
    %49 = vector.broadcast %c1_i32 : i32 to vector<1x256xi32>
    %50 = arith.addi %5, %49 : vector<1x256xi32>
    %c0_i32_24 = arith.constant 0 : i32
    %51 = vector.broadcast %c0_i32_24 : i32 to vector<1x256xi32>
    %52 = arith.cmpi sge, %50, %51 : vector<1x256xi32>
    %c1_i32_25 = arith.constant 1 : i32
    %53 = vector.broadcast %c1_i32_25 : i32 to vector<1x256xi32>
    %54 = arith.addi %5, %53 : vector<1x256xi32>
    %c16_i32_26 = arith.constant 16 : i32
    %55 = vector.broadcast %c16_i32_26 : i32 to vector<1x256xi32>
    %56 = arith.cmpi slt, %54, %55 : vector<1x256xi32>
    %57 = arith.andi %52, %56 : vector<1x256xi1>
    %58 = arith.andi %18, %57 : vector<1x256xi1>
    %cst_27 = arith.constant 0.000000e+00 : f32
    %59 = vector.shape_cast %58 : vector<1x256xi1> to vector<1x256xi1>
    %60 = vector.broadcast %59 : vector<1x256xi1> to vector<16x256xi1>
    %61 = vector.broadcast %cst_27 : f32 to vector<16x256xf32>
    %62 = arith.select %60, %48, %61 : vector<16x256xi1>, vector<16x256xf32>
    %c1_i32_28 = arith.constant 1 : i32
    %63 = tpu.dynamic_rotate %8 by %c1_i32_28 dim 1 : vector<16x256xf32>, i32 -> vector<16x256xf32>
    %c0_i32_29 = arith.constant 0 : i32
    %64 = vector.broadcast %c0_i32_29 : i32 to vector<1x256xi32>
    %65 = arith.addi %4, %64 : vector<1x256xi32>
    %c0_i32_30 = arith.constant 0 : i32
    %66 = vector.broadcast %c0_i32_30 : i32 to vector<1x256xi32>
    %67 = arith.cmpi sge, %65, %66 : vector<1x256xi32>
    %c0_i32_31 = arith.constant 0 : i32
    %68 = vector.broadcast %c0_i32_31 : i32 to vector<1x256xi32>
    %69 = arith.addi %4, %68 : vector<1x256xi32>
    %c16_i32_32 = arith.constant 16 : i32
    %70 = vector.broadcast %c16_i32_32 : i32 to vector<1x256xi32>
    %71 = arith.cmpi slt, %69, %70 : vector<1x256xi32>
    %72 = arith.andi %67, %71 : vector<1x256xi1>
    %73 = arith.andi %72, %27 : vector<1x256xi1>
    %cst_33 = arith.constant 0.000000e+00 : f32
    %74 = vector.shape_cast %73 : vector<1x256xi1> to vector<1x256xi1>
    %75 = vector.broadcast %74 : vector<1x256xi1> to vector<16x256xi1>
    %76 = vector.broadcast %cst_33 : f32 to vector<16x256xf32>
    %77 = arith.select %75, %63, %76 : vector<16x256xi1>, vector<16x256xf32>
    %78 = arith.andi %72, %42 : vector<1x256xi1>
    %cst_34 = arith.constant 0.000000e+00 : f32
    %79 = vector.shape_cast %78 : vector<1x256xi1> to vector<1x256xi1>
    %80 = vector.broadcast %79 : vector<1x256xi1> to vector<16x256xi1>
    %81 = vector.broadcast %cst_34 : f32 to vector<16x256xf32>
    %82 = arith.select %80, %8, %81 : vector<16x256xi1>, vector<16x256xf32>
    %c255_i32 = arith.constant 255 : i32
    %83 = tpu.dynamic_rotate %8 by %c255_i32 dim 1 : vector<16x256xf32>, i32 -> vector<16x256xf32>
    %84 = arith.andi %72, %57 : vector<1x256xi1>
    %cst_35 = arith.constant 0.000000e+00 : f32
    %85 = vector.shape_cast %84 : vector<1x256xi1> to vector<1x256xi1>
    %86 = vector.broadcast %85 : vector<1x256xi1> to vector<16x256xi1>
    %87 = vector.broadcast %cst_35 : f32 to vector<16x256xf32>
    %88 = arith.select %86, %83, %87 : vector<16x256xi1>, vector<16x256xf32>
    %c241_i32 = arith.constant 241 : i32
    %89 = tpu.dynamic_rotate %8 by %c241_i32 dim 1 : vector<16x256xf32>, i32 -> vector<16x256xf32>
    %c1_i32_36 = arith.constant 1 : i32
    %90 = vector.broadcast %c1_i32_36 : i32 to vector<1x256xi32>
    %91 = arith.addi %4, %90 : vector<1x256xi32>
    %c0_i32_37 = arith.constant 0 : i32
    %92 = vector.broadcast %c0_i32_37 : i32 to vector<1x256xi32>
    %93 = arith.cmpi sge, %91, %92 : vector<1x256xi32>
    %c1_i32_38 = arith.constant 1 : i32
    %94 = vector.broadcast %c1_i32_38 : i32 to vector<1x256xi32>
    %95 = arith.addi %4, %94 : vector<1x256xi32>
    %c16_i32_39 = arith.constant 16 : i32
    %96 = vector.broadcast %c16_i32_39 : i32 to vector<1x256xi32>
    %97 = arith.cmpi slt, %95, %96 : vector<1x256xi32>
    %98 = arith.andi %93, %97 : vector<1x256xi1>
    %99 = arith.andi %98, %27 : vector<1x256xi1>
    %cst_40 = arith.constant 0.000000e+00 : f32
    %100 = vector.shape_cast %99 : vector<1x256xi1> to vector<1x256xi1>
    %101 = vector.broadcast %100 : vector<1x256xi1> to vector<16x256xi1>
    %102 = vector.broadcast %cst_40 : f32 to vector<16x256xf32>
    %103 = arith.select %101, %89, %102 : vector<16x256xi1>, vector<16x256xf32>
    %c240_i32 = arith.constant 240 : i32
    %104 = tpu.dynamic_rotate %8 by %c240_i32 dim 1 : vector<16x256xf32>, i32 -> vector<16x256xf32>
    %105 = arith.andi %98, %42 : vector<1x256xi1>
    %cst_41 = arith.constant 0.000000e+00 : f32
    %106 = vector.shape_cast %105 : vector<1x256xi1> to vector<1x256xi1>
    %107 = vector.broadcast %106 : vector<1x256xi1> to vector<16x256xi1>
    %108 = vector.broadcast %cst_41 : f32 to vector<16x256xf32>
    %109 = arith.select %107, %104, %108 : vector<16x256xi1>, vector<16x256xf32>
    %c239_i32 = arith.constant 239 : i32
    %110 = tpu.dynamic_rotate %8 by %c239_i32 dim 1 : vector<16x256xf32>, i32 -> vector<16x256xf32>
    %111 = arith.andi %98, %57 : vector<1x256xi1>
    %cst_42 = arith.constant 0.000000e+00 : f32
    %112 = vector.shape_cast %111 : vector<1x256xi1> to vector<1x256xi1>
    %113 = vector.broadcast %112 : vector<1x256xi1> to vector<16x256xi1>
    %114 = vector.broadcast %cst_42 : f32 to vector<16x256xf32>
    %115 = arith.select %113, %110, %114 : vector<16x256xi1>, vector<16x256xf32>
    %116 = tpu.concatenate %32, %47, %62, %77, %82, %88, %103, %109, %115 in 0 : vector<16x256xf32>, vector<16x256xf32>, vector<16x256xf32>, vector<16x256xf32>, vector<16x256xf32>, vector<16x256xf32>, vector<16x256xf32>, vector<16x256xf32>, vector<16x256xf32> -> vector<144x256xf32>
    %c0_43 = arith.constant 0 : index
    %c0_44 = arith.constant 0 : index
    %117 = vector.load %arg7[%c0_43, %c0_44] : memref<8x144xf32, #tpu.memory_space<vmem>>, vector<8x144xf32>
    %cst_45 = arith.constant dense<0.000000e+00> : vector<8x256xf32>
    %118 = tpu.matmul %117, %116, %cst_45 {dimension_numbers = #tpu.dot_dimension_numbers<[1], [0], [0], [1], [0, 0, 1, 1], [], []>} : vector<8x144xf32>, vector<144x256xf32>, vector<8x256xf32> -> vector<8x256xf32>
    %c0_46 = arith.constant 0 : index
    %c0_47 = arith.constant 0 : index
    %119 = vector.load %arg8[%c0_46, %c0_47] : memref<8x1xf32, #tpu.memory_space<vmem>>, vector<8x1xf32>
    %120 = vector.broadcast %119 : vector<8x1xf32> to vector<8x256xf32>
    %121 = arith.addf %118, %120 : vector<8x256xf32>
    %c0_48 = arith.constant 0 : index
    %c0_49 = arith.constant 0 : index
    %122 = vector.load %arg9[%c0_48, %c0_49] : memref<8x25xf32, #tpu.memory_space<vmem>>, vector<8x25xf32>
    %cst_50 = arith.constant 0.000000e+00 : f32
    %123 = vector.broadcast %cst_50 : f32 to vector<8x256xf32>
    %c34_i32 = arith.constant 34 : i32
    %124 = tpu.dynamic_rotate %121 by %c34_i32 dim 1 : vector<8x256xf32>, i32 -> vector<8x256xf32>
    %c-2_i32 = arith.constant -2 : i32
    %125 = vector.broadcast %c-2_i32 : i32 to vector<1x256xi32>
    %126 = arith.addi %4, %125 : vector<1x256xi32>
    %c0_i32_51 = arith.constant 0 : i32
    %127 = vector.broadcast %c0_i32_51 : i32 to vector<1x256xi32>
    %128 = arith.cmpi sge, %126, %127 : vector<1x256xi32>
    %c-2_i32_52 = arith.constant -2 : i32
    %129 = vector.broadcast %c-2_i32_52 : i32 to vector<1x256xi32>
    %130 = arith.addi %4, %129 : vector<1x256xi32>
    %c16_i32_53 = arith.constant 16 : i32
    %131 = vector.broadcast %c16_i32_53 : i32 to vector<1x256xi32>
    %132 = arith.cmpi slt, %130, %131 : vector<1x256xi32>
    %133 = arith.andi %128, %132 : vector<1x256xi1>
    %c-2_i32_54 = arith.constant -2 : i32
    %134 = vector.broadcast %c-2_i32_54 : i32 to vector<1x256xi32>
    %135 = arith.addi %5, %134 : vector<1x256xi32>
    %c0_i32_55 = arith.constant 0 : i32
    %136 = vector.broadcast %c0_i32_55 : i32 to vector<1x256xi32>
    %137 = arith.cmpi sge, %135, %136 : vector<1x256xi32>
    %c-2_i32_56 = arith.constant -2 : i32
    %138 = vector.broadcast %c-2_i32_56 : i32 to vector<1x256xi32>
    %139 = arith.addi %5, %138 : vector<1x256xi32>
    %c16_i32_57 = arith.constant 16 : i32
    %140 = vector.broadcast %c16_i32_57 : i32 to vector<1x256xi32>
    %141 = arith.cmpi slt, %139, %140 : vector<1x256xi32>
    %142 = arith.andi %137, %141 : vector<1x256xi1>
    %143 = arith.andi %133, %142 : vector<1x256xi1>
    %cst_58 = arith.constant 0.000000e+00 : f32
    %144 = vector.shape_cast %143 : vector<1x256xi1> to vector<1x256xi1>
    %145 = vector.broadcast %144 : vector<1x256xi1> to vector<8x256xi1>
    %146 = vector.broadcast %cst_58 : f32 to vector<8x256xf32>
    %147 = arith.select %145, %124, %146 : vector<8x256xi1>, vector<8x256xf32>
    %148 = vector.extract_strided_slice %122 {offsets = [0, 0], sizes = [8, 1], strides = [1, 1]} : vector<8x25xf32> to vector<8x1xf32>
    %149 = vector.broadcast %148 : vector<8x1xf32> to vector<8x256xf32>
    %150 = arith.mulf %147, %149 : vector<8x256xf32>
    %151 = arith.addf %123, %150 : vector<8x256xf32>
    %c33_i32 = arith.constant 33 : i32
    %152 = tpu.dynamic_rotate %121 by %c33_i32 dim 1 : vector<8x256xf32>, i32 -> vector<8x256xf32>
    %153 = arith.andi %133, %27 : vector<1x256xi1>
    %cst_59 = arith.constant 0.000000e+00 : f32
    %154 = vector.shape_cast %153 : vector<1x256xi1> to vector<1x256xi1>
    %155 = vector.broadcast %154 : vector<1x256xi1> to vector<8x256xi1>
    %156 = vector.broadcast %cst_59 : f32 to vector<8x256xf32>
    %157 = arith.select %155, %152, %156 : vector<8x256xi1>, vector<8x256xf32>
    %158 = vector.extract_strided_slice %122 {offsets = [0, 1], sizes = [8, 1], strides = [1, 1]} : vector<8x25xf32> to vector<8x1xf32>
    %159 = vector.broadcast %158 : vector<8x1xf32> to vector<8x256xf32>
    %160 = arith.mulf %157, %159 : vector<8x256xf32>
    %161 = arith.addf %151, %160 : vector<8x256xf32>
    %c32_i32 = arith.constant 32 : i32
    %162 = tpu.dynamic_rotate %121 by %c32_i32 dim 1 : vector<8x256xf32>, i32 -> vector<8x256xf32>
    %163 = arith.andi %133, %42 : vector<1x256xi1>
    %cst_60 = arith.constant 0.000000e+00 : f32
    %164 = vector.shape_cast %163 : vector<1x256xi1> to vector<1x256xi1>
    %165 = vector.broadcast %164 : vector<1x256xi1> to vector<8x256xi1>
    %166 = vector.broadcast %cst_60 : f32 to vector<8x256xf32>
    %167 = arith.select %165, %162, %166 : vector<8x256xi1>, vector<8x256xf32>
    %168 = vector.extract_strided_slice %122 {offsets = [0, 2], sizes = [8, 1], strides = [1, 1]} : vector<8x25xf32> to vector<8x1xf32>
    %169 = vector.broadcast %168 : vector<8x1xf32> to vector<8x256xf32>
    %170 = arith.mulf %167, %169 : vector<8x256xf32>
    %171 = arith.addf %161, %170 : vector<8x256xf32>
    %c31_i32 = arith.constant 31 : i32
    %172 = tpu.dynamic_rotate %121 by %c31_i32 dim 1 : vector<8x256xf32>, i32 -> vector<8x256xf32>
    %173 = arith.andi %133, %57 : vector<1x256xi1>
    %cst_61 = arith.constant 0.000000e+00 : f32
    %174 = vector.shape_cast %173 : vector<1x256xi1> to vector<1x256xi1>
    %175 = vector.broadcast %174 : vector<1x256xi1> to vector<8x256xi1>
    %176 = vector.broadcast %cst_61 : f32 to vector<8x256xf32>
    %177 = arith.select %175, %172, %176 : vector<8x256xi1>, vector<8x256xf32>
    %178 = vector.extract_strided_slice %122 {offsets = [0, 3], sizes = [8, 1], strides = [1, 1]} : vector<8x25xf32> to vector<8x1xf32>
    %179 = vector.broadcast %178 : vector<8x1xf32> to vector<8x256xf32>
    %180 = arith.mulf %177, %179 : vector<8x256xf32>
    %181 = arith.addf %171, %180 : vector<8x256xf32>
    %c30_i32 = arith.constant 30 : i32
    %182 = tpu.dynamic_rotate %121 by %c30_i32 dim 1 : vector<8x256xf32>, i32 -> vector<8x256xf32>
    %c2_i32 = arith.constant 2 : i32
    %183 = vector.broadcast %c2_i32 : i32 to vector<1x256xi32>
    %184 = arith.addi %5, %183 : vector<1x256xi32>
    %c0_i32_62 = arith.constant 0 : i32
    %185 = vector.broadcast %c0_i32_62 : i32 to vector<1x256xi32>
    %186 = arith.cmpi sge, %184, %185 : vector<1x256xi32>
    %c2_i32_63 = arith.constant 2 : i32
    %187 = vector.broadcast %c2_i32_63 : i32 to vector<1x256xi32>
    %188 = arith.addi %5, %187 : vector<1x256xi32>
    %c16_i32_64 = arith.constant 16 : i32
    %189 = vector.broadcast %c16_i32_64 : i32 to vector<1x256xi32>
    %190 = arith.cmpi slt, %188, %189 : vector<1x256xi32>
    %191 = arith.andi %186, %190 : vector<1x256xi1>
    %192 = arith.andi %133, %191 : vector<1x256xi1>
    %cst_65 = arith.constant 0.000000e+00 : f32
    %193 = vector.shape_cast %192 : vector<1x256xi1> to vector<1x256xi1>
    %194 = vector.broadcast %193 : vector<1x256xi1> to vector<8x256xi1>
    %195 = vector.broadcast %cst_65 : f32 to vector<8x256xf32>
    %196 = arith.select %194, %182, %195 : vector<8x256xi1>, vector<8x256xf32>
    %197 = vector.extract_strided_slice %122 {offsets = [0, 4], sizes = [8, 1], strides = [1, 1]} : vector<8x25xf32> to vector<8x1xf32>
    %198 = vector.broadcast %197 : vector<8x1xf32> to vector<8x256xf32>
    %199 = arith.mulf %196, %198 : vector<8x256xf32>
    %200 = arith.addf %181, %199 : vector<8x256xf32>
    %c18_i32 = arith.constant 18 : i32
    %201 = tpu.dynamic_rotate %121 by %c18_i32 dim 1 : vector<8x256xf32>, i32 -> vector<8x256xf32>
    %202 = arith.andi %18, %142 : vector<1x256xi1>
    %cst_66 = arith.constant 0.000000e+00 : f32
    %203 = vector.shape_cast %202 : vector<1x256xi1> to vector<1x256xi1>
    %204 = vector.broadcast %203 : vector<1x256xi1> to vector<8x256xi1>
    %205 = vector.broadcast %cst_66 : f32 to vector<8x256xf32>
    %206 = arith.select %204, %201, %205 : vector<8x256xi1>, vector<8x256xf32>
    %207 = vector.extract_strided_slice %122 {offsets = [0, 5], sizes = [8, 1], strides = [1, 1]} : vector<8x25xf32> to vector<8x1xf32>
    %208 = vector.broadcast %207 : vector<8x1xf32> to vector<8x256xf32>
    %209 = arith.mulf %206, %208 : vector<8x256xf32>
    %210 = arith.addf %200, %209 : vector<8x256xf32>
    %c17_i32_67 = arith.constant 17 : i32
    %211 = tpu.dynamic_rotate %121 by %c17_i32_67 dim 1 : vector<8x256xf32>, i32 -> vector<8x256xf32>
    %212 = arith.andi %18, %27 : vector<1x256xi1>
    %cst_68 = arith.constant 0.000000e+00 : f32
    %213 = vector.shape_cast %212 : vector<1x256xi1> to vector<1x256xi1>
    %214 = vector.broadcast %213 : vector<1x256xi1> to vector<8x256xi1>
    %215 = vector.broadcast %cst_68 : f32 to vector<8x256xf32>
    %216 = arith.select %214, %211, %215 : vector<8x256xi1>, vector<8x256xf32>
    %217 = vector.extract_strided_slice %122 {offsets = [0, 6], sizes = [8, 1], strides = [1, 1]} : vector<8x25xf32> to vector<8x1xf32>
    %218 = vector.broadcast %217 : vector<8x1xf32> to vector<8x256xf32>
    %219 = arith.mulf %216, %218 : vector<8x256xf32>
    %220 = arith.addf %210, %219 : vector<8x256xf32>
    %c16_i32_69 = arith.constant 16 : i32
    %221 = tpu.dynamic_rotate %121 by %c16_i32_69 dim 1 : vector<8x256xf32>, i32 -> vector<8x256xf32>
    %222 = arith.andi %18, %42 : vector<1x256xi1>
    %cst_70 = arith.constant 0.000000e+00 : f32
    %223 = vector.shape_cast %222 : vector<1x256xi1> to vector<1x256xi1>
    %224 = vector.broadcast %223 : vector<1x256xi1> to vector<8x256xi1>
    %225 = vector.broadcast %cst_70 : f32 to vector<8x256xf32>
    %226 = arith.select %224, %221, %225 : vector<8x256xi1>, vector<8x256xf32>
    %227 = vector.extract_strided_slice %122 {offsets = [0, 7], sizes = [8, 1], strides = [1, 1]} : vector<8x25xf32> to vector<8x1xf32>
    %228 = vector.broadcast %227 : vector<8x1xf32> to vector<8x256xf32>
    %229 = arith.mulf %226, %228 : vector<8x256xf32>
    %230 = arith.addf %220, %229 : vector<8x256xf32>
    %c15_i32_71 = arith.constant 15 : i32
    %231 = tpu.dynamic_rotate %121 by %c15_i32_71 dim 1 : vector<8x256xf32>, i32 -> vector<8x256xf32>
    %232 = arith.andi %18, %57 : vector<1x256xi1>
    %cst_72 = arith.constant 0.000000e+00 : f32
    %233 = vector.shape_cast %232 : vector<1x256xi1> to vector<1x256xi1>
    %234 = vector.broadcast %233 : vector<1x256xi1> to vector<8x256xi1>
    %235 = vector.broadcast %cst_72 : f32 to vector<8x256xf32>
    %236 = arith.select %234, %231, %235 : vector<8x256xi1>, vector<8x256xf32>
    %237 = vector.extract_strided_slice %122 {offsets = [0, 8], sizes = [8, 1], strides = [1, 1]} : vector<8x25xf32> to vector<8x1xf32>
    %238 = vector.broadcast %237 : vector<8x1xf32> to vector<8x256xf32>
    %239 = arith.mulf %236, %238 : vector<8x256xf32>
    %240 = arith.addf %230, %239 : vector<8x256xf32>
    %c14_i32 = arith.constant 14 : i32
    %241 = tpu.dynamic_rotate %121 by %c14_i32 dim 1 : vector<8x256xf32>, i32 -> vector<8x256xf32>
    %242 = arith.andi %18, %191 : vector<1x256xi1>
    %cst_73 = arith.constant 0.000000e+00 : f32
    %243 = vector.shape_cast %242 : vector<1x256xi1> to vector<1x256xi1>
    %244 = vector.broadcast %243 : vector<1x256xi1> to vector<8x256xi1>
    %245 = vector.broadcast %cst_73 : f32 to vector<8x256xf32>
    %246 = arith.select %244, %241, %245 : vector<8x256xi1>, vector<8x256xf32>
    %247 = vector.extract_strided_slice %122 {offsets = [0, 9], sizes = [8, 1], strides = [1, 1]} : vector<8x25xf32> to vector<8x1xf32>
    %248 = vector.broadcast %247 : vector<8x1xf32> to vector<8x256xf32>
    %249 = arith.mulf %246, %248 : vector<8x256xf32>
    %250 = arith.addf %240, %249 : vector<8x256xf32>
    %c2_i32_74 = arith.constant 2 : i32
    %251 = tpu.dynamic_rotate %121 by %c2_i32_74 dim 1 : vector<8x256xf32>, i32 -> vector<8x256xf32>
    %252 = arith.andi %72, %142 : vector<1x256xi1>
    %cst_75 = arith.constant 0.000000e+00 : f32
    %253 = vector.shape_cast %252 : vector<1x256xi1> to vector<1x256xi1>
    %254 = vector.broadcast %253 : vector<1x256xi1> to vector<8x256xi1>
    %255 = vector.broadcast %cst_75 : f32 to vector<8x256xf32>
    %256 = arith.select %254, %251, %255 : vector<8x256xi1>, vector<8x256xf32>
    %257 = vector.extract_strided_slice %122 {offsets = [0, 10], sizes = [8, 1], strides = [1, 1]} : vector<8x25xf32> to vector<8x1xf32>
    %258 = vector.broadcast %257 : vector<8x1xf32> to vector<8x256xf32>
    %259 = arith.mulf %256, %258 : vector<8x256xf32>
    %260 = arith.addf %250, %259 : vector<8x256xf32>
    %c1_i32_76 = arith.constant 1 : i32
    %261 = tpu.dynamic_rotate %121 by %c1_i32_76 dim 1 : vector<8x256xf32>, i32 -> vector<8x256xf32>
    %262 = arith.andi %72, %27 : vector<1x256xi1>
    %cst_77 = arith.constant 0.000000e+00 : f32
    %263 = vector.shape_cast %262 : vector<1x256xi1> to vector<1x256xi1>
    %264 = vector.broadcast %263 : vector<1x256xi1> to vector<8x256xi1>
    %265 = vector.broadcast %cst_77 : f32 to vector<8x256xf32>
    %266 = arith.select %264, %261, %265 : vector<8x256xi1>, vector<8x256xf32>
    %267 = vector.extract_strided_slice %122 {offsets = [0, 11], sizes = [8, 1], strides = [1, 1]} : vector<8x25xf32> to vector<8x1xf32>
    %268 = vector.broadcast %267 : vector<8x1xf32> to vector<8x256xf32>
    %269 = arith.mulf %266, %268 : vector<8x256xf32>
    %270 = arith.addf %260, %269 : vector<8x256xf32>
    %271 = arith.andi %72, %42 : vector<1x256xi1>
    %cst_78 = arith.constant 0.000000e+00 : f32
    %272 = vector.shape_cast %271 : vector<1x256xi1> to vector<1x256xi1>
    %273 = vector.broadcast %272 : vector<1x256xi1> to vector<8x256xi1>
    %274 = vector.broadcast %cst_78 : f32 to vector<8x256xf32>
    %275 = arith.select %273, %121, %274 : vector<8x256xi1>, vector<8x256xf32>
    %276 = vector.extract_strided_slice %122 {offsets = [0, 12], sizes = [8, 1], strides = [1, 1]} : vector<8x25xf32> to vector<8x1xf32>
    %277 = vector.broadcast %276 : vector<8x1xf32> to vector<8x256xf32>
    %278 = arith.mulf %275, %277 : vector<8x256xf32>
    %279 = arith.addf %270, %278 : vector<8x256xf32>
    %c255_i32_79 = arith.constant 255 : i32
    %280 = tpu.dynamic_rotate %121 by %c255_i32_79 dim 1 : vector<8x256xf32>, i32 -> vector<8x256xf32>
    %281 = arith.andi %72, %57 : vector<1x256xi1>
    %cst_80 = arith.constant 0.000000e+00 : f32
    %282 = vector.shape_cast %281 : vector<1x256xi1> to vector<1x256xi1>
    %283 = vector.broadcast %282 : vector<1x256xi1> to vector<8x256xi1>
    %284 = vector.broadcast %cst_80 : f32 to vector<8x256xf32>
    %285 = arith.select %283, %280, %284 : vector<8x256xi1>, vector<8x256xf32>
    %286 = vector.extract_strided_slice %122 {offsets = [0, 13], sizes = [8, 1], strides = [1, 1]} : vector<8x25xf32> to vector<8x1xf32>
    %287 = vector.broadcast %286 : vector<8x1xf32> to vector<8x256xf32>
    %288 = arith.mulf %285, %287 : vector<8x256xf32>
    %289 = arith.addf %279, %288 : vector<8x256xf32>
    %c254_i32 = arith.constant 254 : i32
    %290 = tpu.dynamic_rotate %121 by %c254_i32 dim 1 : vector<8x256xf32>, i32 -> vector<8x256xf32>
    %291 = arith.andi %72, %191 : vector<1x256xi1>
    %cst_81 = arith.constant 0.000000e+00 : f32
    %292 = vector.shape_cast %291 : vector<1x256xi1> to vector<1x256xi1>
    %293 = vector.broadcast %292 : vector<1x256xi1> to vector<8x256xi1>
    %294 = vector.broadcast %cst_81 : f32 to vector<8x256xf32>
    %295 = arith.select %293, %290, %294 : vector<8x256xi1>, vector<8x256xf32>
    %296 = vector.extract_strided_slice %122 {offsets = [0, 14], sizes = [8, 1], strides = [1, 1]} : vector<8x25xf32> to vector<8x1xf32>
    %297 = vector.broadcast %296 : vector<8x1xf32> to vector<8x256xf32>
    %298 = arith.mulf %295, %297 : vector<8x256xf32>
    %299 = arith.addf %289, %298 : vector<8x256xf32>
    %c242_i32 = arith.constant 242 : i32
    %300 = tpu.dynamic_rotate %121 by %c242_i32 dim 1 : vector<8x256xf32>, i32 -> vector<8x256xf32>
    %301 = arith.andi %98, %142 : vector<1x256xi1>
    %cst_82 = arith.constant 0.000000e+00 : f32
    %302 = vector.shape_cast %301 : vector<1x256xi1> to vector<1x256xi1>
    %303 = vector.broadcast %302 : vector<1x256xi1> to vector<8x256xi1>
    %304 = vector.broadcast %cst_82 : f32 to vector<8x256xf32>
    %305 = arith.select %303, %300, %304 : vector<8x256xi1>, vector<8x256xf32>
    %306 = vector.extract_strided_slice %122 {offsets = [0, 15], sizes = [8, 1], strides = [1, 1]} : vector<8x25xf32> to vector<8x1xf32>
    %307 = vector.broadcast %306 : vector<8x1xf32> to vector<8x256xf32>
    %308 = arith.mulf %305, %307 : vector<8x256xf32>
    %309 = arith.addf %299, %308 : vector<8x256xf32>
    %c241_i32_83 = arith.constant 241 : i32
    %310 = tpu.dynamic_rotate %121 by %c241_i32_83 dim 1 : vector<8x256xf32>, i32 -> vector<8x256xf32>
    %311 = arith.andi %98, %27 : vector<1x256xi1>
    %cst_84 = arith.constant 0.000000e+00 : f32
    %312 = vector.shape_cast %311 : vector<1x256xi1> to vector<1x256xi1>
    %313 = vector.broadcast %312 : vector<1x256xi1> to vector<8x256xi1>
    %314 = vector.broadcast %cst_84 : f32 to vector<8x256xf32>
    %315 = arith.select %313, %310, %314 : vector<8x256xi1>, vector<8x256xf32>
    %316 = vector.extract_strided_slice %122 {offsets = [0, 16], sizes = [8, 1], strides = [1, 1]} : vector<8x25xf32> to vector<8x1xf32>
    %317 = vector.broadcast %316 : vector<8x1xf32> to vector<8x256xf32>
    %318 = arith.mulf %315, %317 : vector<8x256xf32>
    %319 = arith.addf %309, %318 : vector<8x256xf32>
    %c240_i32_85 = arith.constant 240 : i32
    %320 = tpu.dynamic_rotate %121 by %c240_i32_85 dim 1 : vector<8x256xf32>, i32 -> vector<8x256xf32>
    %321 = arith.andi %98, %42 : vector<1x256xi1>
    %cst_86 = arith.constant 0.000000e+00 : f32
    %322 = vector.shape_cast %321 : vector<1x256xi1> to vector<1x256xi1>
    %323 = vector.broadcast %322 : vector<1x256xi1> to vector<8x256xi1>
    %324 = vector.broadcast %cst_86 : f32 to vector<8x256xf32>
    %325 = arith.select %323, %320, %324 : vector<8x256xi1>, vector<8x256xf32>
    %326 = vector.extract_strided_slice %122 {offsets = [0, 17], sizes = [8, 1], strides = [1, 1]} : vector<8x25xf32> to vector<8x1xf32>
    %327 = vector.broadcast %326 : vector<8x1xf32> to vector<8x256xf32>
    %328 = arith.mulf %325, %327 : vector<8x256xf32>
    %329 = arith.addf %319, %328 : vector<8x256xf32>
    %c239_i32_87 = arith.constant 239 : i32
    %330 = tpu.dynamic_rotate %121 by %c239_i32_87 dim 1 : vector<8x256xf32>, i32 -> vector<8x256xf32>
    %331 = arith.andi %98, %57 : vector<1x256xi1>
    %cst_88 = arith.constant 0.000000e+00 : f32
    %332 = vector.shape_cast %331 : vector<1x256xi1> to vector<1x256xi1>
    %333 = vector.broadcast %332 : vector<1x256xi1> to vector<8x256xi1>
    %334 = vector.broadcast %cst_88 : f32 to vector<8x256xf32>
    %335 = arith.select %333, %330, %334 : vector<8x256xi1>, vector<8x256xf32>
    %336 = vector.extract_strided_slice %122 {offsets = [0, 18], sizes = [8, 1], strides = [1, 1]} : vector<8x25xf32> to vector<8x1xf32>
    %337 = vector.broadcast %336 : vector<8x1xf32> to vector<8x256xf32>
    %338 = arith.mulf %335, %337 : vector<8x256xf32>
    %339 = arith.addf %329, %338 : vector<8x256xf32>
    %c238_i32 = arith.constant 238 : i32
    %340 = tpu.dynamic_rotate %121 by %c238_i32 dim 1 : vector<8x256xf32>, i32 -> vector<8x256xf32>
    %341 = arith.andi %98, %191 : vector<1x256xi1>
    %cst_89 = arith.constant 0.000000e+00 : f32
    %342 = vector.shape_cast %341 : vector<1x256xi1> to vector<1x256xi1>
    %343 = vector.broadcast %342 : vector<1x256xi1> to vector<8x256xi1>
    %344 = vector.broadcast %cst_89 : f32 to vector<8x256xf32>
    %345 = arith.select %343, %340, %344 : vector<8x256xi1>, vector<8x256xf32>
    %346 = vector.extract_strided_slice %122 {offsets = [0, 19], sizes = [8, 1], strides = [1, 1]} : vector<8x25xf32> to vector<8x1xf32>
    %347 = vector.broadcast %346 : vector<8x1xf32> to vector<8x256xf32>
    %348 = arith.mulf %345, %347 : vector<8x256xf32>
    %349 = arith.addf %339, %348 : vector<8x256xf32>
    %c226_i32 = arith.constant 226 : i32
    %350 = tpu.dynamic_rotate %121 by %c226_i32 dim 1 : vector<8x256xf32>, i32 -> vector<8x256xf32>
    %c2_i32_90 = arith.constant 2 : i32
    %351 = vector.broadcast %c2_i32_90 : i32 to vector<1x256xi32>
    %352 = arith.addi %4, %351 : vector<1x256xi32>
    %c0_i32_91 = arith.constant 0 : i32
    %353 = vector.broadcast %c0_i32_91 : i32 to vector<1x256xi32>
    %354 = arith.cmpi sge, %352, %353 : vector<1x256xi32>
    %c2_i32_92 = arith.constant 2 : i32
    %355 = vector.broadcast %c2_i32_92 : i32 to vector<1x256xi32>
    %356 = arith.addi %4, %355 : vector<1x256xi32>
    %c16_i32_93 = arith.constant 16 : i32
    %357 = vector.broadcast %c16_i32_93 : i32 to vector<1x256xi32>
    %358 = arith.cmpi slt, %356, %357 : vector<1x256xi32>
    %359 = arith.andi %354, %358 : vector<1x256xi1>
    %360 = arith.andi %359, %142 : vector<1x256xi1>
    %cst_94 = arith.constant 0.000000e+00 : f32
    %361 = vector.shape_cast %360 : vector<1x256xi1> to vector<1x256xi1>
    %362 = vector.broadcast %361 : vector<1x256xi1> to vector<8x256xi1>
    %363 = vector.broadcast %cst_94 : f32 to vector<8x256xf32>
    %364 = arith.select %362, %350, %363 : vector<8x256xi1>, vector<8x256xf32>
    %365 = vector.extract_strided_slice %122 {offsets = [0, 20], sizes = [8, 1], strides = [1, 1]} : vector<8x25xf32> to vector<8x1xf32>
    %366 = vector.broadcast %365 : vector<8x1xf32> to vector<8x256xf32>
    %367 = arith.mulf %364, %366 : vector<8x256xf32>
    %368 = arith.addf %349, %367 : vector<8x256xf32>
    %c225_i32 = arith.constant 225 : i32
    %369 = tpu.dynamic_rotate %121 by %c225_i32 dim 1 : vector<8x256xf32>, i32 -> vector<8x256xf32>
    %370 = arith.andi %359, %27 : vector<1x256xi1>
    %cst_95 = arith.constant 0.000000e+00 : f32
    %371 = vector.shape_cast %370 : vector<1x256xi1> to vector<1x256xi1>
    %372 = vector.broadcast %371 : vector<1x256xi1> to vector<8x256xi1>
    %373 = vector.broadcast %cst_95 : f32 to vector<8x256xf32>
    %374 = arith.select %372, %369, %373 : vector<8x256xi1>, vector<8x256xf32>
    %375 = vector.extract_strided_slice %122 {offsets = [0, 21], sizes = [8, 1], strides = [1, 1]} : vector<8x25xf32> to vector<8x1xf32>
    %376 = vector.broadcast %375 : vector<8x1xf32> to vector<8x256xf32>
    %377 = arith.mulf %374, %376 : vector<8x256xf32>
    %378 = arith.addf %368, %377 : vector<8x256xf32>
    %c224_i32 = arith.constant 224 : i32
    %379 = tpu.dynamic_rotate %121 by %c224_i32 dim 1 : vector<8x256xf32>, i32 -> vector<8x256xf32>
    %380 = arith.andi %359, %42 : vector<1x256xi1>
    %cst_96 = arith.constant 0.000000e+00 : f32
    %381 = vector.shape_cast %380 : vector<1x256xi1> to vector<1x256xi1>
    %382 = vector.broadcast %381 : vector<1x256xi1> to vector<8x256xi1>
    %383 = vector.broadcast %cst_96 : f32 to vector<8x256xf32>
    %384 = arith.select %382, %379, %383 : vector<8x256xi1>, vector<8x256xf32>
    %385 = vector.extract_strided_slice %122 {offsets = [0, 22], sizes = [8, 1], strides = [1, 1]} : vector<8x25xf32> to vector<8x1xf32>
    %386 = vector.broadcast %385 : vector<8x1xf32> to vector<8x256xf32>
    %387 = arith.mulf %384, %386 : vector<8x256xf32>
    %388 = arith.addf %378, %387 : vector<8x256xf32>
    %c223_i32 = arith.constant 223 : i32
    %389 = tpu.dynamic_rotate %121 by %c223_i32 dim 1 : vector<8x256xf32>, i32 -> vector<8x256xf32>
    %390 = arith.andi %359, %57 : vector<1x256xi1>
    %cst_97 = arith.constant 0.000000e+00 : f32
    %391 = vector.shape_cast %390 : vector<1x256xi1> to vector<1x256xi1>
    %392 = vector.broadcast %391 : vector<1x256xi1> to vector<8x256xi1>
    %393 = vector.broadcast %cst_97 : f32 to vector<8x256xf32>
    %394 = arith.select %392, %389, %393 : vector<8x256xi1>, vector<8x256xf32>
    %395 = vector.extract_strided_slice %122 {offsets = [0, 23], sizes = [8, 1], strides = [1, 1]} : vector<8x25xf32> to vector<8x1xf32>
    %396 = vector.broadcast %395 : vector<8x1xf32> to vector<8x256xf32>
    %397 = arith.mulf %394, %396 : vector<8x256xf32>
    %398 = arith.addf %388, %397 : vector<8x256xf32>
    %c222_i32 = arith.constant 222 : i32
    %399 = tpu.dynamic_rotate %121 by %c222_i32 dim 1 : vector<8x256xf32>, i32 -> vector<8x256xf32>
    %400 = arith.andi %359, %191 : vector<1x256xi1>
    %cst_98 = arith.constant 0.000000e+00 : f32
    %401 = vector.shape_cast %400 : vector<1x256xi1> to vector<1x256xi1>
    %402 = vector.broadcast %401 : vector<1x256xi1> to vector<8x256xi1>
    %403 = vector.broadcast %cst_98 : f32 to vector<8x256xf32>
    %404 = arith.select %402, %399, %403 : vector<8x256xi1>, vector<8x256xf32>
    %405 = vector.extract_strided_slice %122 {offsets = [0, 24], sizes = [8, 1], strides = [1, 1]} : vector<8x25xf32> to vector<8x1xf32>
    %406 = vector.broadcast %405 : vector<8x1xf32> to vector<8x256xf32>
    %407 = arith.mulf %404, %406 : vector<8x256xf32>
    %408 = arith.addf %398, %407 : vector<8x256xf32>
    %c0_99 = arith.constant 0 : index
    %c0_100 = arith.constant 0 : index
    %409 = vector.load %arg10[%c0_99, %c0_100] : memref<8x1xf32, #tpu.memory_space<vmem>>, vector<8x1xf32>
    %410 = vector.broadcast %409 : vector<8x1xf32> to vector<8x256xf32>
    %411 = arith.addf %408, %410 : vector<8x256xf32>
    %c0_101 = arith.constant 0 : index
    %c0_102 = arith.constant 0 : index
    %412 = vector.load %arg11[%c0_101, %c0_102] : memref<8x49xf32, #tpu.memory_space<vmem>>, vector<8x49xf32>
    %cst_103 = arith.constant 0.000000e+00 : f32
    %413 = vector.broadcast %cst_103 : f32 to vector<8x256xf32>
    %c153_i32 = arith.constant 153 : i32
    %414 = tpu.dynamic_rotate %411 by %c153_i32 dim 1 : vector<8x256xf32>, i32 -> vector<8x256xf32>
    %c-9_i32 = arith.constant -9 : i32
    %415 = vector.broadcast %c-9_i32 : i32 to vector<1x256xi32>
    %416 = arith.addi %4, %415 : vector<1x256xi32>
    %c0_i32_104 = arith.constant 0 : i32
    %417 = vector.broadcast %c0_i32_104 : i32 to vector<1x256xi32>
    %418 = arith.cmpi sge, %416, %417 : vector<1x256xi32>
    %c-9_i32_105 = arith.constant -9 : i32
    %419 = vector.broadcast %c-9_i32_105 : i32 to vector<1x256xi32>
    %420 = arith.addi %4, %419 : vector<1x256xi32>
    %c16_i32_106 = arith.constant 16 : i32
    %421 = vector.broadcast %c16_i32_106 : i32 to vector<1x256xi32>
    %422 = arith.cmpi slt, %420, %421 : vector<1x256xi32>
    %423 = arith.andi %418, %422 : vector<1x256xi1>
    %c-9_i32_107 = arith.constant -9 : i32
    %424 = vector.broadcast %c-9_i32_107 : i32 to vector<1x256xi32>
    %425 = arith.addi %5, %424 : vector<1x256xi32>
    %c0_i32_108 = arith.constant 0 : i32
    %426 = vector.broadcast %c0_i32_108 : i32 to vector<1x256xi32>
    %427 = arith.cmpi sge, %425, %426 : vector<1x256xi32>
    %c-9_i32_109 = arith.constant -9 : i32
    %428 = vector.broadcast %c-9_i32_109 : i32 to vector<1x256xi32>
    %429 = arith.addi %5, %428 : vector<1x256xi32>
    %c16_i32_110 = arith.constant 16 : i32
    %430 = vector.broadcast %c16_i32_110 : i32 to vector<1x256xi32>
    %431 = arith.cmpi slt, %429, %430 : vector<1x256xi32>
    %432 = arith.andi %427, %431 : vector<1x256xi1>
    %433 = arith.andi %423, %432 : vector<1x256xi1>
    %cst_111 = arith.constant 0.000000e+00 : f32
    %434 = vector.shape_cast %433 : vector<1x256xi1> to vector<1x256xi1>
    %435 = vector.broadcast %434 : vector<1x256xi1> to vector<8x256xi1>
    %436 = vector.broadcast %cst_111 : f32 to vector<8x256xf32>
    %437 = arith.select %435, %414, %436 : vector<8x256xi1>, vector<8x256xf32>
    %438 = vector.extract_strided_slice %412 {offsets = [0, 0], sizes = [8, 1], strides = [1, 1]} : vector<8x49xf32> to vector<8x1xf32>
    %439 = vector.broadcast %438 : vector<8x1xf32> to vector<8x256xf32>
    %440 = arith.mulf %437, %439 : vector<8x256xf32>
    %441 = arith.addf %413, %440 : vector<8x256xf32>
    %c150_i32 = arith.constant 150 : i32
    %442 = tpu.dynamic_rotate %411 by %c150_i32 dim 1 : vector<8x256xf32>, i32 -> vector<8x256xf32>
    %c-6_i32 = arith.constant -6 : i32
    %443 = vector.broadcast %c-6_i32 : i32 to vector<1x256xi32>
    %444 = arith.addi %5, %443 : vector<1x256xi32>
    %c0_i32_112 = arith.constant 0 : i32
    %445 = vector.broadcast %c0_i32_112 : i32 to vector<1x256xi32>
    %446 = arith.cmpi sge, %444, %445 : vector<1x256xi32>
    %c-6_i32_113 = arith.constant -6 : i32
    %447 = vector.broadcast %c-6_i32_113 : i32 to vector<1x256xi32>
    %448 = arith.addi %5, %447 : vector<1x256xi32>
    %c16_i32_114 = arith.constant 16 : i32
    %449 = vector.broadcast %c16_i32_114 : i32 to vector<1x256xi32>
    %450 = arith.cmpi slt, %448, %449 : vector<1x256xi32>
    %451 = arith.andi %446, %450 : vector<1x256xi1>
    %452 = arith.andi %423, %451 : vector<1x256xi1>
    %cst_115 = arith.constant 0.000000e+00 : f32
    %453 = vector.shape_cast %452 : vector<1x256xi1> to vector<1x256xi1>
    %454 = vector.broadcast %453 : vector<1x256xi1> to vector<8x256xi1>
    %455 = vector.broadcast %cst_115 : f32 to vector<8x256xf32>
    %456 = arith.select %454, %442, %455 : vector<8x256xi1>, vector<8x256xf32>
    %457 = vector.extract_strided_slice %412 {offsets = [0, 1], sizes = [8, 1], strides = [1, 1]} : vector<8x49xf32> to vector<8x1xf32>
    %458 = vector.broadcast %457 : vector<8x1xf32> to vector<8x256xf32>
    %459 = arith.mulf %456, %458 : vector<8x256xf32>
    %460 = arith.addf %441, %459 : vector<8x256xf32>
    %c147_i32 = arith.constant 147 : i32
    %461 = tpu.dynamic_rotate %411 by %c147_i32 dim 1 : vector<8x256xf32>, i32 -> vector<8x256xf32>
    %c-3_i32 = arith.constant -3 : i32
    %462 = vector.broadcast %c-3_i32 : i32 to vector<1x256xi32>
    %463 = arith.addi %5, %462 : vector<1x256xi32>
    %c0_i32_116 = arith.constant 0 : i32
    %464 = vector.broadcast %c0_i32_116 : i32 to vector<1x256xi32>
    %465 = arith.cmpi sge, %463, %464 : vector<1x256xi32>
    %c-3_i32_117 = arith.constant -3 : i32
    %466 = vector.broadcast %c-3_i32_117 : i32 to vector<1x256xi32>
    %467 = arith.addi %5, %466 : vector<1x256xi32>
    %c16_i32_118 = arith.constant 16 : i32
    %468 = vector.broadcast %c16_i32_118 : i32 to vector<1x256xi32>
    %469 = arith.cmpi slt, %467, %468 : vector<1x256xi32>
    %470 = arith.andi %465, %469 : vector<1x256xi1>
    %471 = arith.andi %423, %470 : vector<1x256xi1>
    %cst_119 = arith.constant 0.000000e+00 : f32
    %472 = vector.shape_cast %471 : vector<1x256xi1> to vector<1x256xi1>
    %473 = vector.broadcast %472 : vector<1x256xi1> to vector<8x256xi1>
    %474 = vector.broadcast %cst_119 : f32 to vector<8x256xf32>
    %475 = arith.select %473, %461, %474 : vector<8x256xi1>, vector<8x256xf32>
    %476 = vector.extract_strided_slice %412 {offsets = [0, 2], sizes = [8, 1], strides = [1, 1]} : vector<8x49xf32> to vector<8x1xf32>
    %477 = vector.broadcast %476 : vector<8x1xf32> to vector<8x256xf32>
    %478 = arith.mulf %475, %477 : vector<8x256xf32>
    %479 = arith.addf %460, %478 : vector<8x256xf32>
    %c144_i32 = arith.constant 144 : i32
    %480 = tpu.dynamic_rotate %411 by %c144_i32 dim 1 : vector<8x256xf32>, i32 -> vector<8x256xf32>
    %481 = arith.andi %423, %42 : vector<1x256xi1>
    %cst_120 = arith.constant 0.000000e+00 : f32
    %482 = vector.shape_cast %481 : vector<1x256xi1> to vector<1x256xi1>
    %483 = vector.broadcast %482 : vector<1x256xi1> to vector<8x256xi1>
    %484 = vector.broadcast %cst_120 : f32 to vector<8x256xf32>
    %485 = arith.select %483, %480, %484 : vector<8x256xi1>, vector<8x256xf32>
    %486 = vector.extract_strided_slice %412 {offsets = [0, 3], sizes = [8, 1], strides = [1, 1]} : vector<8x49xf32> to vector<8x1xf32>
    %487 = vector.broadcast %486 : vector<8x1xf32> to vector<8x256xf32>
    %488 = arith.mulf %485, %487 : vector<8x256xf32>
    %489 = arith.addf %479, %488 : vector<8x256xf32>
    %c141_i32 = arith.constant 141 : i32
    %490 = tpu.dynamic_rotate %411 by %c141_i32 dim 1 : vector<8x256xf32>, i32 -> vector<8x256xf32>
    %c3_i32 = arith.constant 3 : i32
    %491 = vector.broadcast %c3_i32 : i32 to vector<1x256xi32>
    %492 = arith.addi %5, %491 : vector<1x256xi32>
    %c0_i32_121 = arith.constant 0 : i32
    %493 = vector.broadcast %c0_i32_121 : i32 to vector<1x256xi32>
    %494 = arith.cmpi sge, %492, %493 : vector<1x256xi32>
    %c3_i32_122 = arith.constant 3 : i32
    %495 = vector.broadcast %c3_i32_122 : i32 to vector<1x256xi32>
    %496 = arith.addi %5, %495 : vector<1x256xi32>
    %c16_i32_123 = arith.constant 16 : i32
    %497 = vector.broadcast %c16_i32_123 : i32 to vector<1x256xi32>
    %498 = arith.cmpi slt, %496, %497 : vector<1x256xi32>
    %499 = arith.andi %494, %498 : vector<1x256xi1>
    %500 = arith.andi %423, %499 : vector<1x256xi1>
    %cst_124 = arith.constant 0.000000e+00 : f32
    %501 = vector.shape_cast %500 : vector<1x256xi1> to vector<1x256xi1>
    %502 = vector.broadcast %501 : vector<1x256xi1> to vector<8x256xi1>
    %503 = vector.broadcast %cst_124 : f32 to vector<8x256xf32>
    %504 = arith.select %502, %490, %503 : vector<8x256xi1>, vector<8x256xf32>
    %505 = vector.extract_strided_slice %412 {offsets = [0, 4], sizes = [8, 1], strides = [1, 1]} : vector<8x49xf32> to vector<8x1xf32>
    %506 = vector.broadcast %505 : vector<8x1xf32> to vector<8x256xf32>
    %507 = arith.mulf %504, %506 : vector<8x256xf32>
    %508 = arith.addf %489, %507 : vector<8x256xf32>
    %c138_i32 = arith.constant 138 : i32
    %509 = tpu.dynamic_rotate %411 by %c138_i32 dim 1 : vector<8x256xf32>, i32 -> vector<8x256xf32>
    %c6_i32 = arith.constant 6 : i32
    %510 = vector.broadcast %c6_i32 : i32 to vector<1x256xi32>
    %511 = arith.addi %5, %510 : vector<1x256xi32>
    %c0_i32_125 = arith.constant 0 : i32
    %512 = vector.broadcast %c0_i32_125 : i32 to vector<1x256xi32>
    %513 = arith.cmpi sge, %511, %512 : vector<1x256xi32>
    %c6_i32_126 = arith.constant 6 : i32
    %514 = vector.broadcast %c6_i32_126 : i32 to vector<1x256xi32>
    %515 = arith.addi %5, %514 : vector<1x256xi32>
    %c16_i32_127 = arith.constant 16 : i32
    %516 = vector.broadcast %c16_i32_127 : i32 to vector<1x256xi32>
    %517 = arith.cmpi slt, %515, %516 : vector<1x256xi32>
    %518 = arith.andi %513, %517 : vector<1x256xi1>
    %519 = arith.andi %423, %518 : vector<1x256xi1>
    %cst_128 = arith.constant 0.000000e+00 : f32
    %520 = vector.shape_cast %519 : vector<1x256xi1> to vector<1x256xi1>
    %521 = vector.broadcast %520 : vector<1x256xi1> to vector<8x256xi1>
    %522 = vector.broadcast %cst_128 : f32 to vector<8x256xf32>
    %523 = arith.select %521, %509, %522 : vector<8x256xi1>, vector<8x256xf32>
    %524 = vector.extract_strided_slice %412 {offsets = [0, 5], sizes = [8, 1], strides = [1, 1]} : vector<8x49xf32> to vector<8x1xf32>
    %525 = vector.broadcast %524 : vector<8x1xf32> to vector<8x256xf32>
    %526 = arith.mulf %523, %525 : vector<8x256xf32>
    %527 = arith.addf %508, %526 : vector<8x256xf32>
    %c135_i32 = arith.constant 135 : i32
    %528 = tpu.dynamic_rotate %411 by %c135_i32 dim 1 : vector<8x256xf32>, i32 -> vector<8x256xf32>
    %c9_i32 = arith.constant 9 : i32
    %529 = vector.broadcast %c9_i32 : i32 to vector<1x256xi32>
    %530 = arith.addi %5, %529 : vector<1x256xi32>
    %c0_i32_129 = arith.constant 0 : i32
    %531 = vector.broadcast %c0_i32_129 : i32 to vector<1x256xi32>
    %532 = arith.cmpi sge, %530, %531 : vector<1x256xi32>
    %c9_i32_130 = arith.constant 9 : i32
    %533 = vector.broadcast %c9_i32_130 : i32 to vector<1x256xi32>
    %534 = arith.addi %5, %533 : vector<1x256xi32>
    %c16_i32_131 = arith.constant 16 : i32
    %535 = vector.broadcast %c16_i32_131 : i32 to vector<1x256xi32>
    %536 = arith.cmpi slt, %534, %535 : vector<1x256xi32>
    %537 = arith.andi %532, %536 : vector<1x256xi1>
    %538 = arith.andi %423, %537 : vector<1x256xi1>
    %cst_132 = arith.constant 0.000000e+00 : f32
    %539 = vector.shape_cast %538 : vector<1x256xi1> to vector<1x256xi1>
    %540 = vector.broadcast %539 : vector<1x256xi1> to vector<8x256xi1>
    %541 = vector.broadcast %cst_132 : f32 to vector<8x256xf32>
    %542 = arith.select %540, %528, %541 : vector<8x256xi1>, vector<8x256xf32>
    %543 = vector.extract_strided_slice %412 {offsets = [0, 6], sizes = [8, 1], strides = [1, 1]} : vector<8x49xf32> to vector<8x1xf32>
    %544 = vector.broadcast %543 : vector<8x1xf32> to vector<8x256xf32>
    %545 = arith.mulf %542, %544 : vector<8x256xf32>
    %546 = arith.addf %527, %545 : vector<8x256xf32>
    %c105_i32 = arith.constant 105 : i32
    %547 = tpu.dynamic_rotate %411 by %c105_i32 dim 1 : vector<8x256xf32>, i32 -> vector<8x256xf32>
    %c-6_i32_133 = arith.constant -6 : i32
    %548 = vector.broadcast %c-6_i32_133 : i32 to vector<1x256xi32>
    %549 = arith.addi %4, %548 : vector<1x256xi32>
    %c0_i32_134 = arith.constant 0 : i32
    %550 = vector.broadcast %c0_i32_134 : i32 to vector<1x256xi32>
    %551 = arith.cmpi sge, %549, %550 : vector<1x256xi32>
    %c-6_i32_135 = arith.constant -6 : i32
    %552 = vector.broadcast %c-6_i32_135 : i32 to vector<1x256xi32>
    %553 = arith.addi %4, %552 : vector<1x256xi32>
    %c16_i32_136 = arith.constant 16 : i32
    %554 = vector.broadcast %c16_i32_136 : i32 to vector<1x256xi32>
    %555 = arith.cmpi slt, %553, %554 : vector<1x256xi32>
    %556 = arith.andi %551, %555 : vector<1x256xi1>
    %557 = arith.andi %556, %432 : vector<1x256xi1>
    %cst_137 = arith.constant 0.000000e+00 : f32
    %558 = vector.shape_cast %557 : vector<1x256xi1> to vector<1x256xi1>
    %559 = vector.broadcast %558 : vector<1x256xi1> to vector<8x256xi1>
    %560 = vector.broadcast %cst_137 : f32 to vector<8x256xf32>
    %561 = arith.select %559, %547, %560 : vector<8x256xi1>, vector<8x256xf32>
    %562 = vector.extract_strided_slice %412 {offsets = [0, 7], sizes = [8, 1], strides = [1, 1]} : vector<8x49xf32> to vector<8x1xf32>
    %563 = vector.broadcast %562 : vector<8x1xf32> to vector<8x256xf32>
    %564 = arith.mulf %561, %563 : vector<8x256xf32>
    %565 = arith.addf %546, %564 : vector<8x256xf32>
    %c102_i32 = arith.constant 102 : i32
    %566 = tpu.dynamic_rotate %411 by %c102_i32 dim 1 : vector<8x256xf32>, i32 -> vector<8x256xf32>
    %567 = arith.andi %556, %451 : vector<1x256xi1>
    %cst_138 = arith.constant 0.000000e+00 : f32
    %568 = vector.shape_cast %567 : vector<1x256xi1> to vector<1x256xi1>
    %569 = vector.broadcast %568 : vector<1x256xi1> to vector<8x256xi1>
    %570 = vector.broadcast %cst_138 : f32 to vector<8x256xf32>
    %571 = arith.select %569, %566, %570 : vector<8x256xi1>, vector<8x256xf32>
    %572 = vector.extract_strided_slice %412 {offsets = [0, 8], sizes = [8, 1], strides = [1, 1]} : vector<8x49xf32> to vector<8x1xf32>
    %573 = vector.broadcast %572 : vector<8x1xf32> to vector<8x256xf32>
    %574 = arith.mulf %571, %573 : vector<8x256xf32>
    %575 = arith.addf %565, %574 : vector<8x256xf32>
    %c99_i32 = arith.constant 99 : i32
    %576 = tpu.dynamic_rotate %411 by %c99_i32 dim 1 : vector<8x256xf32>, i32 -> vector<8x256xf32>
    %577 = arith.andi %556, %470 : vector<1x256xi1>
    %cst_139 = arith.constant 0.000000e+00 : f32
    %578 = vector.shape_cast %577 : vector<1x256xi1> to vector<1x256xi1>
    %579 = vector.broadcast %578 : vector<1x256xi1> to vector<8x256xi1>
    %580 = vector.broadcast %cst_139 : f32 to vector<8x256xf32>
    %581 = arith.select %579, %576, %580 : vector<8x256xi1>, vector<8x256xf32>
    %582 = vector.extract_strided_slice %412 {offsets = [0, 9], sizes = [8, 1], strides = [1, 1]} : vector<8x49xf32> to vector<8x1xf32>
    %583 = vector.broadcast %582 : vector<8x1xf32> to vector<8x256xf32>
    %584 = arith.mulf %581, %583 : vector<8x256xf32>
    %585 = arith.addf %575, %584 : vector<8x256xf32>
    %c96_i32 = arith.constant 96 : i32
    %586 = tpu.dynamic_rotate %411 by %c96_i32 dim 1 : vector<8x256xf32>, i32 -> vector<8x256xf32>
    %587 = arith.andi %556, %42 : vector<1x256xi1>
    %cst_140 = arith.constant 0.000000e+00 : f32
    %588 = vector.shape_cast %587 : vector<1x256xi1> to vector<1x256xi1>
    %589 = vector.broadcast %588 : vector<1x256xi1> to vector<8x256xi1>
    %590 = vector.broadcast %cst_140 : f32 to vector<8x256xf32>
    %591 = arith.select %589, %586, %590 : vector<8x256xi1>, vector<8x256xf32>
    %592 = vector.extract_strided_slice %412 {offsets = [0, 10], sizes = [8, 1], strides = [1, 1]} : vector<8x49xf32> to vector<8x1xf32>
    %593 = vector.broadcast %592 : vector<8x1xf32> to vector<8x256xf32>
    %594 = arith.mulf %591, %593 : vector<8x256xf32>
    %595 = arith.addf %585, %594 : vector<8x256xf32>
    %c93_i32 = arith.constant 93 : i32
    %596 = tpu.dynamic_rotate %411 by %c93_i32 dim 1 : vector<8x256xf32>, i32 -> vector<8x256xf32>
    %597 = arith.andi %556, %499 : vector<1x256xi1>
    %cst_141 = arith.constant 0.000000e+00 : f32
    %598 = vector.shape_cast %597 : vector<1x256xi1> to vector<1x256xi1>
    %599 = vector.broadcast %598 : vector<1x256xi1> to vector<8x256xi1>
    %600 = vector.broadcast %cst_141 : f32 to vector<8x256xf32>
    %601 = arith.select %599, %596, %600 : vector<8x256xi1>, vector<8x256xf32>
    %602 = vector.extract_strided_slice %412 {offsets = [0, 11], sizes = [8, 1], strides = [1, 1]} : vector<8x49xf32> to vector<8x1xf32>
    %603 = vector.broadcast %602 : vector<8x1xf32> to vector<8x256xf32>
    %604 = arith.mulf %601, %603 : vector<8x256xf32>
    %605 = arith.addf %595, %604 : vector<8x256xf32>
    %c90_i32 = arith.constant 90 : i32
    %606 = tpu.dynamic_rotate %411 by %c90_i32 dim 1 : vector<8x256xf32>, i32 -> vector<8x256xf32>
    %607 = arith.andi %556, %518 : vector<1x256xi1>
    %cst_142 = arith.constant 0.000000e+00 : f32
    %608 = vector.shape_cast %607 : vector<1x256xi1> to vector<1x256xi1>
    %609 = vector.broadcast %608 : vector<1x256xi1> to vector<8x256xi1>
    %610 = vector.broadcast %cst_142 : f32 to vector<8x256xf32>
    %611 = arith.select %609, %606, %610 : vector<8x256xi1>, vector<8x256xf32>
    %612 = vector.extract_strided_slice %412 {offsets = [0, 12], sizes = [8, 1], strides = [1, 1]} : vector<8x49xf32> to vector<8x1xf32>
    %613 = vector.broadcast %612 : vector<8x1xf32> to vector<8x256xf32>
    %614 = arith.mulf %611, %613 : vector<8x256xf32>
    %615 = arith.addf %605, %614 : vector<8x256xf32>
    %c87_i32 = arith.constant 87 : i32
    %616 = tpu.dynamic_rotate %411 by %c87_i32 dim 1 : vector<8x256xf32>, i32 -> vector<8x256xf32>
    %617 = arith.andi %556, %537 : vector<1x256xi1>
    %cst_143 = arith.constant 0.000000e+00 : f32
    %618 = vector.shape_cast %617 : vector<1x256xi1> to vector<1x256xi1>
    %619 = vector.broadcast %618 : vector<1x256xi1> to vector<8x256xi1>
    %620 = vector.broadcast %cst_143 : f32 to vector<8x256xf32>
    %621 = arith.select %619, %616, %620 : vector<8x256xi1>, vector<8x256xf32>
    %622 = vector.extract_strided_slice %412 {offsets = [0, 13], sizes = [8, 1], strides = [1, 1]} : vector<8x49xf32> to vector<8x1xf32>
    %623 = vector.broadcast %622 : vector<8x1xf32> to vector<8x256xf32>
    %624 = arith.mulf %621, %623 : vector<8x256xf32>
    %625 = arith.addf %615, %624 : vector<8x256xf32>
    %c57_i32 = arith.constant 57 : i32
    %626 = tpu.dynamic_rotate %411 by %c57_i32 dim 1 : vector<8x256xf32>, i32 -> vector<8x256xf32>
    %c-3_i32_144 = arith.constant -3 : i32
    %627 = vector.broadcast %c-3_i32_144 : i32 to vector<1x256xi32>
    %628 = arith.addi %4, %627 : vector<1x256xi32>
    %c0_i32_145 = arith.constant 0 : i32
    %629 = vector.broadcast %c0_i32_145 : i32 to vector<1x256xi32>
    %630 = arith.cmpi sge, %628, %629 : vector<1x256xi32>
    %c-3_i32_146 = arith.constant -3 : i32
    %631 = vector.broadcast %c-3_i32_146 : i32 to vector<1x256xi32>
    %632 = arith.addi %4, %631 : vector<1x256xi32>
    %c16_i32_147 = arith.constant 16 : i32
    %633 = vector.broadcast %c16_i32_147 : i32 to vector<1x256xi32>
    %634 = arith.cmpi slt, %632, %633 : vector<1x256xi32>
    %635 = arith.andi %630, %634 : vector<1x256xi1>
    %636 = arith.andi %635, %432 : vector<1x256xi1>
    %cst_148 = arith.constant 0.000000e+00 : f32
    %637 = vector.shape_cast %636 : vector<1x256xi1> to vector<1x256xi1>
    %638 = vector.broadcast %637 : vector<1x256xi1> to vector<8x256xi1>
    %639 = vector.broadcast %cst_148 : f32 to vector<8x256xf32>
    %640 = arith.select %638, %626, %639 : vector<8x256xi1>, vector<8x256xf32>
    %641 = vector.extract_strided_slice %412 {offsets = [0, 14], sizes = [8, 1], strides = [1, 1]} : vector<8x49xf32> to vector<8x1xf32>
    %642 = vector.broadcast %641 : vector<8x1xf32> to vector<8x256xf32>
    %643 = arith.mulf %640, %642 : vector<8x256xf32>
    %644 = arith.addf %625, %643 : vector<8x256xf32>
    %c54_i32 = arith.constant 54 : i32
    %645 = tpu.dynamic_rotate %411 by %c54_i32 dim 1 : vector<8x256xf32>, i32 -> vector<8x256xf32>
    %646 = arith.andi %635, %451 : vector<1x256xi1>
    %cst_149 = arith.constant 0.000000e+00 : f32
    %647 = vector.shape_cast %646 : vector<1x256xi1> to vector<1x256xi1>
    %648 = vector.broadcast %647 : vector<1x256xi1> to vector<8x256xi1>
    %649 = vector.broadcast %cst_149 : f32 to vector<8x256xf32>
    %650 = arith.select %648, %645, %649 : vector<8x256xi1>, vector<8x256xf32>
    %651 = vector.extract_strided_slice %412 {offsets = [0, 15], sizes = [8, 1], strides = [1, 1]} : vector<8x49xf32> to vector<8x1xf32>
    %652 = vector.broadcast %651 : vector<8x1xf32> to vector<8x256xf32>
    %653 = arith.mulf %650, %652 : vector<8x256xf32>
    %654 = arith.addf %644, %653 : vector<8x256xf32>
    %c51_i32 = arith.constant 51 : i32
    %655 = tpu.dynamic_rotate %411 by %c51_i32 dim 1 : vector<8x256xf32>, i32 -> vector<8x256xf32>
    %656 = arith.andi %635, %470 : vector<1x256xi1>
    %cst_150 = arith.constant 0.000000e+00 : f32
    %657 = vector.shape_cast %656 : vector<1x256xi1> to vector<1x256xi1>
    %658 = vector.broadcast %657 : vector<1x256xi1> to vector<8x256xi1>
    %659 = vector.broadcast %cst_150 : f32 to vector<8x256xf32>
    %660 = arith.select %658, %655, %659 : vector<8x256xi1>, vector<8x256xf32>
    %661 = vector.extract_strided_slice %412 {offsets = [0, 16], sizes = [8, 1], strides = [1, 1]} : vector<8x49xf32> to vector<8x1xf32>
    %662 = vector.broadcast %661 : vector<8x1xf32> to vector<8x256xf32>
    %663 = arith.mulf %660, %662 : vector<8x256xf32>
    %664 = arith.addf %654, %663 : vector<8x256xf32>
    %c48_i32 = arith.constant 48 : i32
    %665 = tpu.dynamic_rotate %411 by %c48_i32 dim 1 : vector<8x256xf32>, i32 -> vector<8x256xf32>
    %666 = arith.andi %635, %42 : vector<1x256xi1>
    %cst_151 = arith.constant 0.000000e+00 : f32
    %667 = vector.shape_cast %666 : vector<1x256xi1> to vector<1x256xi1>
    %668 = vector.broadcast %667 : vector<1x256xi1> to vector<8x256xi1>
    %669 = vector.broadcast %cst_151 : f32 to vector<8x256xf32>
    %670 = arith.select %668, %665, %669 : vector<8x256xi1>, vector<8x256xf32>
    %671 = vector.extract_strided_slice %412 {offsets = [0, 17], sizes = [8, 1], strides = [1, 1]} : vector<8x49xf32> to vector<8x1xf32>
    %672 = vector.broadcast %671 : vector<8x1xf32> to vector<8x256xf32>
    %673 = arith.mulf %670, %672 : vector<8x256xf32>
    %674 = arith.addf %664, %673 : vector<8x256xf32>
    %c45_i32 = arith.constant 45 : i32
    %675 = tpu.dynamic_rotate %411 by %c45_i32 dim 1 : vector<8x256xf32>, i32 -> vector<8x256xf32>
    %676 = arith.andi %635, %499 : vector<1x256xi1>
    %cst_152 = arith.constant 0.000000e+00 : f32
    %677 = vector.shape_cast %676 : vector<1x256xi1> to vector<1x256xi1>
    %678 = vector.broadcast %677 : vector<1x256xi1> to vector<8x256xi1>
    %679 = vector.broadcast %cst_152 : f32 to vector<8x256xf32>
    %680 = arith.select %678, %675, %679 : vector<8x256xi1>, vector<8x256xf32>
    %681 = vector.extract_strided_slice %412 {offsets = [0, 18], sizes = [8, 1], strides = [1, 1]} : vector<8x49xf32> to vector<8x1xf32>
    %682 = vector.broadcast %681 : vector<8x1xf32> to vector<8x256xf32>
    %683 = arith.mulf %680, %682 : vector<8x256xf32>
    %684 = arith.addf %674, %683 : vector<8x256xf32>
    %c42_i32 = arith.constant 42 : i32
    %685 = tpu.dynamic_rotate %411 by %c42_i32 dim 1 : vector<8x256xf32>, i32 -> vector<8x256xf32>
    %686 = arith.andi %635, %518 : vector<1x256xi1>
    %cst_153 = arith.constant 0.000000e+00 : f32
    %687 = vector.shape_cast %686 : vector<1x256xi1> to vector<1x256xi1>
    %688 = vector.broadcast %687 : vector<1x256xi1> to vector<8x256xi1>
    %689 = vector.broadcast %cst_153 : f32 to vector<8x256xf32>
    %690 = arith.select %688, %685, %689 : vector<8x256xi1>, vector<8x256xf32>
    %691 = vector.extract_strided_slice %412 {offsets = [0, 19], sizes = [8, 1], strides = [1, 1]} : vector<8x49xf32> to vector<8x1xf32>
    %692 = vector.broadcast %691 : vector<8x1xf32> to vector<8x256xf32>
    %693 = arith.mulf %690, %692 : vector<8x256xf32>
    %694 = arith.addf %684, %693 : vector<8x256xf32>
    %c39_i32 = arith.constant 39 : i32
    %695 = tpu.dynamic_rotate %411 by %c39_i32 dim 1 : vector<8x256xf32>, i32 -> vector<8x256xf32>
    %696 = arith.andi %635, %537 : vector<1x256xi1>
    %cst_154 = arith.constant 0.000000e+00 : f32
    %697 = vector.shape_cast %696 : vector<1x256xi1> to vector<1x256xi1>
    %698 = vector.broadcast %697 : vector<1x256xi1> to vector<8x256xi1>
    %699 = vector.broadcast %cst_154 : f32 to vector<8x256xf32>
    %700 = arith.select %698, %695, %699 : vector<8x256xi1>, vector<8x256xf32>
    %701 = vector.extract_strided_slice %412 {offsets = [0, 20], sizes = [8, 1], strides = [1, 1]} : vector<8x49xf32> to vector<8x1xf32>
    %702 = vector.broadcast %701 : vector<8x1xf32> to vector<8x256xf32>
    %703 = arith.mulf %700, %702 : vector<8x256xf32>
    %704 = arith.addf %694, %703 : vector<8x256xf32>
    %c9_i32_155 = arith.constant 9 : i32
    %705 = tpu.dynamic_rotate %411 by %c9_i32_155 dim 1 : vector<8x256xf32>, i32 -> vector<8x256xf32>
    %706 = arith.andi %72, %432 : vector<1x256xi1>
    %cst_156 = arith.constant 0.000000e+00 : f32
    %707 = vector.shape_cast %706 : vector<1x256xi1> to vector<1x256xi1>
    %708 = vector.broadcast %707 : vector<1x256xi1> to vector<8x256xi1>
    %709 = vector.broadcast %cst_156 : f32 to vector<8x256xf32>
    %710 = arith.select %708, %705, %709 : vector<8x256xi1>, vector<8x256xf32>
    %711 = vector.extract_strided_slice %412 {offsets = [0, 21], sizes = [8, 1], strides = [1, 1]} : vector<8x49xf32> to vector<8x1xf32>
    %712 = vector.broadcast %711 : vector<8x1xf32> to vector<8x256xf32>
    %713 = arith.mulf %710, %712 : vector<8x256xf32>
    %714 = arith.addf %704, %713 : vector<8x256xf32>
    %c6_i32_157 = arith.constant 6 : i32
    %715 = tpu.dynamic_rotate %411 by %c6_i32_157 dim 1 : vector<8x256xf32>, i32 -> vector<8x256xf32>
    %716 = arith.andi %72, %451 : vector<1x256xi1>
    %cst_158 = arith.constant 0.000000e+00 : f32
    %717 = vector.shape_cast %716 : vector<1x256xi1> to vector<1x256xi1>
    %718 = vector.broadcast %717 : vector<1x256xi1> to vector<8x256xi1>
    %719 = vector.broadcast %cst_158 : f32 to vector<8x256xf32>
    %720 = arith.select %718, %715, %719 : vector<8x256xi1>, vector<8x256xf32>
    %721 = vector.extract_strided_slice %412 {offsets = [0, 22], sizes = [8, 1], strides = [1, 1]} : vector<8x49xf32> to vector<8x1xf32>
    %722 = vector.broadcast %721 : vector<8x1xf32> to vector<8x256xf32>
    %723 = arith.mulf %720, %722 : vector<8x256xf32>
    %724 = arith.addf %714, %723 : vector<8x256xf32>
    %c3_i32_159 = arith.constant 3 : i32
    %725 = tpu.dynamic_rotate %411 by %c3_i32_159 dim 1 : vector<8x256xf32>, i32 -> vector<8x256xf32>
    %726 = arith.andi %72, %470 : vector<1x256xi1>
    %cst_160 = arith.constant 0.000000e+00 : f32
    %727 = vector.shape_cast %726 : vector<1x256xi1> to vector<1x256xi1>
    %728 = vector.broadcast %727 : vector<1x256xi1> to vector<8x256xi1>
    %729 = vector.broadcast %cst_160 : f32 to vector<8x256xf32>
    %730 = arith.select %728, %725, %729 : vector<8x256xi1>, vector<8x256xf32>
    %731 = vector.extract_strided_slice %412 {offsets = [0, 23], sizes = [8, 1], strides = [1, 1]} : vector<8x49xf32> to vector<8x1xf32>
    %732 = vector.broadcast %731 : vector<8x1xf32> to vector<8x256xf32>
    %733 = arith.mulf %730, %732 : vector<8x256xf32>
    %734 = arith.addf %724, %733 : vector<8x256xf32>
    %735 = arith.andi %72, %42 : vector<1x256xi1>
    %cst_161 = arith.constant 0.000000e+00 : f32
    %736 = vector.shape_cast %735 : vector<1x256xi1> to vector<1x256xi1>
    %737 = vector.broadcast %736 : vector<1x256xi1> to vector<8x256xi1>
    %738 = vector.broadcast %cst_161 : f32 to vector<8x256xf32>
    %739 = arith.select %737, %411, %738 : vector<8x256xi1>, vector<8x256xf32>
    %740 = vector.extract_strided_slice %412 {offsets = [0, 24], sizes = [8, 1], strides = [1, 1]} : vector<8x49xf32> to vector<8x1xf32>
    %741 = vector.broadcast %740 : vector<8x1xf32> to vector<8x256xf32>
    %742 = arith.mulf %739, %741 : vector<8x256xf32>
    %743 = arith.addf %734, %742 : vector<8x256xf32>
    %c253_i32 = arith.constant 253 : i32
    %744 = tpu.dynamic_rotate %411 by %c253_i32 dim 1 : vector<8x256xf32>, i32 -> vector<8x256xf32>
    %745 = arith.andi %72, %499 : vector<1x256xi1>
    %cst_162 = arith.constant 0.000000e+00 : f32
    %746 = vector.shape_cast %745 : vector<1x256xi1> to vector<1x256xi1>
    %747 = vector.broadcast %746 : vector<1x256xi1> to vector<8x256xi1>
    %748 = vector.broadcast %cst_162 : f32 to vector<8x256xf32>
    %749 = arith.select %747, %744, %748 : vector<8x256xi1>, vector<8x256xf32>
    %750 = vector.extract_strided_slice %412 {offsets = [0, 25], sizes = [8, 1], strides = [1, 1]} : vector<8x49xf32> to vector<8x1xf32>
    %751 = vector.broadcast %750 : vector<8x1xf32> to vector<8x256xf32>
    %752 = arith.mulf %749, %751 : vector<8x256xf32>
    %753 = arith.addf %743, %752 : vector<8x256xf32>
    %c250_i32 = arith.constant 250 : i32
    %754 = tpu.dynamic_rotate %411 by %c250_i32 dim 1 : vector<8x256xf32>, i32 -> vector<8x256xf32>
    %755 = arith.andi %72, %518 : vector<1x256xi1>
    %cst_163 = arith.constant 0.000000e+00 : f32
    %756 = vector.shape_cast %755 : vector<1x256xi1> to vector<1x256xi1>
    %757 = vector.broadcast %756 : vector<1x256xi1> to vector<8x256xi1>
    %758 = vector.broadcast %cst_163 : f32 to vector<8x256xf32>
    %759 = arith.select %757, %754, %758 : vector<8x256xi1>, vector<8x256xf32>
    %760 = vector.extract_strided_slice %412 {offsets = [0, 26], sizes = [8, 1], strides = [1, 1]} : vector<8x49xf32> to vector<8x1xf32>
    %761 = vector.broadcast %760 : vector<8x1xf32> to vector<8x256xf32>
    %762 = arith.mulf %759, %761 : vector<8x256xf32>
    %763 = arith.addf %753, %762 : vector<8x256xf32>
    %c247_i32 = arith.constant 247 : i32
    %764 = tpu.dynamic_rotate %411 by %c247_i32 dim 1 : vector<8x256xf32>, i32 -> vector<8x256xf32>
    %765 = arith.andi %72, %537 : vector<1x256xi1>
    %cst_164 = arith.constant 0.000000e+00 : f32
    %766 = vector.shape_cast %765 : vector<1x256xi1> to vector<1x256xi1>
    %767 = vector.broadcast %766 : vector<1x256xi1> to vector<8x256xi1>
    %768 = vector.broadcast %cst_164 : f32 to vector<8x256xf32>
    %769 = arith.select %767, %764, %768 : vector<8x256xi1>, vector<8x256xf32>
    %770 = vector.extract_strided_slice %412 {offsets = [0, 27], sizes = [8, 1], strides = [1, 1]} : vector<8x49xf32> to vector<8x1xf32>
    %771 = vector.broadcast %770 : vector<8x1xf32> to vector<8x256xf32>
    %772 = arith.mulf %769, %771 : vector<8x256xf32>
    %773 = arith.addf %763, %772 : vector<8x256xf32>
    %c217_i32 = arith.constant 217 : i32
    %774 = tpu.dynamic_rotate %411 by %c217_i32 dim 1 : vector<8x256xf32>, i32 -> vector<8x256xf32>
    %c3_i32_165 = arith.constant 3 : i32
    %775 = vector.broadcast %c3_i32_165 : i32 to vector<1x256xi32>
    %776 = arith.addi %4, %775 : vector<1x256xi32>
    %c0_i32_166 = arith.constant 0 : i32
    %777 = vector.broadcast %c0_i32_166 : i32 to vector<1x256xi32>
    %778 = arith.cmpi sge, %776, %777 : vector<1x256xi32>
    %c3_i32_167 = arith.constant 3 : i32
    %779 = vector.broadcast %c3_i32_167 : i32 to vector<1x256xi32>
    %780 = arith.addi %4, %779 : vector<1x256xi32>
    %c16_i32_168 = arith.constant 16 : i32
    %781 = vector.broadcast %c16_i32_168 : i32 to vector<1x256xi32>
    %782 = arith.cmpi slt, %780, %781 : vector<1x256xi32>
    %783 = arith.andi %778, %782 : vector<1x256xi1>
    %784 = arith.andi %783, %432 : vector<1x256xi1>
    %cst_169 = arith.constant 0.000000e+00 : f32
    %785 = vector.shape_cast %784 : vector<1x256xi1> to vector<1x256xi1>
    %786 = vector.broadcast %785 : vector<1x256xi1> to vector<8x256xi1>
    %787 = vector.broadcast %cst_169 : f32 to vector<8x256xf32>
    %788 = arith.select %786, %774, %787 : vector<8x256xi1>, vector<8x256xf32>
    %789 = vector.extract_strided_slice %412 {offsets = [0, 28], sizes = [8, 1], strides = [1, 1]} : vector<8x49xf32> to vector<8x1xf32>
    %790 = vector.broadcast %789 : vector<8x1xf32> to vector<8x256xf32>
    %791 = arith.mulf %788, %790 : vector<8x256xf32>
    %792 = arith.addf %773, %791 : vector<8x256xf32>
    %c214_i32 = arith.constant 214 : i32
    %793 = tpu.dynamic_rotate %411 by %c214_i32 dim 1 : vector<8x256xf32>, i32 -> vector<8x256xf32>
    %794 = arith.andi %783, %451 : vector<1x256xi1>
    %cst_170 = arith.constant 0.000000e+00 : f32
    %795 = vector.shape_cast %794 : vector<1x256xi1> to vector<1x256xi1>
    %796 = vector.broadcast %795 : vector<1x256xi1> to vector<8x256xi1>
    %797 = vector.broadcast %cst_170 : f32 to vector<8x256xf32>
    %798 = arith.select %796, %793, %797 : vector<8x256xi1>, vector<8x256xf32>
    %799 = vector.extract_strided_slice %412 {offsets = [0, 29], sizes = [8, 1], strides = [1, 1]} : vector<8x49xf32> to vector<8x1xf32>
    %800 = vector.broadcast %799 : vector<8x1xf32> to vector<8x256xf32>
    %801 = arith.mulf %798, %800 : vector<8x256xf32>
    %802 = arith.addf %792, %801 : vector<8x256xf32>
    %c211_i32 = arith.constant 211 : i32
    %803 = tpu.dynamic_rotate %411 by %c211_i32 dim 1 : vector<8x256xf32>, i32 -> vector<8x256xf32>
    %804 = arith.andi %783, %470 : vector<1x256xi1>
    %cst_171 = arith.constant 0.000000e+00 : f32
    %805 = vector.shape_cast %804 : vector<1x256xi1> to vector<1x256xi1>
    %806 = vector.broadcast %805 : vector<1x256xi1> to vector<8x256xi1>
    %807 = vector.broadcast %cst_171 : f32 to vector<8x256xf32>
    %808 = arith.select %806, %803, %807 : vector<8x256xi1>, vector<8x256xf32>
    %809 = vector.extract_strided_slice %412 {offsets = [0, 30], sizes = [8, 1], strides = [1, 1]} : vector<8x49xf32> to vector<8x1xf32>
    %810 = vector.broadcast %809 : vector<8x1xf32> to vector<8x256xf32>
    %811 = arith.mulf %808, %810 : vector<8x256xf32>
    %812 = arith.addf %802, %811 : vector<8x256xf32>
    %c208_i32 = arith.constant 208 : i32
    %813 = tpu.dynamic_rotate %411 by %c208_i32 dim 1 : vector<8x256xf32>, i32 -> vector<8x256xf32>
    %814 = arith.andi %783, %42 : vector<1x256xi1>
    %cst_172 = arith.constant 0.000000e+00 : f32
    %815 = vector.shape_cast %814 : vector<1x256xi1> to vector<1x256xi1>
    %816 = vector.broadcast %815 : vector<1x256xi1> to vector<8x256xi1>
    %817 = vector.broadcast %cst_172 : f32 to vector<8x256xf32>
    %818 = arith.select %816, %813, %817 : vector<8x256xi1>, vector<8x256xf32>
    %819 = vector.extract_strided_slice %412 {offsets = [0, 31], sizes = [8, 1], strides = [1, 1]} : vector<8x49xf32> to vector<8x1xf32>
    %820 = vector.broadcast %819 : vector<8x1xf32> to vector<8x256xf32>
    %821 = arith.mulf %818, %820 : vector<8x256xf32>
    %822 = arith.addf %812, %821 : vector<8x256xf32>
    %c205_i32 = arith.constant 205 : i32
    %823 = tpu.dynamic_rotate %411 by %c205_i32 dim 1 : vector<8x256xf32>, i32 -> vector<8x256xf32>
    %824 = arith.andi %783, %499 : vector<1x256xi1>
    %cst_173 = arith.constant 0.000000e+00 : f32
    %825 = vector.shape_cast %824 : vector<1x256xi1> to vector<1x256xi1>
    %826 = vector.broadcast %825 : vector<1x256xi1> to vector<8x256xi1>
    %827 = vector.broadcast %cst_173 : f32 to vector<8x256xf32>
    %828 = arith.select %826, %823, %827 : vector<8x256xi1>, vector<8x256xf32>
    %829 = vector.extract_strided_slice %412 {offsets = [0, 32], sizes = [8, 1], strides = [1, 1]} : vector<8x49xf32> to vector<8x1xf32>
    %830 = vector.broadcast %829 : vector<8x1xf32> to vector<8x256xf32>
    %831 = arith.mulf %828, %830 : vector<8x256xf32>
    %832 = arith.addf %822, %831 : vector<8x256xf32>
    %c202_i32 = arith.constant 202 : i32
    %833 = tpu.dynamic_rotate %411 by %c202_i32 dim 1 : vector<8x256xf32>, i32 -> vector<8x256xf32>
    %834 = arith.andi %783, %518 : vector<1x256xi1>
    %cst_174 = arith.constant 0.000000e+00 : f32
    %835 = vector.shape_cast %834 : vector<1x256xi1> to vector<1x256xi1>
    %836 = vector.broadcast %835 : vector<1x256xi1> to vector<8x256xi1>
    %837 = vector.broadcast %cst_174 : f32 to vector<8x256xf32>
    %838 = arith.select %836, %833, %837 : vector<8x256xi1>, vector<8x256xf32>
    %839 = vector.extract_strided_slice %412 {offsets = [0, 33], sizes = [8, 1], strides = [1, 1]} : vector<8x49xf32> to vector<8x1xf32>
    %840 = vector.broadcast %839 : vector<8x1xf32> to vector<8x256xf32>
    %841 = arith.mulf %838, %840 : vector<8x256xf32>
    %842 = arith.addf %832, %841 : vector<8x256xf32>
    %c199_i32 = arith.constant 199 : i32
    %843 = tpu.dynamic_rotate %411 by %c199_i32 dim 1 : vector<8x256xf32>, i32 -> vector<8x256xf32>
    %844 = arith.andi %783, %537 : vector<1x256xi1>
    %cst_175 = arith.constant 0.000000e+00 : f32
    %845 = vector.shape_cast %844 : vector<1x256xi1> to vector<1x256xi1>
    %846 = vector.broadcast %845 : vector<1x256xi1> to vector<8x256xi1>
    %847 = vector.broadcast %cst_175 : f32 to vector<8x256xf32>
    %848 = arith.select %846, %843, %847 : vector<8x256xi1>, vector<8x256xf32>
    %849 = vector.extract_strided_slice %412 {offsets = [0, 34], sizes = [8, 1], strides = [1, 1]} : vector<8x49xf32> to vector<8x1xf32>
    %850 = vector.broadcast %849 : vector<8x1xf32> to vector<8x256xf32>
    %851 = arith.mulf %848, %850 : vector<8x256xf32>
    %852 = arith.addf %842, %851 : vector<8x256xf32>
    %c169_i32 = arith.constant 169 : i32
    %853 = tpu.dynamic_rotate %411 by %c169_i32 dim 1 : vector<8x256xf32>, i32 -> vector<8x256xf32>
    %c6_i32_176 = arith.constant 6 : i32
    %854 = vector.broadcast %c6_i32_176 : i32 to vector<1x256xi32>
    %855 = arith.addi %4, %854 : vector<1x256xi32>
    %c0_i32_177 = arith.constant 0 : i32
    %856 = vector.broadcast %c0_i32_177 : i32 to vector<1x256xi32>
    %857 = arith.cmpi sge, %855, %856 : vector<1x256xi32>
    %c6_i32_178 = arith.constant 6 : i32
    %858 = vector.broadcast %c6_i32_178 : i32 to vector<1x256xi32>
    %859 = arith.addi %4, %858 : vector<1x256xi32>
    %c16_i32_179 = arith.constant 16 : i32
    %860 = vector.broadcast %c16_i32_179 : i32 to vector<1x256xi32>
    %861 = arith.cmpi slt, %859, %860 : vector<1x256xi32>
    %862 = arith.andi %857, %861 : vector<1x256xi1>
    %863 = arith.andi %862, %432 : vector<1x256xi1>
    %cst_180 = arith.constant 0.000000e+00 : f32
    %864 = vector.shape_cast %863 : vector<1x256xi1> to vector<1x256xi1>
    %865 = vector.broadcast %864 : vector<1x256xi1> to vector<8x256xi1>
    %866 = vector.broadcast %cst_180 : f32 to vector<8x256xf32>
    %867 = arith.select %865, %853, %866 : vector<8x256xi1>, vector<8x256xf32>
    %868 = vector.extract_strided_slice %412 {offsets = [0, 35], sizes = [8, 1], strides = [1, 1]} : vector<8x49xf32> to vector<8x1xf32>
    %869 = vector.broadcast %868 : vector<8x1xf32> to vector<8x256xf32>
    %870 = arith.mulf %867, %869 : vector<8x256xf32>
    %871 = arith.addf %852, %870 : vector<8x256xf32>
    %c166_i32 = arith.constant 166 : i32
    %872 = tpu.dynamic_rotate %411 by %c166_i32 dim 1 : vector<8x256xf32>, i32 -> vector<8x256xf32>
    %873 = arith.andi %862, %451 : vector<1x256xi1>
    %cst_181 = arith.constant 0.000000e+00 : f32
    %874 = vector.shape_cast %873 : vector<1x256xi1> to vector<1x256xi1>
    %875 = vector.broadcast %874 : vector<1x256xi1> to vector<8x256xi1>
    %876 = vector.broadcast %cst_181 : f32 to vector<8x256xf32>
    %877 = arith.select %875, %872, %876 : vector<8x256xi1>, vector<8x256xf32>
    %878 = vector.extract_strided_slice %412 {offsets = [0, 36], sizes = [8, 1], strides = [1, 1]} : vector<8x49xf32> to vector<8x1xf32>
    %879 = vector.broadcast %878 : vector<8x1xf32> to vector<8x256xf32>
    %880 = arith.mulf %877, %879 : vector<8x256xf32>
    %881 = arith.addf %871, %880 : vector<8x256xf32>
    %c163_i32 = arith.constant 163 : i32
    %882 = tpu.dynamic_rotate %411 by %c163_i32 dim 1 : vector<8x256xf32>, i32 -> vector<8x256xf32>
    %883 = arith.andi %862, %470 : vector<1x256xi1>
    %cst_182 = arith.constant 0.000000e+00 : f32
    %884 = vector.shape_cast %883 : vector<1x256xi1> to vector<1x256xi1>
    %885 = vector.broadcast %884 : vector<1x256xi1> to vector<8x256xi1>
    %886 = vector.broadcast %cst_182 : f32 to vector<8x256xf32>
    %887 = arith.select %885, %882, %886 : vector<8x256xi1>, vector<8x256xf32>
    %888 = vector.extract_strided_slice %412 {offsets = [0, 37], sizes = [8, 1], strides = [1, 1]} : vector<8x49xf32> to vector<8x1xf32>
    %889 = vector.broadcast %888 : vector<8x1xf32> to vector<8x256xf32>
    %890 = arith.mulf %887, %889 : vector<8x256xf32>
    %891 = arith.addf %881, %890 : vector<8x256xf32>
    %c160_i32 = arith.constant 160 : i32
    %892 = tpu.dynamic_rotate %411 by %c160_i32 dim 1 : vector<8x256xf32>, i32 -> vector<8x256xf32>
    %893 = arith.andi %862, %42 : vector<1x256xi1>
    %cst_183 = arith.constant 0.000000e+00 : f32
    %894 = vector.shape_cast %893 : vector<1x256xi1> to vector<1x256xi1>
    %895 = vector.broadcast %894 : vector<1x256xi1> to vector<8x256xi1>
    %896 = vector.broadcast %cst_183 : f32 to vector<8x256xf32>
    %897 = arith.select %895, %892, %896 : vector<8x256xi1>, vector<8x256xf32>
    %898 = vector.extract_strided_slice %412 {offsets = [0, 38], sizes = [8, 1], strides = [1, 1]} : vector<8x49xf32> to vector<8x1xf32>
    %899 = vector.broadcast %898 : vector<8x1xf32> to vector<8x256xf32>
    %900 = arith.mulf %897, %899 : vector<8x256xf32>
    %901 = arith.addf %891, %900 : vector<8x256xf32>
    %c157_i32 = arith.constant 157 : i32
    %902 = tpu.dynamic_rotate %411 by %c157_i32 dim 1 : vector<8x256xf32>, i32 -> vector<8x256xf32>
    %903 = arith.andi %862, %499 : vector<1x256xi1>
    %cst_184 = arith.constant 0.000000e+00 : f32
    %904 = vector.shape_cast %903 : vector<1x256xi1> to vector<1x256xi1>
    %905 = vector.broadcast %904 : vector<1x256xi1> to vector<8x256xi1>
    %906 = vector.broadcast %cst_184 : f32 to vector<8x256xf32>
    %907 = arith.select %905, %902, %906 : vector<8x256xi1>, vector<8x256xf32>
    %908 = vector.extract_strided_slice %412 {offsets = [0, 39], sizes = [8, 1], strides = [1, 1]} : vector<8x49xf32> to vector<8x1xf32>
    %909 = vector.broadcast %908 : vector<8x1xf32> to vector<8x256xf32>
    %910 = arith.mulf %907, %909 : vector<8x256xf32>
    %911 = arith.addf %901, %910 : vector<8x256xf32>
    %c154_i32 = arith.constant 154 : i32
    %912 = tpu.dynamic_rotate %411 by %c154_i32 dim 1 : vector<8x256xf32>, i32 -> vector<8x256xf32>
    %913 = arith.andi %862, %518 : vector<1x256xi1>
    %cst_185 = arith.constant 0.000000e+00 : f32
    %914 = vector.shape_cast %913 : vector<1x256xi1> to vector<1x256xi1>
    %915 = vector.broadcast %914 : vector<1x256xi1> to vector<8x256xi1>
    %916 = vector.broadcast %cst_185 : f32 to vector<8x256xf32>
    %917 = arith.select %915, %912, %916 : vector<8x256xi1>, vector<8x256xf32>
    %918 = vector.extract_strided_slice %412 {offsets = [0, 40], sizes = [8, 1], strides = [1, 1]} : vector<8x49xf32> to vector<8x1xf32>
    %919 = vector.broadcast %918 : vector<8x1xf32> to vector<8x256xf32>
    %920 = arith.mulf %917, %919 : vector<8x256xf32>
    %921 = arith.addf %911, %920 : vector<8x256xf32>
    %c151_i32 = arith.constant 151 : i32
    %922 = tpu.dynamic_rotate %411 by %c151_i32 dim 1 : vector<8x256xf32>, i32 -> vector<8x256xf32>
    %923 = arith.andi %862, %537 : vector<1x256xi1>
    %cst_186 = arith.constant 0.000000e+00 : f32
    %924 = vector.shape_cast %923 : vector<1x256xi1> to vector<1x256xi1>
    %925 = vector.broadcast %924 : vector<1x256xi1> to vector<8x256xi1>
    %926 = vector.broadcast %cst_186 : f32 to vector<8x256xf32>
    %927 = arith.select %925, %922, %926 : vector<8x256xi1>, vector<8x256xf32>
    %928 = vector.extract_strided_slice %412 {offsets = [0, 41], sizes = [8, 1], strides = [1, 1]} : vector<8x49xf32> to vector<8x1xf32>
    %929 = vector.broadcast %928 : vector<8x1xf32> to vector<8x256xf32>
    %930 = arith.mulf %927, %929 : vector<8x256xf32>
    %931 = arith.addf %921, %930 : vector<8x256xf32>
    %c121_i32 = arith.constant 121 : i32
    %932 = tpu.dynamic_rotate %411 by %c121_i32 dim 1 : vector<8x256xf32>, i32 -> vector<8x256xf32>
    %c9_i32_187 = arith.constant 9 : i32
    %933 = vector.broadcast %c9_i32_187 : i32 to vector<1x256xi32>
    %934 = arith.addi %4, %933 : vector<1x256xi32>
    %c0_i32_188 = arith.constant 0 : i32
    %935 = vector.broadcast %c0_i32_188 : i32 to vector<1x256xi32>
    %936 = arith.cmpi sge, %934, %935 : vector<1x256xi32>
    %c9_i32_189 = arith.constant 9 : i32
    %937 = vector.broadcast %c9_i32_189 : i32 to vector<1x256xi32>
    %938 = arith.addi %4, %937 : vector<1x256xi32>
    %c16_i32_190 = arith.constant 16 : i32
    %939 = vector.broadcast %c16_i32_190 : i32 to vector<1x256xi32>
    %940 = arith.cmpi slt, %938, %939 : vector<1x256xi32>
    %941 = arith.andi %936, %940 : vector<1x256xi1>
    %942 = arith.andi %941, %432 : vector<1x256xi1>
    %cst_191 = arith.constant 0.000000e+00 : f32
    %943 = vector.shape_cast %942 : vector<1x256xi1> to vector<1x256xi1>
    %944 = vector.broadcast %943 : vector<1x256xi1> to vector<8x256xi1>
    %945 = vector.broadcast %cst_191 : f32 to vector<8x256xf32>
    %946 = arith.select %944, %932, %945 : vector<8x256xi1>, vector<8x256xf32>
    %947 = vector.extract_strided_slice %412 {offsets = [0, 42], sizes = [8, 1], strides = [1, 1]} : vector<8x49xf32> to vector<8x1xf32>
    %948 = vector.broadcast %947 : vector<8x1xf32> to vector<8x256xf32>
    %949 = arith.mulf %946, %948 : vector<8x256xf32>
    %950 = arith.addf %931, %949 : vector<8x256xf32>
    %c118_i32 = arith.constant 118 : i32
    %951 = tpu.dynamic_rotate %411 by %c118_i32 dim 1 : vector<8x256xf32>, i32 -> vector<8x256xf32>
    %952 = arith.andi %941, %451 : vector<1x256xi1>
    %cst_192 = arith.constant 0.000000e+00 : f32
    %953 = vector.shape_cast %952 : vector<1x256xi1> to vector<1x256xi1>
    %954 = vector.broadcast %953 : vector<1x256xi1> to vector<8x256xi1>
    %955 = vector.broadcast %cst_192 : f32 to vector<8x256xf32>
    %956 = arith.select %954, %951, %955 : vector<8x256xi1>, vector<8x256xf32>
    %957 = vector.extract_strided_slice %412 {offsets = [0, 43], sizes = [8, 1], strides = [1, 1]} : vector<8x49xf32> to vector<8x1xf32>
    %958 = vector.broadcast %957 : vector<8x1xf32> to vector<8x256xf32>
    %959 = arith.mulf %956, %958 : vector<8x256xf32>
    %960 = arith.addf %950, %959 : vector<8x256xf32>
    %c115_i32 = arith.constant 115 : i32
    %961 = tpu.dynamic_rotate %411 by %c115_i32 dim 1 : vector<8x256xf32>, i32 -> vector<8x256xf32>
    %962 = arith.andi %941, %470 : vector<1x256xi1>
    %cst_193 = arith.constant 0.000000e+00 : f32
    %963 = vector.shape_cast %962 : vector<1x256xi1> to vector<1x256xi1>
    %964 = vector.broadcast %963 : vector<1x256xi1> to vector<8x256xi1>
    %965 = vector.broadcast %cst_193 : f32 to vector<8x256xf32>
    %966 = arith.select %964, %961, %965 : vector<8x256xi1>, vector<8x256xf32>
    %967 = vector.extract_strided_slice %412 {offsets = [0, 44], sizes = [8, 1], strides = [1, 1]} : vector<8x49xf32> to vector<8x1xf32>
    %968 = vector.broadcast %967 : vector<8x1xf32> to vector<8x256xf32>
    %969 = arith.mulf %966, %968 : vector<8x256xf32>
    %970 = arith.addf %960, %969 : vector<8x256xf32>
    %c112_i32 = arith.constant 112 : i32
    %971 = tpu.dynamic_rotate %411 by %c112_i32 dim 1 : vector<8x256xf32>, i32 -> vector<8x256xf32>
    %972 = arith.andi %941, %42 : vector<1x256xi1>
    %cst_194 = arith.constant 0.000000e+00 : f32
    %973 = vector.shape_cast %972 : vector<1x256xi1> to vector<1x256xi1>
    %974 = vector.broadcast %973 : vector<1x256xi1> to vector<8x256xi1>
    %975 = vector.broadcast %cst_194 : f32 to vector<8x256xf32>
    %976 = arith.select %974, %971, %975 : vector<8x256xi1>, vector<8x256xf32>
    %977 = vector.extract_strided_slice %412 {offsets = [0, 45], sizes = [8, 1], strides = [1, 1]} : vector<8x49xf32> to vector<8x1xf32>
    %978 = vector.broadcast %977 : vector<8x1xf32> to vector<8x256xf32>
    %979 = arith.mulf %976, %978 : vector<8x256xf32>
    %980 = arith.addf %970, %979 : vector<8x256xf32>
    %c109_i32 = arith.constant 109 : i32
    %981 = tpu.dynamic_rotate %411 by %c109_i32 dim 1 : vector<8x256xf32>, i32 -> vector<8x256xf32>
    %982 = arith.andi %941, %499 : vector<1x256xi1>
    %cst_195 = arith.constant 0.000000e+00 : f32
    %983 = vector.shape_cast %982 : vector<1x256xi1> to vector<1x256xi1>
    %984 = vector.broadcast %983 : vector<1x256xi1> to vector<8x256xi1>
    %985 = vector.broadcast %cst_195 : f32 to vector<8x256xf32>
    %986 = arith.select %984, %981, %985 : vector<8x256xi1>, vector<8x256xf32>
    %987 = vector.extract_strided_slice %412 {offsets = [0, 46], sizes = [8, 1], strides = [1, 1]} : vector<8x49xf32> to vector<8x1xf32>
    %988 = vector.broadcast %987 : vector<8x1xf32> to vector<8x256xf32>
    %989 = arith.mulf %986, %988 : vector<8x256xf32>
    %990 = arith.addf %980, %989 : vector<8x256xf32>
    %c106_i32 = arith.constant 106 : i32
    %991 = tpu.dynamic_rotate %411 by %c106_i32 dim 1 : vector<8x256xf32>, i32 -> vector<8x256xf32>
    %992 = arith.andi %941, %518 : vector<1x256xi1>
    %cst_196 = arith.constant 0.000000e+00 : f32
    %993 = vector.shape_cast %992 : vector<1x256xi1> to vector<1x256xi1>
    %994 = vector.broadcast %993 : vector<1x256xi1> to vector<8x256xi1>
    %995 = vector.broadcast %cst_196 : f32 to vector<8x256xf32>
    %996 = arith.select %994, %991, %995 : vector<8x256xi1>, vector<8x256xf32>
    %997 = vector.extract_strided_slice %412 {offsets = [0, 47], sizes = [8, 1], strides = [1, 1]} : vector<8x49xf32> to vector<8x1xf32>
    %998 = vector.broadcast %997 : vector<8x1xf32> to vector<8x256xf32>
    %999 = arith.mulf %996, %998 : vector<8x256xf32>
    %1000 = arith.addf %990, %999 : vector<8x256xf32>
    %c103_i32 = arith.constant 103 : i32
    %1001 = tpu.dynamic_rotate %411 by %c103_i32 dim 1 : vector<8x256xf32>, i32 -> vector<8x256xf32>
    %1002 = arith.andi %941, %537 : vector<1x256xi1>
    %cst_197 = arith.constant 0.000000e+00 : f32
    %1003 = vector.shape_cast %1002 : vector<1x256xi1> to vector<1x256xi1>
    %1004 = vector.broadcast %1003 : vector<1x256xi1> to vector<8x256xi1>
    %1005 = vector.broadcast %cst_197 : f32 to vector<8x256xf32>
    %1006 = arith.select %1004, %1001, %1005 : vector<8x256xi1>, vector<8x256xf32>
    %1007 = vector.extract_strided_slice %412 {offsets = [0, 48], sizes = [8, 1], strides = [1, 1]} : vector<8x49xf32> to vector<8x1xf32>
    %1008 = vector.broadcast %1007 : vector<8x1xf32> to vector<8x256xf32>
    %1009 = arith.mulf %1006, %1008 : vector<8x256xf32>
    %1010 = arith.addf %1000, %1009 : vector<8x256xf32>
    %c0_198 = arith.constant 0 : index
    %c0_199 = arith.constant 0 : index
    %1011 = vector.load %arg12[%c0_198, %c0_199] : memref<8x1xf32, #tpu.memory_space<vmem>>, vector<8x1xf32>
    %1012 = vector.broadcast %1011 : vector<8x1xf32> to vector<8x256xf32>
    %1013 = arith.addf %1010, %1012 : vector<8x256xf32>
    %1014 = arith.addf %411, %1013 : vector<8x256xf32>
    %cst_200 = arith.constant dense<0.000000e+00> : vector<8xf32>
    %1015 = vector.multi_reduction <add>, %1014, %cst_200 [1] : vector<8x256xf32> to vector<8xf32>
    %1016 = vector.shape_cast %1015 : vector<8xf32> to vector<8x1xf32>
    %cst_201 = arith.constant 2.560000e+02 : f32
    %1017 = vector.broadcast %cst_201 : f32 to vector<8x1xf32>
    %1018 = arith.divf %1016, %1017 : vector<8x1xf32>
    %c0_202 = arith.constant 0 : index
    %c0_203 = arith.constant 0 : index
    %1019 = vector.load %arg13[%c0_202, %c0_203] : memref<8x8xf32, #tpu.memory_space<vmem>>, vector<8x8xf32>
    %cst_204 = arith.constant dense<0.000000e+00> : vector<8x1xf32>
    %1020 = tpu.matmul %1019, %1018, %cst_204 {dimension_numbers = #tpu.dot_dimension_numbers<[1], [0], [0], [1], [0, 0, 1, 1], [], []>} : vector<8x8xf32>, vector<8x1xf32>, vector<8x1xf32> -> vector<8x1xf32>
    %c0_205 = arith.constant 0 : index
    %c0_206 = arith.constant 0 : index
    %1021 = vector.load %arg14[%c0_205, %c0_206] : memref<8x1xf32, #tpu.memory_space<vmem>>, vector<8x1xf32>
    %1022 = arith.addf %1020, %1021 : vector<8x1xf32>
    %cst_207 = arith.constant 0.000000e+00 : f32
    %1023 = vector.broadcast %cst_207 : f32 to vector<8x1xf32>
    %1024 = arith.maximumf %1022, %1023 : vector<8x1xf32>
    %c0_208 = arith.constant 0 : index
    %c0_209 = arith.constant 0 : index
    %1025 = vector.load %arg15[%c0_208, %c0_209] : memref<8x8xf32, #tpu.memory_space<vmem>>, vector<8x8xf32>
    %cst_210 = arith.constant dense<0.000000e+00> : vector<8x1xf32>
    %1026 = tpu.matmul %1025, %1024, %cst_210 {dimension_numbers = #tpu.dot_dimension_numbers<[1], [0], [0], [1], [0, 0, 1, 1], [], []>} : vector<8x8xf32>, vector<8x1xf32>, vector<8x1xf32> -> vector<8x1xf32>
    %c0_211 = arith.constant 0 : index
    %c0_212 = arith.constant 0 : index
    %1027 = vector.load %arg16[%c0_211, %c0_212] : memref<8x1xf32, #tpu.memory_space<vmem>>, vector<8x1xf32>
    %1028 = arith.addf %1026, %1027 : vector<8x1xf32>
    %cst_213 = arith.constant dense<0.000000e+00> : vector<256xf32>
    %1029 = vector.multi_reduction <add>, %1014, %cst_213 [0] : vector<8x256xf32> to vector<256xf32>
    %1030 = vector.shape_cast %1029 : vector<256xf32> to vector<1x256xf32>
    %cst_214 = arith.constant 8.000000e+00 : f32
    %1031 = vector.broadcast %cst_214 : f32 to vector<1x256xf32>
    %1032 = arith.divf %1030, %1031 : vector<1x256xf32>
    %cst_215 = arith.constant dense<0xFF800000> : vector<256xf32>
    %1033 = vector.multi_reduction <maximumf>, %1014, %cst_215 [0] : vector<8x256xf32> to vector<256xf32>
    %1034 = vector.shape_cast %1033 : vector<256xf32> to vector<1x256xf32>
    %1035 = tpu.concatenate %1032, %1034 in 0 : vector<1x256xf32>, vector<1x256xf32> -> vector<2x256xf32>
    %c0_216 = arith.constant 0 : index
    %c0_217 = arith.constant 0 : index
    %1036 = vector.load %arg17[%c0_216, %c0_217] : memref<2x49xf32, #tpu.memory_space<vmem>>, vector<2x49xf32>
    %cst_218 = arith.constant dense<0.000000e+00> : vector<2x512xf32>
    %1037 = tpu.matmul %1035, %6, %cst_218 {dimension_numbers = #tpu.dot_dimension_numbers<[1], [0], [0], [1], [0, 0, 1, 1], [], []>} : vector<2x256xf32>, vector<256x512xf32>, vector<2x512xf32> -> vector<2x512xf32>
    %cst_219 = arith.constant 0.000000e+00 : f32
    %1038 = vector.broadcast %cst_219 : f32 to vector<2x512xf32>
    %c69_i32 = arith.constant 69 : i32
    %1039 = tpu.dynamic_rotate %1037 by %c69_i32 dim 1 : vector<2x512xf32>, i32 -> vector<2x512xf32>
    %1040 = vector.extract_strided_slice %1036 {offsets = [0, 0], sizes = [2, 1], strides = [1, 1]} : vector<2x49xf32> to vector<2x1xf32>
    %1041 = vector.broadcast %1040 : vector<2x1xf32> to vector<2x512xf32>
    %1042 = arith.mulf %1039, %1041 : vector<2x512xf32>
    %1043 = arith.addf %1038, %1042 : vector<2x512xf32>
    %c68_i32 = arith.constant 68 : i32
    %1044 = tpu.dynamic_rotate %1037 by %c68_i32 dim 1 : vector<2x512xf32>, i32 -> vector<2x512xf32>
    %1045 = vector.extract_strided_slice %1036 {offsets = [0, 1], sizes = [2, 1], strides = [1, 1]} : vector<2x49xf32> to vector<2x1xf32>
    %1046 = vector.broadcast %1045 : vector<2x1xf32> to vector<2x512xf32>
    %1047 = arith.mulf %1044, %1046 : vector<2x512xf32>
    %1048 = arith.addf %1043, %1047 : vector<2x512xf32>
    %c67_i32 = arith.constant 67 : i32
    %1049 = tpu.dynamic_rotate %1037 by %c67_i32 dim 1 : vector<2x512xf32>, i32 -> vector<2x512xf32>
    %1050 = vector.extract_strided_slice %1036 {offsets = [0, 2], sizes = [2, 1], strides = [1, 1]} : vector<2x49xf32> to vector<2x1xf32>
    %1051 = vector.broadcast %1050 : vector<2x1xf32> to vector<2x512xf32>
    %1052 = arith.mulf %1049, %1051 : vector<2x512xf32>
    %1053 = arith.addf %1048, %1052 : vector<2x512xf32>
    %c66_i32 = arith.constant 66 : i32
    %1054 = tpu.dynamic_rotate %1037 by %c66_i32 dim 1 : vector<2x512xf32>, i32 -> vector<2x512xf32>
    %1055 = vector.extract_strided_slice %1036 {offsets = [0, 3], sizes = [2, 1], strides = [1, 1]} : vector<2x49xf32> to vector<2x1xf32>
    %1056 = vector.broadcast %1055 : vector<2x1xf32> to vector<2x512xf32>
    %1057 = arith.mulf %1054, %1056 : vector<2x512xf32>
    %1058 = arith.addf %1053, %1057 : vector<2x512xf32>
    %c65_i32 = arith.constant 65 : i32
    %1059 = tpu.dynamic_rotate %1037 by %c65_i32 dim 1 : vector<2x512xf32>, i32 -> vector<2x512xf32>
    %1060 = vector.extract_strided_slice %1036 {offsets = [0, 4], sizes = [2, 1], strides = [1, 1]} : vector<2x49xf32> to vector<2x1xf32>
    %1061 = vector.broadcast %1060 : vector<2x1xf32> to vector<2x512xf32>
    %1062 = arith.mulf %1059, %1061 : vector<2x512xf32>
    %1063 = arith.addf %1058, %1062 : vector<2x512xf32>
    %c64_i32 = arith.constant 64 : i32
    %1064 = tpu.dynamic_rotate %1037 by %c64_i32 dim 1 : vector<2x512xf32>, i32 -> vector<2x512xf32>
    %1065 = vector.extract_strided_slice %1036 {offsets = [0, 5], sizes = [2, 1], strides = [1, 1]} : vector<2x49xf32> to vector<2x1xf32>
    %1066 = vector.broadcast %1065 : vector<2x1xf32> to vector<2x512xf32>
    %1067 = arith.mulf %1064, %1066 : vector<2x512xf32>
    %1068 = arith.addf %1063, %1067 : vector<2x512xf32>
    %c63_i32 = arith.constant 63 : i32
    %1069 = tpu.dynamic_rotate %1037 by %c63_i32 dim 1 : vector<2x512xf32>, i32 -> vector<2x512xf32>
    %1070 = vector.extract_strided_slice %1036 {offsets = [0, 6], sizes = [2, 1], strides = [1, 1]} : vector<2x49xf32> to vector<2x1xf32>
    %1071 = vector.broadcast %1070 : vector<2x1xf32> to vector<2x512xf32>
    %1072 = arith.mulf %1069, %1071 : vector<2x512xf32>
    %1073 = arith.addf %1068, %1072 : vector<2x512xf32>
    %c47_i32 = arith.constant 47 : i32
    %1074 = tpu.dynamic_rotate %1037 by %c47_i32 dim 1 : vector<2x512xf32>, i32 -> vector<2x512xf32>
    %1075 = vector.extract_strided_slice %1036 {offsets = [0, 7], sizes = [2, 1], strides = [1, 1]} : vector<2x49xf32> to vector<2x1xf32>
    %1076 = vector.broadcast %1075 : vector<2x1xf32> to vector<2x512xf32>
    %1077 = arith.mulf %1074, %1076 : vector<2x512xf32>
    %1078 = arith.addf %1073, %1077 : vector<2x512xf32>
    %c46_i32 = arith.constant 46 : i32
    %1079 = tpu.dynamic_rotate %1037 by %c46_i32 dim 1 : vector<2x512xf32>, i32 -> vector<2x512xf32>
    %1080 = vector.extract_strided_slice %1036 {offsets = [0, 8], sizes = [2, 1], strides = [1, 1]} : vector<2x49xf32> to vector<2x1xf32>
    %1081 = vector.broadcast %1080 : vector<2x1xf32> to vector<2x512xf32>
    %1082 = arith.mulf %1079, %1081 : vector<2x512xf32>
    %1083 = arith.addf %1078, %1082 : vector<2x512xf32>
    %c45_i32_220 = arith.constant 45 : i32
    %1084 = tpu.dynamic_rotate %1037 by %c45_i32_220 dim 1 : vector<2x512xf32>, i32 -> vector<2x512xf32>
    %1085 = vector.extract_strided_slice %1036 {offsets = [0, 9], sizes = [2, 1], strides = [1, 1]} : vector<2x49xf32> to vector<2x1xf32>
    %1086 = vector.broadcast %1085 : vector<2x1xf32> to vector<2x512xf32>
    %1087 = arith.mulf %1084, %1086 : vector<2x512xf32>
    %1088 = arith.addf %1083, %1087 : vector<2x512xf32>
    %c44_i32 = arith.constant 44 : i32
    %1089 = tpu.dynamic_rotate %1037 by %c44_i32 dim 1 : vector<2x512xf32>, i32 -> vector<2x512xf32>
    %1090 = vector.extract_strided_slice %1036 {offsets = [0, 10], sizes = [2, 1], strides = [1, 1]} : vector<2x49xf32> to vector<2x1xf32>
    %1091 = vector.broadcast %1090 : vector<2x1xf32> to vector<2x512xf32>
    %1092 = arith.mulf %1089, %1091 : vector<2x512xf32>
    %1093 = arith.addf %1088, %1092 : vector<2x512xf32>
    %c43_i32 = arith.constant 43 : i32
    %1094 = tpu.dynamic_rotate %1037 by %c43_i32 dim 1 : vector<2x512xf32>, i32 -> vector<2x512xf32>
    %1095 = vector.extract_strided_slice %1036 {offsets = [0, 11], sizes = [2, 1], strides = [1, 1]} : vector<2x49xf32> to vector<2x1xf32>
    %1096 = vector.broadcast %1095 : vector<2x1xf32> to vector<2x512xf32>
    %1097 = arith.mulf %1094, %1096 : vector<2x512xf32>
    %1098 = arith.addf %1093, %1097 : vector<2x512xf32>
    %c42_i32_221 = arith.constant 42 : i32
    %1099 = tpu.dynamic_rotate %1037 by %c42_i32_221 dim 1 : vector<2x512xf32>, i32 -> vector<2x512xf32>
    %1100 = vector.extract_strided_slice %1036 {offsets = [0, 12], sizes = [2, 1], strides = [1, 1]} : vector<2x49xf32> to vector<2x1xf32>
    %1101 = vector.broadcast %1100 : vector<2x1xf32> to vector<2x512xf32>
    %1102 = arith.mulf %1099, %1101 : vector<2x512xf32>
    %1103 = arith.addf %1098, %1102 : vector<2x512xf32>
    %c41_i32 = arith.constant 41 : i32
    %1104 = tpu.dynamic_rotate %1037 by %c41_i32 dim 1 : vector<2x512xf32>, i32 -> vector<2x512xf32>
    %1105 = vector.extract_strided_slice %1036 {offsets = [0, 13], sizes = [2, 1], strides = [1, 1]} : vector<2x49xf32> to vector<2x1xf32>
    %1106 = vector.broadcast %1105 : vector<2x1xf32> to vector<2x512xf32>
    %1107 = arith.mulf %1104, %1106 : vector<2x512xf32>
    %1108 = arith.addf %1103, %1107 : vector<2x512xf32>
    %c25_i32 = arith.constant 25 : i32
    %1109 = tpu.dynamic_rotate %1037 by %c25_i32 dim 1 : vector<2x512xf32>, i32 -> vector<2x512xf32>
    %1110 = vector.extract_strided_slice %1036 {offsets = [0, 14], sizes = [2, 1], strides = [1, 1]} : vector<2x49xf32> to vector<2x1xf32>
    %1111 = vector.broadcast %1110 : vector<2x1xf32> to vector<2x512xf32>
    %1112 = arith.mulf %1109, %1111 : vector<2x512xf32>
    %1113 = arith.addf %1108, %1112 : vector<2x512xf32>
    %c24_i32 = arith.constant 24 : i32
    %1114 = tpu.dynamic_rotate %1037 by %c24_i32 dim 1 : vector<2x512xf32>, i32 -> vector<2x512xf32>
    %1115 = vector.extract_strided_slice %1036 {offsets = [0, 15], sizes = [2, 1], strides = [1, 1]} : vector<2x49xf32> to vector<2x1xf32>
    %1116 = vector.broadcast %1115 : vector<2x1xf32> to vector<2x512xf32>
    %1117 = arith.mulf %1114, %1116 : vector<2x512xf32>
    %1118 = arith.addf %1113, %1117 : vector<2x512xf32>
    %c23_i32 = arith.constant 23 : i32
    %1119 = tpu.dynamic_rotate %1037 by %c23_i32 dim 1 : vector<2x512xf32>, i32 -> vector<2x512xf32>
    %1120 = vector.extract_strided_slice %1036 {offsets = [0, 16], sizes = [2, 1], strides = [1, 1]} : vector<2x49xf32> to vector<2x1xf32>
    %1121 = vector.broadcast %1120 : vector<2x1xf32> to vector<2x512xf32>
    %1122 = arith.mulf %1119, %1121 : vector<2x512xf32>
    %1123 = arith.addf %1118, %1122 : vector<2x512xf32>
    %c22_i32 = arith.constant 22 : i32
    %1124 = tpu.dynamic_rotate %1037 by %c22_i32 dim 1 : vector<2x512xf32>, i32 -> vector<2x512xf32>
    %1125 = vector.extract_strided_slice %1036 {offsets = [0, 17], sizes = [2, 1], strides = [1, 1]} : vector<2x49xf32> to vector<2x1xf32>
    %1126 = vector.broadcast %1125 : vector<2x1xf32> to vector<2x512xf32>
    %1127 = arith.mulf %1124, %1126 : vector<2x512xf32>
    %1128 = arith.addf %1123, %1127 : vector<2x512xf32>
    %c21_i32 = arith.constant 21 : i32
    %1129 = tpu.dynamic_rotate %1037 by %c21_i32 dim 1 : vector<2x512xf32>, i32 -> vector<2x512xf32>
    %1130 = vector.extract_strided_slice %1036 {offsets = [0, 18], sizes = [2, 1], strides = [1, 1]} : vector<2x49xf32> to vector<2x1xf32>
    %1131 = vector.broadcast %1130 : vector<2x1xf32> to vector<2x512xf32>
    %1132 = arith.mulf %1129, %1131 : vector<2x512xf32>
    %1133 = arith.addf %1128, %1132 : vector<2x512xf32>
    %c20_i32 = arith.constant 20 : i32
    %1134 = tpu.dynamic_rotate %1037 by %c20_i32 dim 1 : vector<2x512xf32>, i32 -> vector<2x512xf32>
    %1135 = vector.extract_strided_slice %1036 {offsets = [0, 19], sizes = [2, 1], strides = [1, 1]} : vector<2x49xf32> to vector<2x1xf32>
    %1136 = vector.broadcast %1135 : vector<2x1xf32> to vector<2x512xf32>
    %1137 = arith.mulf %1134, %1136 : vector<2x512xf32>
    %1138 = arith.addf %1133, %1137 : vector<2x512xf32>
    %c19_i32 = arith.constant 19 : i32
    %1139 = tpu.dynamic_rotate %1037 by %c19_i32 dim 1 : vector<2x512xf32>, i32 -> vector<2x512xf32>
    %1140 = vector.extract_strided_slice %1036 {offsets = [0, 20], sizes = [2, 1], strides = [1, 1]} : vector<2x49xf32> to vector<2x1xf32>
    %1141 = vector.broadcast %1140 : vector<2x1xf32> to vector<2x512xf32>
    %1142 = arith.mulf %1139, %1141 : vector<2x512xf32>
    %1143 = arith.addf %1138, %1142 : vector<2x512xf32>
    %c3_i32_222 = arith.constant 3 : i32
    %1144 = tpu.dynamic_rotate %1037 by %c3_i32_222 dim 1 : vector<2x512xf32>, i32 -> vector<2x512xf32>
    %1145 = vector.extract_strided_slice %1036 {offsets = [0, 21], sizes = [2, 1], strides = [1, 1]} : vector<2x49xf32> to vector<2x1xf32>
    %1146 = vector.broadcast %1145 : vector<2x1xf32> to vector<2x512xf32>
    %1147 = arith.mulf %1144, %1146 : vector<2x512xf32>
    %1148 = arith.addf %1143, %1147 : vector<2x512xf32>
    %c2_i32_223 = arith.constant 2 : i32
    %1149 = tpu.dynamic_rotate %1037 by %c2_i32_223 dim 1 : vector<2x512xf32>, i32 -> vector<2x512xf32>
    %1150 = vector.extract_strided_slice %1036 {offsets = [0, 22], sizes = [2, 1], strides = [1, 1]} : vector<2x49xf32> to vector<2x1xf32>
    %1151 = vector.broadcast %1150 : vector<2x1xf32> to vector<2x512xf32>
    %1152 = arith.mulf %1149, %1151 : vector<2x512xf32>
    %1153 = arith.addf %1148, %1152 : vector<2x512xf32>
    %c1_i32_224 = arith.constant 1 : i32
    %1154 = tpu.dynamic_rotate %1037 by %c1_i32_224 dim 1 : vector<2x512xf32>, i32 -> vector<2x512xf32>
    %1155 = vector.extract_strided_slice %1036 {offsets = [0, 23], sizes = [2, 1], strides = [1, 1]} : vector<2x49xf32> to vector<2x1xf32>
    %1156 = vector.broadcast %1155 : vector<2x1xf32> to vector<2x512xf32>
    %1157 = arith.mulf %1154, %1156 : vector<2x512xf32>
    %1158 = arith.addf %1153, %1157 : vector<2x512xf32>
    %1159 = vector.extract_strided_slice %1036 {offsets = [0, 24], sizes = [2, 1], strides = [1, 1]} : vector<2x49xf32> to vector<2x1xf32>
    %1160 = vector.broadcast %1159 : vector<2x1xf32> to vector<2x512xf32>
    %1161 = arith.mulf %1037, %1160 : vector<2x512xf32>
    %1162 = arith.addf %1158, %1161 : vector<2x512xf32>
    %c511_i32 = arith.constant 511 : i32
    %1163 = tpu.dynamic_rotate %1037 by %c511_i32 dim 1 : vector<2x512xf32>, i32 -> vector<2x512xf32>
    %1164 = vector.extract_strided_slice %1036 {offsets = [0, 25], sizes = [2, 1], strides = [1, 1]} : vector<2x49xf32> to vector<2x1xf32>
    %1165 = vector.broadcast %1164 : vector<2x1xf32> to vector<2x512xf32>
    %1166 = arith.mulf %1163, %1165 : vector<2x512xf32>
    %1167 = arith.addf %1162, %1166 : vector<2x512xf32>
    %c510_i32 = arith.constant 510 : i32
    %1168 = tpu.dynamic_rotate %1037 by %c510_i32 dim 1 : vector<2x512xf32>, i32 -> vector<2x512xf32>
    %1169 = vector.extract_strided_slice %1036 {offsets = [0, 26], sizes = [2, 1], strides = [1, 1]} : vector<2x49xf32> to vector<2x1xf32>
    %1170 = vector.broadcast %1169 : vector<2x1xf32> to vector<2x512xf32>
    %1171 = arith.mulf %1168, %1170 : vector<2x512xf32>
    %1172 = arith.addf %1167, %1171 : vector<2x512xf32>
    %c509_i32 = arith.constant 509 : i32
    %1173 = tpu.dynamic_rotate %1037 by %c509_i32 dim 1 : vector<2x512xf32>, i32 -> vector<2x512xf32>
    %1174 = vector.extract_strided_slice %1036 {offsets = [0, 27], sizes = [2, 1], strides = [1, 1]} : vector<2x49xf32> to vector<2x1xf32>
    %1175 = vector.broadcast %1174 : vector<2x1xf32> to vector<2x512xf32>
    %1176 = arith.mulf %1173, %1175 : vector<2x512xf32>
    %1177 = arith.addf %1172, %1176 : vector<2x512xf32>
    %c493_i32 = arith.constant 493 : i32
    %1178 = tpu.dynamic_rotate %1037 by %c493_i32 dim 1 : vector<2x512xf32>, i32 -> vector<2x512xf32>
    %1179 = vector.extract_strided_slice %1036 {offsets = [0, 28], sizes = [2, 1], strides = [1, 1]} : vector<2x49xf32> to vector<2x1xf32>
    %1180 = vector.broadcast %1179 : vector<2x1xf32> to vector<2x512xf32>
    %1181 = arith.mulf %1178, %1180 : vector<2x512xf32>
    %1182 = arith.addf %1177, %1181 : vector<2x512xf32>
    %c492_i32 = arith.constant 492 : i32
    %1183 = tpu.dynamic_rotate %1037 by %c492_i32 dim 1 : vector<2x512xf32>, i32 -> vector<2x512xf32>
    %1184 = vector.extract_strided_slice %1036 {offsets = [0, 29], sizes = [2, 1], strides = [1, 1]} : vector<2x49xf32> to vector<2x1xf32>
    %1185 = vector.broadcast %1184 : vector<2x1xf32> to vector<2x512xf32>
    %1186 = arith.mulf %1183, %1185 : vector<2x512xf32>
    %1187 = arith.addf %1182, %1186 : vector<2x512xf32>
    %c491_i32 = arith.constant 491 : i32
    %1188 = tpu.dynamic_rotate %1037 by %c491_i32 dim 1 : vector<2x512xf32>, i32 -> vector<2x512xf32>
    %1189 = vector.extract_strided_slice %1036 {offsets = [0, 30], sizes = [2, 1], strides = [1, 1]} : vector<2x49xf32> to vector<2x1xf32>
    %1190 = vector.broadcast %1189 : vector<2x1xf32> to vector<2x512xf32>
    %1191 = arith.mulf %1188, %1190 : vector<2x512xf32>
    %1192 = arith.addf %1187, %1191 : vector<2x512xf32>
    %c490_i32 = arith.constant 490 : i32
    %1193 = tpu.dynamic_rotate %1037 by %c490_i32 dim 1 : vector<2x512xf32>, i32 -> vector<2x512xf32>
    %1194 = vector.extract_strided_slice %1036 {offsets = [0, 31], sizes = [2, 1], strides = [1, 1]} : vector<2x49xf32> to vector<2x1xf32>
    %1195 = vector.broadcast %1194 : vector<2x1xf32> to vector<2x512xf32>
    %1196 = arith.mulf %1193, %1195 : vector<2x512xf32>
    %1197 = arith.addf %1192, %1196 : vector<2x512xf32>
    %c489_i32 = arith.constant 489 : i32
    %1198 = tpu.dynamic_rotate %1037 by %c489_i32 dim 1 : vector<2x512xf32>, i32 -> vector<2x512xf32>
    %1199 = vector.extract_strided_slice %1036 {offsets = [0, 32], sizes = [2, 1], strides = [1, 1]} : vector<2x49xf32> to vector<2x1xf32>
    %1200 = vector.broadcast %1199 : vector<2x1xf32> to vector<2x512xf32>
    %1201 = arith.mulf %1198, %1200 : vector<2x512xf32>
    %1202 = arith.addf %1197, %1201 : vector<2x512xf32>
    %c488_i32 = arith.constant 488 : i32
    %1203 = tpu.dynamic_rotate %1037 by %c488_i32 dim 1 : vector<2x512xf32>, i32 -> vector<2x512xf32>
    %1204 = vector.extract_strided_slice %1036 {offsets = [0, 33], sizes = [2, 1], strides = [1, 1]} : vector<2x49xf32> to vector<2x1xf32>
    %1205 = vector.broadcast %1204 : vector<2x1xf32> to vector<2x512xf32>
    %1206 = arith.mulf %1203, %1205 : vector<2x512xf32>
    %1207 = arith.addf %1202, %1206 : vector<2x512xf32>
    %c487_i32 = arith.constant 487 : i32
    %1208 = tpu.dynamic_rotate %1037 by %c487_i32 dim 1 : vector<2x512xf32>, i32 -> vector<2x512xf32>
    %1209 = vector.extract_strided_slice %1036 {offsets = [0, 34], sizes = [2, 1], strides = [1, 1]} : vector<2x49xf32> to vector<2x1xf32>
    %1210 = vector.broadcast %1209 : vector<2x1xf32> to vector<2x512xf32>
    %1211 = arith.mulf %1208, %1210 : vector<2x512xf32>
    %1212 = arith.addf %1207, %1211 : vector<2x512xf32>
    %c471_i32 = arith.constant 471 : i32
    %1213 = tpu.dynamic_rotate %1037 by %c471_i32 dim 1 : vector<2x512xf32>, i32 -> vector<2x512xf32>
    %1214 = vector.extract_strided_slice %1036 {offsets = [0, 35], sizes = [2, 1], strides = [1, 1]} : vector<2x49xf32> to vector<2x1xf32>
    %1215 = vector.broadcast %1214 : vector<2x1xf32> to vector<2x512xf32>
    %1216 = arith.mulf %1213, %1215 : vector<2x512xf32>
    %1217 = arith.addf %1212, %1216 : vector<2x512xf32>
    %c470_i32 = arith.constant 470 : i32
    %1218 = tpu.dynamic_rotate %1037 by %c470_i32 dim 1 : vector<2x512xf32>, i32 -> vector<2x512xf32>
    %1219 = vector.extract_strided_slice %1036 {offsets = [0, 36], sizes = [2, 1], strides = [1, 1]} : vector<2x49xf32> to vector<2x1xf32>
    %1220 = vector.broadcast %1219 : vector<2x1xf32> to vector<2x512xf32>
    %1221 = arith.mulf %1218, %1220 : vector<2x512xf32>
    %1222 = arith.addf %1217, %1221 : vector<2x512xf32>
    %c469_i32 = arith.constant 469 : i32
    %1223 = tpu.dynamic_rotate %1037 by %c469_i32 dim 1 : vector<2x512xf32>, i32 -> vector<2x512xf32>
    %1224 = vector.extract_strided_slice %1036 {offsets = [0, 37], sizes = [2, 1], strides = [1, 1]} : vector<2x49xf32> to vector<2x1xf32>
    %1225 = vector.broadcast %1224 : vector<2x1xf32> to vector<2x512xf32>
    %1226 = arith.mulf %1223, %1225 : vector<2x512xf32>
    %1227 = arith.addf %1222, %1226 : vector<2x512xf32>
    %c468_i32 = arith.constant 468 : i32
    %1228 = tpu.dynamic_rotate %1037 by %c468_i32 dim 1 : vector<2x512xf32>, i32 -> vector<2x512xf32>
    %1229 = vector.extract_strided_slice %1036 {offsets = [0, 38], sizes = [2, 1], strides = [1, 1]} : vector<2x49xf32> to vector<2x1xf32>
    %1230 = vector.broadcast %1229 : vector<2x1xf32> to vector<2x512xf32>
    %1231 = arith.mulf %1228, %1230 : vector<2x512xf32>
    %1232 = arith.addf %1227, %1231 : vector<2x512xf32>
    %c467_i32 = arith.constant 467 : i32
    %1233 = tpu.dynamic_rotate %1037 by %c467_i32 dim 1 : vector<2x512xf32>, i32 -> vector<2x512xf32>
    %1234 = vector.extract_strided_slice %1036 {offsets = [0, 39], sizes = [2, 1], strides = [1, 1]} : vector<2x49xf32> to vector<2x1xf32>
    %1235 = vector.broadcast %1234 : vector<2x1xf32> to vector<2x512xf32>
    %1236 = arith.mulf %1233, %1235 : vector<2x512xf32>
    %1237 = arith.addf %1232, %1236 : vector<2x512xf32>
    %c466_i32 = arith.constant 466 : i32
    %1238 = tpu.dynamic_rotate %1037 by %c466_i32 dim 1 : vector<2x512xf32>, i32 -> vector<2x512xf32>
    %1239 = vector.extract_strided_slice %1036 {offsets = [0, 40], sizes = [2, 1], strides = [1, 1]} : vector<2x49xf32> to vector<2x1xf32>
    %1240 = vector.broadcast %1239 : vector<2x1xf32> to vector<2x512xf32>
    %1241 = arith.mulf %1238, %1240 : vector<2x512xf32>
    %1242 = arith.addf %1237, %1241 : vector<2x512xf32>
    %c465_i32 = arith.constant 465 : i32
    %1243 = tpu.dynamic_rotate %1037 by %c465_i32 dim 1 : vector<2x512xf32>, i32 -> vector<2x512xf32>
    %1244 = vector.extract_strided_slice %1036 {offsets = [0, 41], sizes = [2, 1], strides = [1, 1]} : vector<2x49xf32> to vector<2x1xf32>
    %1245 = vector.broadcast %1244 : vector<2x1xf32> to vector<2x512xf32>
    %1246 = arith.mulf %1243, %1245 : vector<2x512xf32>
    %1247 = arith.addf %1242, %1246 : vector<2x512xf32>
    %c449_i32 = arith.constant 449 : i32
    %1248 = tpu.dynamic_rotate %1037 by %c449_i32 dim 1 : vector<2x512xf32>, i32 -> vector<2x512xf32>
    %1249 = vector.extract_strided_slice %1036 {offsets = [0, 42], sizes = [2, 1], strides = [1, 1]} : vector<2x49xf32> to vector<2x1xf32>
    %1250 = vector.broadcast %1249 : vector<2x1xf32> to vector<2x512xf32>
    %1251 = arith.mulf %1248, %1250 : vector<2x512xf32>
    %1252 = arith.addf %1247, %1251 : vector<2x512xf32>
    %c448_i32 = arith.constant 448 : i32
    %1253 = tpu.dynamic_rotate %1037 by %c448_i32 dim 1 : vector<2x512xf32>, i32 -> vector<2x512xf32>
    %1254 = vector.extract_strided_slice %1036 {offsets = [0, 43], sizes = [2, 1], strides = [1, 1]} : vector<2x49xf32> to vector<2x1xf32>
    %1255 = vector.broadcast %1254 : vector<2x1xf32> to vector<2x512xf32>
    %1256 = arith.mulf %1253, %1255 : vector<2x512xf32>
    %1257 = arith.addf %1252, %1256 : vector<2x512xf32>
    %c447_i32 = arith.constant 447 : i32
    %1258 = tpu.dynamic_rotate %1037 by %c447_i32 dim 1 : vector<2x512xf32>, i32 -> vector<2x512xf32>
    %1259 = vector.extract_strided_slice %1036 {offsets = [0, 44], sizes = [2, 1], strides = [1, 1]} : vector<2x49xf32> to vector<2x1xf32>
    %1260 = vector.broadcast %1259 : vector<2x1xf32> to vector<2x512xf32>
    %1261 = arith.mulf %1258, %1260 : vector<2x512xf32>
    %1262 = arith.addf %1257, %1261 : vector<2x512xf32>
    %c446_i32 = arith.constant 446 : i32
    %1263 = tpu.dynamic_rotate %1037 by %c446_i32 dim 1 : vector<2x512xf32>, i32 -> vector<2x512xf32>
    %1264 = vector.extract_strided_slice %1036 {offsets = [0, 45], sizes = [2, 1], strides = [1, 1]} : vector<2x49xf32> to vector<2x1xf32>
    %1265 = vector.broadcast %1264 : vector<2x1xf32> to vector<2x512xf32>
    %1266 = arith.mulf %1263, %1265 : vector<2x512xf32>
    %1267 = arith.addf %1262, %1266 : vector<2x512xf32>
    %c445_i32 = arith.constant 445 : i32
    %1268 = tpu.dynamic_rotate %1037 by %c445_i32 dim 1 : vector<2x512xf32>, i32 -> vector<2x512xf32>
    %1269 = vector.extract_strided_slice %1036 {offsets = [0, 46], sizes = [2, 1], strides = [1, 1]} : vector<2x49xf32> to vector<2x1xf32>
    %1270 = vector.broadcast %1269 : vector<2x1xf32> to vector<2x512xf32>
    %1271 = arith.mulf %1268, %1270 : vector<2x512xf32>
    %1272 = arith.addf %1267, %1271 : vector<2x512xf32>
    %c444_i32 = arith.constant 444 : i32
    %1273 = tpu.dynamic_rotate %1037 by %c444_i32 dim 1 : vector<2x512xf32>, i32 -> vector<2x512xf32>
    %1274 = vector.extract_strided_slice %1036 {offsets = [0, 47], sizes = [2, 1], strides = [1, 1]} : vector<2x49xf32> to vector<2x1xf32>
    %1275 = vector.broadcast %1274 : vector<2x1xf32> to vector<2x512xf32>
    %1276 = arith.mulf %1273, %1275 : vector<2x512xf32>
    %1277 = arith.addf %1272, %1276 : vector<2x512xf32>
    %c443_i32 = arith.constant 443 : i32
    %1278 = tpu.dynamic_rotate %1037 by %c443_i32 dim 1 : vector<2x512xf32>, i32 -> vector<2x512xf32>
    %1279 = vector.extract_strided_slice %1036 {offsets = [0, 48], sizes = [2, 1], strides = [1, 1]} : vector<2x49xf32> to vector<2x1xf32>
    %1280 = vector.broadcast %1279 : vector<2x1xf32> to vector<2x512xf32>
    %1281 = arith.mulf %1278, %1280 : vector<2x512xf32>
    %1282 = arith.addf %1277, %1281 : vector<2x512xf32>
    %cst_225 = arith.constant dense<0.000000e+00> : vector<512xf32>
    %1283 = vector.multi_reduction <add>, %1282, %cst_225 [0] : vector<2x512xf32> to vector<512xf32>
    %1284 = vector.shape_cast %1283 : vector<512xf32> to vector<1x512xf32>
    %cst_226 = arith.constant dense<0.000000e+00> : vector<1x256xf32>
    %1285 = tpu.matmul %1284, %7, %cst_226 {dimension_numbers = #tpu.dot_dimension_numbers<[1], [0], [0], [1], [0, 0, 1, 1], [], []>} : vector<1x512xf32>, vector<512x256xf32>, vector<1x256xf32> -> vector<1x256xf32>
    %c0_227 = arith.constant 0 : index
    %c0_228 = arith.constant 0 : index
    %1286 = vector.load %arg18[%c0_227, %c0_228] : memref<1x1xf32, #tpu.memory_space<vmem>>, vector<1x1xf32>
    %1287 = vector.broadcast %1286 : vector<1x1xf32> to vector<1x256xf32>
    %1288 = arith.addf %1285, %1287 : vector<1x256xf32>
    %1289 = vector.broadcast %1288 : vector<1x256xf32> to vector<8x256xf32>
    %1290 = vector.broadcast %1028 : vector<8x1xf32> to vector<8x256xf32>
    %1291 = arith.addf %1289, %1290 : vector<8x256xf32>
    %1292 = tpu.concatenate %1014, %1291 in 0 : vector<8x256xf32>, vector<8x256xf32> -> vector<16x256xf32>
    %c0_229 = arith.constant 0 : index
    %c0_230 = arith.constant 0 : index
    %1293 = vector.load %arg19[%c0_229, %c0_230] : memref<16x49xf32, #tpu.memory_space<vmem>>, vector<16x49xf32>
    %cst_231 = arith.constant dense<0.000000e+00> : vector<16x512xf32>
    %1294 = tpu.matmul %1292, %6, %cst_231 {dimension_numbers = #tpu.dot_dimension_numbers<[1], [0], [0], [1], [0, 0, 1, 1], [], []>} : vector<16x256xf32>, vector<256x512xf32>, vector<16x512xf32> -> vector<16x512xf32>
    %cst_232 = arith.constant 0.000000e+00 : f32
    %1295 = vector.broadcast %cst_232 : f32 to vector<16x512xf32>
    %c69_i32_233 = arith.constant 69 : i32
    %1296 = tpu.dynamic_rotate %1294 by %c69_i32_233 dim 1 : vector<16x512xf32>, i32 -> vector<16x512xf32>
    %1297 = vector.extract_strided_slice %1293 {offsets = [0, 0], sizes = [16, 1], strides = [1, 1]} : vector<16x49xf32> to vector<16x1xf32>
    %1298 = vector.broadcast %1297 : vector<16x1xf32> to vector<16x512xf32>
    %1299 = arith.mulf %1296, %1298 : vector<16x512xf32>
    %1300 = arith.addf %1295, %1299 : vector<16x512xf32>
    %c68_i32_234 = arith.constant 68 : i32
    %1301 = tpu.dynamic_rotate %1294 by %c68_i32_234 dim 1 : vector<16x512xf32>, i32 -> vector<16x512xf32>
    %1302 = vector.extract_strided_slice %1293 {offsets = [0, 1], sizes = [16, 1], strides = [1, 1]} : vector<16x49xf32> to vector<16x1xf32>
    %1303 = vector.broadcast %1302 : vector<16x1xf32> to vector<16x512xf32>
    %1304 = arith.mulf %1301, %1303 : vector<16x512xf32>
    %1305 = arith.addf %1300, %1304 : vector<16x512xf32>
    %c67_i32_235 = arith.constant 67 : i32
    %1306 = tpu.dynamic_rotate %1294 by %c67_i32_235 dim 1 : vector<16x512xf32>, i32 -> vector<16x512xf32>
    %1307 = vector.extract_strided_slice %1293 {offsets = [0, 2], sizes = [16, 1], strides = [1, 1]} : vector<16x49xf32> to vector<16x1xf32>
    %1308 = vector.broadcast %1307 : vector<16x1xf32> to vector<16x512xf32>
    %1309 = arith.mulf %1306, %1308 : vector<16x512xf32>
    %1310 = arith.addf %1305, %1309 : vector<16x512xf32>
    %c66_i32_236 = arith.constant 66 : i32
    %1311 = tpu.dynamic_rotate %1294 by %c66_i32_236 dim 1 : vector<16x512xf32>, i32 -> vector<16x512xf32>
    %1312 = vector.extract_strided_slice %1293 {offsets = [0, 3], sizes = [16, 1], strides = [1, 1]} : vector<16x49xf32> to vector<16x1xf32>
    %1313 = vector.broadcast %1312 : vector<16x1xf32> to vector<16x512xf32>
    %1314 = arith.mulf %1311, %1313 : vector<16x512xf32>
    %1315 = arith.addf %1310, %1314 : vector<16x512xf32>
    %c65_i32_237 = arith.constant 65 : i32
    %1316 = tpu.dynamic_rotate %1294 by %c65_i32_237 dim 1 : vector<16x512xf32>, i32 -> vector<16x512xf32>
    %1317 = vector.extract_strided_slice %1293 {offsets = [0, 4], sizes = [16, 1], strides = [1, 1]} : vector<16x49xf32> to vector<16x1xf32>
    %1318 = vector.broadcast %1317 : vector<16x1xf32> to vector<16x512xf32>
    %1319 = arith.mulf %1316, %1318 : vector<16x512xf32>
    %1320 = arith.addf %1315, %1319 : vector<16x512xf32>
    %c64_i32_238 = arith.constant 64 : i32
    %1321 = tpu.dynamic_rotate %1294 by %c64_i32_238 dim 1 : vector<16x512xf32>, i32 -> vector<16x512xf32>
    %1322 = vector.extract_strided_slice %1293 {offsets = [0, 5], sizes = [16, 1], strides = [1, 1]} : vector<16x49xf32> to vector<16x1xf32>
    %1323 = vector.broadcast %1322 : vector<16x1xf32> to vector<16x512xf32>
    %1324 = arith.mulf %1321, %1323 : vector<16x512xf32>
    %1325 = arith.addf %1320, %1324 : vector<16x512xf32>
    %c63_i32_239 = arith.constant 63 : i32
    %1326 = tpu.dynamic_rotate %1294 by %c63_i32_239 dim 1 : vector<16x512xf32>, i32 -> vector<16x512xf32>
    %1327 = vector.extract_strided_slice %1293 {offsets = [0, 6], sizes = [16, 1], strides = [1, 1]} : vector<16x49xf32> to vector<16x1xf32>
    %1328 = vector.broadcast %1327 : vector<16x1xf32> to vector<16x512xf32>
    %1329 = arith.mulf %1326, %1328 : vector<16x512xf32>
    %1330 = arith.addf %1325, %1329 : vector<16x512xf32>
    %c47_i32_240 = arith.constant 47 : i32
    %1331 = tpu.dynamic_rotate %1294 by %c47_i32_240 dim 1 : vector<16x512xf32>, i32 -> vector<16x512xf32>
    %1332 = vector.extract_strided_slice %1293 {offsets = [0, 7], sizes = [16, 1], strides = [1, 1]} : vector<16x49xf32> to vector<16x1xf32>
    %1333 = vector.broadcast %1332 : vector<16x1xf32> to vector<16x512xf32>
    %1334 = arith.mulf %1331, %1333 : vector<16x512xf32>
    %1335 = arith.addf %1330, %1334 : vector<16x512xf32>
    %c46_i32_241 = arith.constant 46 : i32
    %1336 = tpu.dynamic_rotate %1294 by %c46_i32_241 dim 1 : vector<16x512xf32>, i32 -> vector<16x512xf32>
    %1337 = vector.extract_strided_slice %1293 {offsets = [0, 8], sizes = [16, 1], strides = [1, 1]} : vector<16x49xf32> to vector<16x1xf32>
    %1338 = vector.broadcast %1337 : vector<16x1xf32> to vector<16x512xf32>
    %1339 = arith.mulf %1336, %1338 : vector<16x512xf32>
    %1340 = arith.addf %1335, %1339 : vector<16x512xf32>
    %c45_i32_242 = arith.constant 45 : i32
    %1341 = tpu.dynamic_rotate %1294 by %c45_i32_242 dim 1 : vector<16x512xf32>, i32 -> vector<16x512xf32>
    %1342 = vector.extract_strided_slice %1293 {offsets = [0, 9], sizes = [16, 1], strides = [1, 1]} : vector<16x49xf32> to vector<16x1xf32>
    %1343 = vector.broadcast %1342 : vector<16x1xf32> to vector<16x512xf32>
    %1344 = arith.mulf %1341, %1343 : vector<16x512xf32>
    %1345 = arith.addf %1340, %1344 : vector<16x512xf32>
    %c44_i32_243 = arith.constant 44 : i32
    %1346 = tpu.dynamic_rotate %1294 by %c44_i32_243 dim 1 : vector<16x512xf32>, i32 -> vector<16x512xf32>
    %1347 = vector.extract_strided_slice %1293 {offsets = [0, 10], sizes = [16, 1], strides = [1, 1]} : vector<16x49xf32> to vector<16x1xf32>
    %1348 = vector.broadcast %1347 : vector<16x1xf32> to vector<16x512xf32>
    %1349 = arith.mulf %1346, %1348 : vector<16x512xf32>
    %1350 = arith.addf %1345, %1349 : vector<16x512xf32>
    %c43_i32_244 = arith.constant 43 : i32
    %1351 = tpu.dynamic_rotate %1294 by %c43_i32_244 dim 1 : vector<16x512xf32>, i32 -> vector<16x512xf32>
    %1352 = vector.extract_strided_slice %1293 {offsets = [0, 11], sizes = [16, 1], strides = [1, 1]} : vector<16x49xf32> to vector<16x1xf32>
    %1353 = vector.broadcast %1352 : vector<16x1xf32> to vector<16x512xf32>
    %1354 = arith.mulf %1351, %1353 : vector<16x512xf32>
    %1355 = arith.addf %1350, %1354 : vector<16x512xf32>
    %c42_i32_245 = arith.constant 42 : i32
    %1356 = tpu.dynamic_rotate %1294 by %c42_i32_245 dim 1 : vector<16x512xf32>, i32 -> vector<16x512xf32>
    %1357 = vector.extract_strided_slice %1293 {offsets = [0, 12], sizes = [16, 1], strides = [1, 1]} : vector<16x49xf32> to vector<16x1xf32>
    %1358 = vector.broadcast %1357 : vector<16x1xf32> to vector<16x512xf32>
    %1359 = arith.mulf %1356, %1358 : vector<16x512xf32>
    %1360 = arith.addf %1355, %1359 : vector<16x512xf32>
    %c41_i32_246 = arith.constant 41 : i32
    %1361 = tpu.dynamic_rotate %1294 by %c41_i32_246 dim 1 : vector<16x512xf32>, i32 -> vector<16x512xf32>
    %1362 = vector.extract_strided_slice %1293 {offsets = [0, 13], sizes = [16, 1], strides = [1, 1]} : vector<16x49xf32> to vector<16x1xf32>
    %1363 = vector.broadcast %1362 : vector<16x1xf32> to vector<16x512xf32>
    %1364 = arith.mulf %1361, %1363 : vector<16x512xf32>
    %1365 = arith.addf %1360, %1364 : vector<16x512xf32>
    %c25_i32_247 = arith.constant 25 : i32
    %1366 = tpu.dynamic_rotate %1294 by %c25_i32_247 dim 1 : vector<16x512xf32>, i32 -> vector<16x512xf32>
    %1367 = vector.extract_strided_slice %1293 {offsets = [0, 14], sizes = [16, 1], strides = [1, 1]} : vector<16x49xf32> to vector<16x1xf32>
    %1368 = vector.broadcast %1367 : vector<16x1xf32> to vector<16x512xf32>
    %1369 = arith.mulf %1366, %1368 : vector<16x512xf32>
    %1370 = arith.addf %1365, %1369 : vector<16x512xf32>
    %c24_i32_248 = arith.constant 24 : i32
    %1371 = tpu.dynamic_rotate %1294 by %c24_i32_248 dim 1 : vector<16x512xf32>, i32 -> vector<16x512xf32>
    %1372 = vector.extract_strided_slice %1293 {offsets = [0, 15], sizes = [16, 1], strides = [1, 1]} : vector<16x49xf32> to vector<16x1xf32>
    %1373 = vector.broadcast %1372 : vector<16x1xf32> to vector<16x512xf32>
    %1374 = arith.mulf %1371, %1373 : vector<16x512xf32>
    %1375 = arith.addf %1370, %1374 : vector<16x512xf32>
    %c23_i32_249 = arith.constant 23 : i32
    %1376 = tpu.dynamic_rotate %1294 by %c23_i32_249 dim 1 : vector<16x512xf32>, i32 -> vector<16x512xf32>
    %1377 = vector.extract_strided_slice %1293 {offsets = [0, 16], sizes = [16, 1], strides = [1, 1]} : vector<16x49xf32> to vector<16x1xf32>
    %1378 = vector.broadcast %1377 : vector<16x1xf32> to vector<16x512xf32>
    %1379 = arith.mulf %1376, %1378 : vector<16x512xf32>
    %1380 = arith.addf %1375, %1379 : vector<16x512xf32>
    %c22_i32_250 = arith.constant 22 : i32
    %1381 = tpu.dynamic_rotate %1294 by %c22_i32_250 dim 1 : vector<16x512xf32>, i32 -> vector<16x512xf32>
    %1382 = vector.extract_strided_slice %1293 {offsets = [0, 17], sizes = [16, 1], strides = [1, 1]} : vector<16x49xf32> to vector<16x1xf32>
    %1383 = vector.broadcast %1382 : vector<16x1xf32> to vector<16x512xf32>
    %1384 = arith.mulf %1381, %1383 : vector<16x512xf32>
    %1385 = arith.addf %1380, %1384 : vector<16x512xf32>
    %c21_i32_251 = arith.constant 21 : i32
    %1386 = tpu.dynamic_rotate %1294 by %c21_i32_251 dim 1 : vector<16x512xf32>, i32 -> vector<16x512xf32>
    %1387 = vector.extract_strided_slice %1293 {offsets = [0, 18], sizes = [16, 1], strides = [1, 1]} : vector<16x49xf32> to vector<16x1xf32>
    %1388 = vector.broadcast %1387 : vector<16x1xf32> to vector<16x512xf32>
    %1389 = arith.mulf %1386, %1388 : vector<16x512xf32>
    %1390 = arith.addf %1385, %1389 : vector<16x512xf32>
    %c20_i32_252 = arith.constant 20 : i32
    %1391 = tpu.dynamic_rotate %1294 by %c20_i32_252 dim 1 : vector<16x512xf32>, i32 -> vector<16x512xf32>
    %1392 = vector.extract_strided_slice %1293 {offsets = [0, 19], sizes = [16, 1], strides = [1, 1]} : vector<16x49xf32> to vector<16x1xf32>
    %1393 = vector.broadcast %1392 : vector<16x1xf32> to vector<16x512xf32>
    %1394 = arith.mulf %1391, %1393 : vector<16x512xf32>
    %1395 = arith.addf %1390, %1394 : vector<16x512xf32>
    %c19_i32_253 = arith.constant 19 : i32
    %1396 = tpu.dynamic_rotate %1294 by %c19_i32_253 dim 1 : vector<16x512xf32>, i32 -> vector<16x512xf32>
    %1397 = vector.extract_strided_slice %1293 {offsets = [0, 20], sizes = [16, 1], strides = [1, 1]} : vector<16x49xf32> to vector<16x1xf32>
    %1398 = vector.broadcast %1397 : vector<16x1xf32> to vector<16x512xf32>
    %1399 = arith.mulf %1396, %1398 : vector<16x512xf32>
    %1400 = arith.addf %1395, %1399 : vector<16x512xf32>
    %c3_i32_254 = arith.constant 3 : i32
    %1401 = tpu.dynamic_rotate %1294 by %c3_i32_254 dim 1 : vector<16x512xf32>, i32 -> vector<16x512xf32>
    %1402 = vector.extract_strided_slice %1293 {offsets = [0, 21], sizes = [16, 1], strides = [1, 1]} : vector<16x49xf32> to vector<16x1xf32>
    %1403 = vector.broadcast %1402 : vector<16x1xf32> to vector<16x512xf32>
    %1404 = arith.mulf %1401, %1403 : vector<16x512xf32>
    %1405 = arith.addf %1400, %1404 : vector<16x512xf32>
    %c2_i32_255 = arith.constant 2 : i32
    %1406 = tpu.dynamic_rotate %1294 by %c2_i32_255 dim 1 : vector<16x512xf32>, i32 -> vector<16x512xf32>
    %1407 = vector.extract_strided_slice %1293 {offsets = [0, 22], sizes = [16, 1], strides = [1, 1]} : vector<16x49xf32> to vector<16x1xf32>
    %1408 = vector.broadcast %1407 : vector<16x1xf32> to vector<16x512xf32>
    %1409 = arith.mulf %1406, %1408 : vector<16x512xf32>
    %1410 = arith.addf %1405, %1409 : vector<16x512xf32>
    %c1_i32_256 = arith.constant 1 : i32
    %1411 = tpu.dynamic_rotate %1294 by %c1_i32_256 dim 1 : vector<16x512xf32>, i32 -> vector<16x512xf32>
    %1412 = vector.extract_strided_slice %1293 {offsets = [0, 23], sizes = [16, 1], strides = [1, 1]} : vector<16x49xf32> to vector<16x1xf32>
    %1413 = vector.broadcast %1412 : vector<16x1xf32> to vector<16x512xf32>
    %1414 = arith.mulf %1411, %1413 : vector<16x512xf32>
    %1415 = arith.addf %1410, %1414 : vector<16x512xf32>
    %1416 = vector.extract_strided_slice %1293 {offsets = [0, 24], sizes = [16, 1], strides = [1, 1]} : vector<16x49xf32> to vector<16x1xf32>
    %1417 = vector.broadcast %1416 : vector<16x1xf32> to vector<16x512xf32>
    %1418 = arith.mulf %1294, %1417 : vector<16x512xf32>
    %1419 = arith.addf %1415, %1418 : vector<16x512xf32>
    %c511_i32_257 = arith.constant 511 : i32
    %1420 = tpu.dynamic_rotate %1294 by %c511_i32_257 dim 1 : vector<16x512xf32>, i32 -> vector<16x512xf32>
    %1421 = vector.extract_strided_slice %1293 {offsets = [0, 25], sizes = [16, 1], strides = [1, 1]} : vector<16x49xf32> to vector<16x1xf32>
    %1422 = vector.broadcast %1421 : vector<16x1xf32> to vector<16x512xf32>
    %1423 = arith.mulf %1420, %1422 : vector<16x512xf32>
    %1424 = arith.addf %1419, %1423 : vector<16x512xf32>
    %c510_i32_258 = arith.constant 510 : i32
    %1425 = tpu.dynamic_rotate %1294 by %c510_i32_258 dim 1 : vector<16x512xf32>, i32 -> vector<16x512xf32>
    %1426 = vector.extract_strided_slice %1293 {offsets = [0, 26], sizes = [16, 1], strides = [1, 1]} : vector<16x49xf32> to vector<16x1xf32>
    %1427 = vector.broadcast %1426 : vector<16x1xf32> to vector<16x512xf32>
    %1428 = arith.mulf %1425, %1427 : vector<16x512xf32>
    %1429 = arith.addf %1424, %1428 : vector<16x512xf32>
    %c509_i32_259 = arith.constant 509 : i32
    %1430 = tpu.dynamic_rotate %1294 by %c509_i32_259 dim 1 : vector<16x512xf32>, i32 -> vector<16x512xf32>
    %1431 = vector.extract_strided_slice %1293 {offsets = [0, 27], sizes = [16, 1], strides = [1, 1]} : vector<16x49xf32> to vector<16x1xf32>
    %1432 = vector.broadcast %1431 : vector<16x1xf32> to vector<16x512xf32>
    %1433 = arith.mulf %1430, %1432 : vector<16x512xf32>
    %1434 = arith.addf %1429, %1433 : vector<16x512xf32>
    %c493_i32_260 = arith.constant 493 : i32
    %1435 = tpu.dynamic_rotate %1294 by %c493_i32_260 dim 1 : vector<16x512xf32>, i32 -> vector<16x512xf32>
    %1436 = vector.extract_strided_slice %1293 {offsets = [0, 28], sizes = [16, 1], strides = [1, 1]} : vector<16x49xf32> to vector<16x1xf32>
    %1437 = vector.broadcast %1436 : vector<16x1xf32> to vector<16x512xf32>
    %1438 = arith.mulf %1435, %1437 : vector<16x512xf32>
    %1439 = arith.addf %1434, %1438 : vector<16x512xf32>
    %c492_i32_261 = arith.constant 492 : i32
    %1440 = tpu.dynamic_rotate %1294 by %c492_i32_261 dim 1 : vector<16x512xf32>, i32 -> vector<16x512xf32>
    %1441 = vector.extract_strided_slice %1293 {offsets = [0, 29], sizes = [16, 1], strides = [1, 1]} : vector<16x49xf32> to vector<16x1xf32>
    %1442 = vector.broadcast %1441 : vector<16x1xf32> to vector<16x512xf32>
    %1443 = arith.mulf %1440, %1442 : vector<16x512xf32>
    %1444 = arith.addf %1439, %1443 : vector<16x512xf32>
    %c491_i32_262 = arith.constant 491 : i32
    %1445 = tpu.dynamic_rotate %1294 by %c491_i32_262 dim 1 : vector<16x512xf32>, i32 -> vector<16x512xf32>
    %1446 = vector.extract_strided_slice %1293 {offsets = [0, 30], sizes = [16, 1], strides = [1, 1]} : vector<16x49xf32> to vector<16x1xf32>
    %1447 = vector.broadcast %1446 : vector<16x1xf32> to vector<16x512xf32>
    %1448 = arith.mulf %1445, %1447 : vector<16x512xf32>
    %1449 = arith.addf %1444, %1448 : vector<16x512xf32>
    %c490_i32_263 = arith.constant 490 : i32
    %1450 = tpu.dynamic_rotate %1294 by %c490_i32_263 dim 1 : vector<16x512xf32>, i32 -> vector<16x512xf32>
    %1451 = vector.extract_strided_slice %1293 {offsets = [0, 31], sizes = [16, 1], strides = [1, 1]} : vector<16x49xf32> to vector<16x1xf32>
    %1452 = vector.broadcast %1451 : vector<16x1xf32> to vector<16x512xf32>
    %1453 = arith.mulf %1450, %1452 : vector<16x512xf32>
    %1454 = arith.addf %1449, %1453 : vector<16x512xf32>
    %c489_i32_264 = arith.constant 489 : i32
    %1455 = tpu.dynamic_rotate %1294 by %c489_i32_264 dim 1 : vector<16x512xf32>, i32 -> vector<16x512xf32>
    %1456 = vector.extract_strided_slice %1293 {offsets = [0, 32], sizes = [16, 1], strides = [1, 1]} : vector<16x49xf32> to vector<16x1xf32>
    %1457 = vector.broadcast %1456 : vector<16x1xf32> to vector<16x512xf32>
    %1458 = arith.mulf %1455, %1457 : vector<16x512xf32>
    %1459 = arith.addf %1454, %1458 : vector<16x512xf32>
    %c488_i32_265 = arith.constant 488 : i32
    %1460 = tpu.dynamic_rotate %1294 by %c488_i32_265 dim 1 : vector<16x512xf32>, i32 -> vector<16x512xf32>
    %1461 = vector.extract_strided_slice %1293 {offsets = [0, 33], sizes = [16, 1], strides = [1, 1]} : vector<16x49xf32> to vector<16x1xf32>
    %1462 = vector.broadcast %1461 : vector<16x1xf32> to vector<16x512xf32>
    %1463 = arith.mulf %1460, %1462 : vector<16x512xf32>
    %1464 = arith.addf %1459, %1463 : vector<16x512xf32>
    %c487_i32_266 = arith.constant 487 : i32
    %1465 = tpu.dynamic_rotate %1294 by %c487_i32_266 dim 1 : vector<16x512xf32>, i32 -> vector<16x512xf32>
    %1466 = vector.extract_strided_slice %1293 {offsets = [0, 34], sizes = [16, 1], strides = [1, 1]} : vector<16x49xf32> to vector<16x1xf32>
    %1467 = vector.broadcast %1466 : vector<16x1xf32> to vector<16x512xf32>
    %1468 = arith.mulf %1465, %1467 : vector<16x512xf32>
    %1469 = arith.addf %1464, %1468 : vector<16x512xf32>
    %c471_i32_267 = arith.constant 471 : i32
    %1470 = tpu.dynamic_rotate %1294 by %c471_i32_267 dim 1 : vector<16x512xf32>, i32 -> vector<16x512xf32>
    %1471 = vector.extract_strided_slice %1293 {offsets = [0, 35], sizes = [16, 1], strides = [1, 1]} : vector<16x49xf32> to vector<16x1xf32>
    %1472 = vector.broadcast %1471 : vector<16x1xf32> to vector<16x512xf32>
    %1473 = arith.mulf %1470, %1472 : vector<16x512xf32>
    %1474 = arith.addf %1469, %1473 : vector<16x512xf32>
    %c470_i32_268 = arith.constant 470 : i32
    %1475 = tpu.dynamic_rotate %1294 by %c470_i32_268 dim 1 : vector<16x512xf32>, i32 -> vector<16x512xf32>
    %1476 = vector.extract_strided_slice %1293 {offsets = [0, 36], sizes = [16, 1], strides = [1, 1]} : vector<16x49xf32> to vector<16x1xf32>
    %1477 = vector.broadcast %1476 : vector<16x1xf32> to vector<16x512xf32>
    %1478 = arith.mulf %1475, %1477 : vector<16x512xf32>
    %1479 = arith.addf %1474, %1478 : vector<16x512xf32>
    %c469_i32_269 = arith.constant 469 : i32
    %1480 = tpu.dynamic_rotate %1294 by %c469_i32_269 dim 1 : vector<16x512xf32>, i32 -> vector<16x512xf32>
    %1481 = vector.extract_strided_slice %1293 {offsets = [0, 37], sizes = [16, 1], strides = [1, 1]} : vector<16x49xf32> to vector<16x1xf32>
    %1482 = vector.broadcast %1481 : vector<16x1xf32> to vector<16x512xf32>
    %1483 = arith.mulf %1480, %1482 : vector<16x512xf32>
    %1484 = arith.addf %1479, %1483 : vector<16x512xf32>
    %c468_i32_270 = arith.constant 468 : i32
    %1485 = tpu.dynamic_rotate %1294 by %c468_i32_270 dim 1 : vector<16x512xf32>, i32 -> vector<16x512xf32>
    %1486 = vector.extract_strided_slice %1293 {offsets = [0, 38], sizes = [16, 1], strides = [1, 1]} : vector<16x49xf32> to vector<16x1xf32>
    %1487 = vector.broadcast %1486 : vector<16x1xf32> to vector<16x512xf32>
    %1488 = arith.mulf %1485, %1487 : vector<16x512xf32>
    %1489 = arith.addf %1484, %1488 : vector<16x512xf32>
    %c467_i32_271 = arith.constant 467 : i32
    %1490 = tpu.dynamic_rotate %1294 by %c467_i32_271 dim 1 : vector<16x512xf32>, i32 -> vector<16x512xf32>
    %1491 = vector.extract_strided_slice %1293 {offsets = [0, 39], sizes = [16, 1], strides = [1, 1]} : vector<16x49xf32> to vector<16x1xf32>
    %1492 = vector.broadcast %1491 : vector<16x1xf32> to vector<16x512xf32>
    %1493 = arith.mulf %1490, %1492 : vector<16x512xf32>
    %1494 = arith.addf %1489, %1493 : vector<16x512xf32>
    %c466_i32_272 = arith.constant 466 : i32
    %1495 = tpu.dynamic_rotate %1294 by %c466_i32_272 dim 1 : vector<16x512xf32>, i32 -> vector<16x512xf32>
    %1496 = vector.extract_strided_slice %1293 {offsets = [0, 40], sizes = [16, 1], strides = [1, 1]} : vector<16x49xf32> to vector<16x1xf32>
    %1497 = vector.broadcast %1496 : vector<16x1xf32> to vector<16x512xf32>
    %1498 = arith.mulf %1495, %1497 : vector<16x512xf32>
    %1499 = arith.addf %1494, %1498 : vector<16x512xf32>
    %c465_i32_273 = arith.constant 465 : i32
    %1500 = tpu.dynamic_rotate %1294 by %c465_i32_273 dim 1 : vector<16x512xf32>, i32 -> vector<16x512xf32>
    %1501 = vector.extract_strided_slice %1293 {offsets = [0, 41], sizes = [16, 1], strides = [1, 1]} : vector<16x49xf32> to vector<16x1xf32>
    %1502 = vector.broadcast %1501 : vector<16x1xf32> to vector<16x512xf32>
    %1503 = arith.mulf %1500, %1502 : vector<16x512xf32>
    %1504 = arith.addf %1499, %1503 : vector<16x512xf32>
    %c449_i32_274 = arith.constant 449 : i32
    %1505 = tpu.dynamic_rotate %1294 by %c449_i32_274 dim 1 : vector<16x512xf32>, i32 -> vector<16x512xf32>
    %1506 = vector.extract_strided_slice %1293 {offsets = [0, 42], sizes = [16, 1], strides = [1, 1]} : vector<16x49xf32> to vector<16x1xf32>
    %1507 = vector.broadcast %1506 : vector<16x1xf32> to vector<16x512xf32>
    %1508 = arith.mulf %1505, %1507 : vector<16x512xf32>
    %1509 = arith.addf %1504, %1508 : vector<16x512xf32>
    %c448_i32_275 = arith.constant 448 : i32
    %1510 = tpu.dynamic_rotate %1294 by %c448_i32_275 dim 1 : vector<16x512xf32>, i32 -> vector<16x512xf32>
    %1511 = vector.extract_strided_slice %1293 {offsets = [0, 43], sizes = [16, 1], strides = [1, 1]} : vector<16x49xf32> to vector<16x1xf32>
    %1512 = vector.broadcast %1511 : vector<16x1xf32> to vector<16x512xf32>
    %1513 = arith.mulf %1510, %1512 : vector<16x512xf32>
    %1514 = arith.addf %1509, %1513 : vector<16x512xf32>
    %c447_i32_276 = arith.constant 447 : i32
    %1515 = tpu.dynamic_rotate %1294 by %c447_i32_276 dim 1 : vector<16x512xf32>, i32 -> vector<16x512xf32>
    %1516 = vector.extract_strided_slice %1293 {offsets = [0, 44], sizes = [16, 1], strides = [1, 1]} : vector<16x49xf32> to vector<16x1xf32>
    %1517 = vector.broadcast %1516 : vector<16x1xf32> to vector<16x512xf32>
    %1518 = arith.mulf %1515, %1517 : vector<16x512xf32>
    %1519 = arith.addf %1514, %1518 : vector<16x512xf32>
    %c446_i32_277 = arith.constant 446 : i32
    %1520 = tpu.dynamic_rotate %1294 by %c446_i32_277 dim 1 : vector<16x512xf32>, i32 -> vector<16x512xf32>
    %1521 = vector.extract_strided_slice %1293 {offsets = [0, 45], sizes = [16, 1], strides = [1, 1]} : vector<16x49xf32> to vector<16x1xf32>
    %1522 = vector.broadcast %1521 : vector<16x1xf32> to vector<16x512xf32>
    %1523 = arith.mulf %1520, %1522 : vector<16x512xf32>
    %1524 = arith.addf %1519, %1523 : vector<16x512xf32>
    %c445_i32_278 = arith.constant 445 : i32
    %1525 = tpu.dynamic_rotate %1294 by %c445_i32_278 dim 1 : vector<16x512xf32>, i32 -> vector<16x512xf32>
    %1526 = vector.extract_strided_slice %1293 {offsets = [0, 46], sizes = [16, 1], strides = [1, 1]} : vector<16x49xf32> to vector<16x1xf32>
    %1527 = vector.broadcast %1526 : vector<16x1xf32> to vector<16x512xf32>
    %1528 = arith.mulf %1525, %1527 : vector<16x512xf32>
    %1529 = arith.addf %1524, %1528 : vector<16x512xf32>
    %c444_i32_279 = arith.constant 444 : i32
    %1530 = tpu.dynamic_rotate %1294 by %c444_i32_279 dim 1 : vector<16x512xf32>, i32 -> vector<16x512xf32>
    %1531 = vector.extract_strided_slice %1293 {offsets = [0, 47], sizes = [16, 1], strides = [1, 1]} : vector<16x49xf32> to vector<16x1xf32>
    %1532 = vector.broadcast %1531 : vector<16x1xf32> to vector<16x512xf32>
    %1533 = arith.mulf %1530, %1532 : vector<16x512xf32>
    %1534 = arith.addf %1529, %1533 : vector<16x512xf32>
    %c443_i32_280 = arith.constant 443 : i32
    %1535 = tpu.dynamic_rotate %1294 by %c443_i32_280 dim 1 : vector<16x512xf32>, i32 -> vector<16x512xf32>
    %1536 = vector.extract_strided_slice %1293 {offsets = [0, 48], sizes = [16, 1], strides = [1, 1]} : vector<16x49xf32> to vector<16x1xf32>
    %1537 = vector.broadcast %1536 : vector<16x1xf32> to vector<16x512xf32>
    %1538 = arith.mulf %1535, %1537 : vector<16x512xf32>
    %1539 = arith.addf %1534, %1538 : vector<16x512xf32>
    %1540 = vector.extract_strided_slice %1539 {offsets = [0, 0], sizes = [8, 512], strides = [1, 1]} : vector<16x512xf32> to vector<8x512xf32>
    %1541 = vector.extract_strided_slice %1539 {offsets = [8, 0], sizes = [8, 512], strides = [1, 1]} : vector<16x512xf32> to vector<8x512xf32>
    %1542 = arith.addf %1540, %1541 : vector<8x512xf32>
    %cst_281 = arith.constant dense<0.000000e+00> : vector<8x256xf32>
    %1543 = tpu.matmul %1542, %7, %cst_281 {dimension_numbers = #tpu.dot_dimension_numbers<[1], [0], [0], [1], [0, 0, 1, 1], [], []>} : vector<8x512xf32>, vector<512x256xf32>, vector<8x256xf32> -> vector<8x256xf32>
    %c0_282 = arith.constant 0 : index
    %c0_283 = arith.constant 0 : index
    %1544 = vector.load %arg20[%c0_282, %c0_283] : memref<8x1xf32, #tpu.memory_space<vmem>>, vector<8x1xf32>
    %1545 = vector.broadcast %1544 : vector<8x1xf32> to vector<8x256xf32>
    %1546 = arith.addf %1543, %1545 : vector<8x256xf32>
    %cst_284 = arith.constant 0.000000e+00 : f32
    %1547 = vector.broadcast %cst_284 : f32 to vector<8x256xf32>
    %1548 = arith.subf %1547, %1546 : vector<8x256xf32>
    %1549 = math.exp %1548 : vector<8x256xf32>
    %cst_285 = arith.constant 1.000000e+00 : f32
    %1550 = vector.broadcast %cst_285 : f32 to vector<8x256xf32>
    %1551 = arith.addf %1550, %1549 : vector<8x256xf32>
    %1552 = tpu.reciprocal %1551 : vector<8x256xf32> -> vector<8x256xf32>
    %cst_286 = arith.constant 0.000000e+00 : f32
    %1553 = vector.broadcast %cst_286 : f32 to vector<8x256xf32>
    %1554 = arith.subf %1553, %1552 : vector<8x256xf32>
    %1555 = math.exp %1554 : vector<8x256xf32>
    %cst_287 = arith.constant 1.000000e+00 : f32
    %1556 = vector.broadcast %cst_287 : f32 to vector<8x256xf32>
    %1557 = arith.addf %1556, %1555 : vector<8x256xf32>
    %1558 = tpu.reciprocal %1557 : vector<8x256xf32> -> vector<8x256xf32>
    %1559 = arith.mulf %1558, %411 : vector<8x256xf32>
    %1560 = arith.addf %1014, %1559 : vector<8x256xf32>
    %cst_288 = arith.constant 1.000000e+00 : f32
    %1561 = vector.broadcast %cst_288 : f32 to vector<8x256xf32>
    %1562 = arith.subf %1561, %1558 : vector<8x256xf32>
    %1563 = arith.mulf %1562, %1013 : vector<8x256xf32>
    %1564 = arith.addf %1560, %1563 : vector<8x256xf32>
    %c0_289 = arith.constant 0 : index
    %c0_290 = arith.constant 0 : index
    %1565 = vector.load %arg21[%c0_289, %c0_290] : memref<8x8xf32, #tpu.memory_space<vmem>>, vector<8x8xf32>
    %cst_291 = arith.constant dense<0.000000e+00> : vector<8x256xf32>
    %1566 = tpu.matmul %1565, %1564, %cst_291 {dimension_numbers = #tpu.dot_dimension_numbers<[1], [0], [0], [1], [0, 0, 1, 1], [], []>} : vector<8x8xf32>, vector<8x256xf32>, vector<8x256xf32> -> vector<8x256xf32>
    %c0_292 = arith.constant 0 : index
    %c0_293 = arith.constant 0 : index
    %1567 = vector.load %arg22[%c0_292, %c0_293] : memref<8x1xf32, #tpu.memory_space<vmem>>, vector<8x1xf32>
    %1568 = vector.broadcast %1567 : vector<8x1xf32> to vector<8x256xf32>
    %1569 = arith.addf %1566, %1568 : vector<8x256xf32>
    %1570 = arith.addf %1569, %121 : vector<8x256xf32>
    %c0_294 = arith.constant 0 : index
    %c0_295 = arith.constant 0 : index
    %c0_296 = arith.constant 0 : index
    %1571 = vector.load %arg23[%c0_294, %c0_295, %c0_296] : memref<1x8x256xf32, #tpu.memory_space<vmem>>, vector<1x8x256xf32>
    %1572 = vector.shape_cast %1571 : vector<1x8x256xf32> to vector<8x256xf32>
    %1573 = vector.shape_cast %1570 : vector<8x256xf32> to vector<1x8x256xf32>
    tpu.vector_store %arg23[%c0_294, %c0_295, %c0_296], %1573 {strides = array<i32>} : memref<1x8x256xf32, #tpu.memory_space<vmem>>, vector<1x8x256xf32>,
    return
  }
  func.func @transform_0(%arg0: i32) -> (i32, i32, i32) {
    %c0_i32 = arith.constant 0 : i32
    %c0_i32_0 = arith.constant 0 : i32
    %c0_i32_1 = arith.constant 0 : i32
    return %arg0, %c0_i32, %c0_i32_0 : i32, i32, i32
  }
  func.func @transform_1(%arg0: i32) -> (i32, i32, i32) {
    %c0_i32 = arith.constant 0 : i32
    %c0_i32_0 = arith.constant 0 : i32
    %c0_i32_1 = arith.constant 0 : i32
    return %arg0, %c0_i32, %c0_i32_0 : i32, i32, i32
  }
  func.func @transform_2(%arg0: i32) -> (i32, i32) {
    %c0_i32 = arith.constant 0 : i32
    %c0_i32_0 = arith.constant 0 : i32
    %c0_i32_1 = arith.constant 0 : i32
    return %c0_i32, %c0_i32_0 : i32, i32
  }
  func.func @transform_3(%arg0: i32) -> (i32, i32) {
    %c0_i32 = arith.constant 0 : i32
    %c0_i32_0 = arith.constant 0 : i32
    %c0_i32_1 = arith.constant 0 : i32
    return %c0_i32, %c0_i32_0 : i32, i32
  }
  func.func @transform_4(%arg0: i32) -> (i32, i32) {
    %c0_i32 = arith.constant 0 : i32
    %c0_i32_0 = arith.constant 0 : i32
    %c0_i32_1 = arith.constant 0 : i32
    return %c0_i32, %c0_i32_0 : i32, i32
  }
  func.func @transform_5(%arg0: i32) -> (i32, i32) {
    %c0_i32 = arith.constant 0 : i32
    %c0_i32_0 = arith.constant 0 : i32
    %c0_i32_1 = arith.constant 0 : i32
    return %c0_i32, %c0_i32_0 : i32, i32
  }
  func.func @transform_6(%arg0: i32) -> (i32, i32) {
    %c0_i32 = arith.constant 0 : i32
    %c0_i32_0 = arith.constant 0 : i32
    %c0_i32_1 = arith.constant 0 : i32
    return %c0_i32, %c0_i32_0 : i32, i32
  }
  func.func @transform_7(%arg0: i32) -> (i32, i32) {
    %c0_i32 = arith.constant 0 : i32
    %c0_i32_0 = arith.constant 0 : i32
    %c0_i32_1 = arith.constant 0 : i32
    return %c0_i32, %c0_i32_0 : i32, i32
  }
  func.func @transform_8(%arg0: i32) -> (i32, i32) {
    %c0_i32 = arith.constant 0 : i32
    %c0_i32_0 = arith.constant 0 : i32
    %c0_i32_1 = arith.constant 0 : i32
    return %c0_i32, %c0_i32_0 : i32, i32
  }
  func.func @transform_9(%arg0: i32) -> (i32, i32) {
    %c0_i32 = arith.constant 0 : i32
    %c0_i32_0 = arith.constant 0 : i32
    %c0_i32_1 = arith.constant 0 : i32
    return %c0_i32, %c0_i32_0 : i32, i32
  }
  func.func @transform_10(%arg0: i32) -> (i32, i32) {
    %c0_i32 = arith.constant 0 : i32
    %c0_i32_0 = arith.constant 0 : i32
    %c0_i32_1 = arith.constant 0 : i32
    return %c0_i32, %c0_i32_0 : i32, i32
  }
  func.func @transform_11(%arg0: i32) -> (i32, i32) {
    %c0_i32 = arith.constant 0 : i32
    %c0_i32_0 = arith.constant 0 : i32
    %c0_i32_1 = arith.constant 0 : i32
    return %c0_i32, %c0_i32_0 : i32, i32
  }
  func.func @transform_12(%arg0: i32) -> (i32, i32) {
    %c0_i32 = arith.constant 0 : i32
    %c0_i32_0 = arith.constant 0 : i32
    %c0_i32_1 = arith.constant 0 : i32
    return %c0_i32, %c0_i32_0 : i32, i32
  }
  func.func @transform_13(%arg0: i32) -> (i32, i32) {
    %c0_i32 = arith.constant 0 : i32
    %c0_i32_0 = arith.constant 0 : i32
    %c0_i32_1 = arith.constant 0 : i32
    return %c0_i32, %c0_i32_0 : i32, i32
  }
  func.func @transform_14(%arg0: i32) -> (i32, i32) {
    %c0_i32 = arith.constant 0 : i32
    %c0_i32_0 = arith.constant 0 : i32
    %c0_i32_1 = arith.constant 0 : i32
    return %c0_i32, %c0_i32_0 : i32, i32
  }
  func.func @transform_15(%arg0: i32) -> (i32, i32) {
    %c0_i32 = arith.constant 0 : i32
    %c0_i32_0 = arith.constant 0 : i32
    %c0_i32_1 = arith.constant 0 : i32
    return %c0_i32, %c0_i32_0 : i32, i32
  }
  func.func @transform_16(%arg0: i32) -> (i32, i32) {
    %c0_i32 = arith.constant 0 : i32
    %c0_i32_0 = arith.constant 0 : i32
    %c0_i32_1 = arith.constant 0 : i32
    return %c0_i32, %c0_i32_0 : i32, i32
  }
  func.func @transform_17(%arg0: i32) -> (i32, i32) {
    %c0_i32 = arith.constant 0 : i32
    %c0_i32_0 = arith.constant 0 : i32
    %c0_i32_1 = arith.constant 0 : i32
    return %c0_i32, %c0_i32_0 : i32, i32
  }
  func.func @transform_18(%arg0: i32) -> (i32, i32) {
    %c0_i32 = arith.constant 0 : i32
    %c0_i32_0 = arith.constant 0 : i32
    %c0_i32_1 = arith.constant 0 : i32
    return %c0_i32, %c0_i32_0 : i32, i32
  }
  func.func @transform_19(%arg0: i32) -> (i32, i32) {
    %c0_i32 = arith.constant 0 : i32
    %c0_i32_0 = arith.constant 0 : i32
    %c0_i32_1 = arith.constant 0 : i32
    return %c0_i32, %c0_i32_0 : i32, i32
  }
  func.func @transform_20(%arg0: i32) -> (i32, i32) {
    %c0_i32 = arith.constant 0 : i32
    %c0_i32_0 = arith.constant 0 : i32
    %c0_i32_1 = arith.constant 0 : i32
    return %c0_i32, %c0_i32_0 : i32, i32
  }
  func.func @transform_21(%arg0: i32) -> (i32, i32) {
    %c0_i32 = arith.constant 0 : i32
    %c0_i32_0 = arith.constant 0 : i32
    %c0_i32_1 = arith.constant 0 : i32
    return %c0_i32, %c0_i32_0 : i32, i32
  }
  func.func @transform_22(%arg0: i32) -> (i32, i32, i32) {
    %c0_i32 = arith.constant 0 : i32
    %c0_i32_0 = arith.constant 0 : i32
    %c0_i32_1 = arith.constant 0 : i32
    return %arg0, %c0_i32, %c0_i32_0 : i32, i32, i32
  }
}

</mosaic_0001>

<llo_original>
// kernel: squeeze.12
$region0: #{squeeze.12}
  %s0 = inlined_call_operand.vmem [shape: f32[1,2,7,7], index: 0, kind: input, shape index: {}]
  %s1 = inlined_call_operand.vmem [shape: f32[2,49], index: 1, kind: output, shape index: {}]
  $region1: #{squeeze.12} parent=0
    #allocation0 [shape = 'u8[4096]{0}', space=vmem, size = 0x1000, scoped, tag = 'scoped mem for output reshape']
    %s2 = smov 3
    %v3 = vld [vmem:[%s0] ss:$8 sm:%s2]
    %vm4 = vcmask 56320
    %5 = vst.msk [vmem:[#allocation0] sm:$0x3] %vm4, %v3
    %s6 = scalar_lea.vmem %s0, 6
    %s7 = smov 3
    %v8 = vld [vmem:[%s6] ss:$8 sm:%s7]
    %9 = vrot.lane.b32.xlu0 %v8, 42
    %v10 = vpop.permute.xlu0 %9
    %vm11 = vcmask 400720
    %12 = vst.msk [vmem:[#allocation0] sm:$0x3] %vm11, %v10
    %s13 = scalar_lea.vmem %s0, 5
    %s14 = smov 3
    %v15 = vld [vmem:[%s13] ss:$8 sm:%s14]
    %16 = vrot.lane.b32.xlu0 %v15, 35
    %v17 = vpop.permute.xlu0 %16
    %vm18 = vcmask 343320
    %19 = vst.msk [vmem:[#allocation0] sm:$0x3] %vm18, %v17
    %s20 = scalar_lea.vmem %s0, 4
    %s21 = smov 3
    %v22 = vld [vmem:[%s20] ss:$8 sm:%s21]
    %23 = vrot.lane.b32.xlu0 %v22, 28
    %v24 = vpop.permute.xlu0 %23
    %vm25 = vcmask 285920
    %26 = vst.msk [vmem:[#allocation0] sm:$0x3] %vm25, %v24
    %s27 = scalar_lea.vmem %s0, 3
    %s28 = smov 3
    %v29 = vld [vmem:[%s27] ss:$8 sm:%s28]
    %30 = vrot.lane.b32.xlu0 %v29, 21
    %v31 = vpop.permute.xlu0 %30
    %vm32 = vcmask 228520
    %33 = vst.msk [vmem:[#allocation0] sm:$0x3] %vm32, %v31
    %s34 = scalar_lea.vmem %s0, 2
    %s35 = smov 3
    %v36 = vld [vmem:[%s34] ss:$8 sm:%s35]
    %37 = vrot.lane.b32.xlu0 %v36, 14
    %v38 = vpop.permute.xlu0 %37
    %vm39 = vcmask 171120
    %40 = vst.msk [vmem:[#allocation0] sm:$0x3] %vm39, %v38
    %s41 = scalar_lea.vmem %s0, 1
    %s42 = smov 3
    %v43 = vld [vmem:[%s41] ss:$8 sm:%s42]
    %44 = vrot.lane.b32.xlu0 %v43, 7
    %v45 = vpop.permute.xlu0 %44
    %vm46 = vcmask 113720
    %47 = vst.msk [vmem:[#allocation0] sm:$0x3] %vm46, %v45
    %s49 = ssub.s32 4, 1
    %v50 = vld [vmem:[#allocation0] sm:%s49]
    %s52 = ssub.s32 4, 1
    %53 = vst [vmem:[%s1] sm:%s52] %v50

</llo_original>
